<compile_context>
chip_gen: v7x
topology: tpu7x:2x2x1
jax: 0.10.0
libtpu: 0.0.40
codegen_flags: <defaults>
</compile_context>

<pallas_src>
import jax
import jax.numpy as jnp
from jax.experimental import pallas as pl
from jax.experimental.pallas import tpu as pltpu

HEAD_PAD = 128  # lane-dense fused-head width (cols 0:5 breslow, 5 ulceration, 6 relapse)


# ----------------------------------------------------------------------------
# Kernel
# ----------------------------------------------------------------------------
def _dense(x, w_ref, b_ref, relu):
    """y = x @ W + b : bf16 MXU matmul, f32 accumulate, f32 bias/activation."""
    y = jnp.dot(x.astype(jnp.bfloat16), w_ref[...],
                preferred_element_type=jnp.float32) + b_ref[...]
    return jnp.maximum(y, 0.0) if relu else y


def _dense_q(x, w_i8_ref, scale_ref, b_ref):
    """int8-stored weight: dequant to bf16 on the VPU, per-output-channel
    scale folded into the f32 accumulator, then bias + ReLU."""
    # two-step convert (i8 -> f32 -> bf16) is cheap and always lowers cleanly
    w = w_i8_ref[...].astype(jnp.float32).astype(jnp.bfloat16)
    y = jnp.dot(x.astype(jnp.bfloat16), w, preferred_element_type=jnp.float32)
    y = y * scale_ref[...] + b_ref[...]
    return jnp.maximum(y, 0.0)


def melanoma_kernel(pooled_ref, tab_ref,
                    wp_ref, bp_ref,
                    wi1_ref, si1_ref, bi1_ref,
                    wi2_ref, si2_ref, bi2_ref,
                    wi3_ref, bi3_ref,
                    wt1_ref, bt1_ref, wt2_ref, bt2_ref,
                    wc1i_ref, wc1t_ref, bc1_ref, wc2_ref, bc2_ref,
                    wh_ref, bh_ref,
                    head_ref):
    # ---- backbone surrogate: projection of the (wrapper-pooled) image features
    feat512 = _dense(pooled_ref[...], wp_ref, bp_ref, relu=False)     # (bB, 512)

    # ---- image MLP feature extractor (Linear+ReLU x3; dropout = identity)
    h = _dense_q(feat512, wi1_ref, si1_ref, bi1_ref)                  # (bB, 1024)
    h = _dense_q(h, wi2_ref, si2_ref, bi2_ref)                        # (bB, 1024)
    img_emb = _dense(h, wi3_ref, bi3_ref, relu=True)                  # (bB, 128)

    # ---- tabular feature extractor
    t = _dense(tab_ref[...], wt1_ref, bt1_ref, relu=True)             # (bB, 64)
    tab_emb = _dense(t, wt2_ref, bt2_ref, relu=True)                  # (bB, 128)

    # ---- classifier layer 1: concat replaced by split-K matmul (no relayout)
    # (kept as two K=128 passes: optimal on v5e's 128-wide MXU; negligible on
    #  v6e/v7x in the DMA-bound regime)
    c = jnp.dot(img_emb.astype(jnp.bfloat16), wc1i_ref[...],
                preferred_element_type=jnp.float32)
    c = c + jnp.dot(tab_emb.astype(jnp.bfloat16), wc1t_ref[...],
                    preferred_element_type=jnp.float32)
    c = jnp.maximum(c + bc1_ref[...], 0.0)                            # (bB, 512)
    c = _dense(c, wc2_ref, bc2_ref, relu=True)                        # (bB, 256)

    # ---- fused heads: one lane-dense (bB, 128) slab; sigmoid on lanes 5:7
    y = _dense(c, wh_ref, bh_ref, relu=False)
    col = jax.lax.broadcasted_iota(jnp.int32, y.shape, 1)
    y = jnp.where((col >= 5) & (col < 7), jax.nn.sigmoid(y), y)
    head_ref[...] = y


# ----------------------------------------------------------------------------
# Wrapper
# ----------------------------------------------------------------------------
def _quantize_int8(w):
    """Per-output-channel symmetric int8 quantization (storage format only)."""
    amax = jnp.max(jnp.abs(w), axis=0, keepdims=True)                 # (1, N)
    scale = jnp.maximum(amax, 1e-8) / 127.0
    wq = jnp.clip(jnp.round(w / scale), -127, 127).astype(jnp.int8)
    return wq, scale.astype(jnp.float32)


def melanoma_predictor(image_nchw, params, weights):
    (wp, bp, wi1, bi1, wi2, bi2, wi3, bi3,
     wt1, bt1, wt2, bt2, wc1, bc1, wc2, bc2,
     wb, bb, wu, bu, wr, br) = weights

    B, C, _, _ = image_nchw.shape
    in_dim = params.shape[1]

    # GAP in the wrapper: only a (B, C) tensor enters the kernel (no H*W DMA).
    pooled = jnp.mean(image_nchw.astype(jnp.float32), axis=(2, 3))    # (B, C)
    tab = params.astype(jnp.float32)

    bf16 = lambda w: w.astype(jnp.bfloat16)
    f32 = lambda b: b.astype(jnp.float32)

    # int8 storage for the two dominant weights (halves dominant HBM bytes).
    wi1_q, si1 = _quantize_int8(wi1)
    wi2_q, si2 = _quantize_int8(wi2)

    # split classifier layer 1 at the actual image-embedding width (no concat)
    img_emb_dim = wi3.shape[1]
    tab_emb_dim = wt2.shape[1]
    assert img_emb_dim + tab_emb_dim == wc1.shape[0]
    wc1_img, wc1_tab = wc1[:img_emb_dim], wc1[img_emb_dim:]

    # fuse + pad the three heads into one lane-dense (256, 128) weight
    wh = jnp.concatenate([wb, wu, wr], axis=1)                        # (256, 7)
    bh = jnp.concatenate([bb, bu, br], axis=1)                        # (1, 7)
    wh = jnp.pad(wh, ((0, 0), (0, HEAD_PAD - wh.shape[1])))
    bh = jnp.pad(bh, ((0, 0), (0, HEAD_PAD - bh.shape[1])))

    # ---- batch grid: weights resident, batch blocks pipelined
    if B <= 128:
        block_b, b_pad = B, B
    else:
        block_b = 128
        b_pad = pl.cdiv(B, block_b) * block_b
    if b_pad != B:
        pooled = jnp.pad(pooled, ((0, b_pad - B), (0, 0)))
        tab = jnp.pad(tab, ((0, b_pad - B), (0, 0)))
    grid = (b_pad // block_b,)

    weight_ops = [
        bf16(wp), f32(bp),
        wi1_q, si1, f32(bi1),
        wi2_q, si2, f32(bi2),
        bf16(wi3), f32(bi3),
        bf16(wt1), f32(bt1), bf16(wt2), f32(bt2),
        bf16(wc1_img), bf16(wc1_tab), f32(bc1), bf16(wc2), f32(bc2),
        bf16(wh), f32(bh),
    ]
    operands = [pooled, tab] + weight_ops

    def batch_spec(arr):          # blocked along batch
        return pl.BlockSpec((block_b, arr.shape[1]), lambda i: (i, 0))

    def resident_spec(arr):       # constant block index -> DMA'd once, stays in VMEM
        return pl.BlockSpec(arr.shape, lambda i: (0, 0))

    in_specs = ([batch_spec(pooled), batch_spec(tab)]
                + [resident_spec(w) for w in weight_ops])
    out_specs = pl.BlockSpec((block_b, HEAD_PAD), lambda i: (i, 0))

    # advisory cost estimate
    matmul_kn = [(C, 512), (512, 1024), (1024, 1024), (1024, img_emb_dim),
                 (in_dim, 64), (64, tab_emb_dim),
                 (img_emb_dim, 512), (tab_emb_dim, 512),
                 (512, 256), (256, HEAD_PAD)]
    flops = 2 * b_pad * sum(k * n for k, n in matmul_kn)
    bytes_accessed = (sum(int(o.size) * o.dtype.itemsize for o in operands)
                      + b_pad * HEAD_PAD * 4)

    # VMEM limit from the actual footprint (x2 for default double-buffering)
    # plus a 4 MiB margin for activations / layout padding.
    block_bytes = (sum(int(w.size) * w.dtype.itemsize for w in weight_ops)
                   + block_b * (pooled.shape[1] + tab.shape[1] + HEAD_PAD) * 4)
    vmem_limit = int(2 * block_bytes + (4 << 20))

    head_slab = pl.pallas_call(
        melanoma_kernel,
        out_shape=jax.ShapeDtypeStruct((b_pad, HEAD_PAD), jnp.float32),
        grid=grid,
        in_specs=in_specs,
        out_specs=out_specs,
        compiler_params=pltpu.CompilerParams(
            # stay on one TensorCore while weight-DMA bound: a "parallel" batch
            # axis on v7x would split across 2 TCs and duplicate the weight DMA.
            dimension_semantics=("arbitrary",),
            vmem_limit_bytes=vmem_limit),
        cost_estimate=pl.CostEstimate(
            flops=flops, transcendentals=2 * b_pad, bytes_accessed=bytes_accessed),
    )(*operands)

    head = head_slab[:B]
    breslow = head[:, 0:5]
    ulceration = head[:, 5:6]   # sigmoid already applied in-kernel
    relapse = head[:, 6:7]      # sigmoid already applied in-kernel
    return relapse, breslow, ulceration


# ----------------------------------------------------------------------------
# Deterministic parameter init (synthetic, matches module layer shapes)
# ----------------------------------------------------------------------------
def init_weights(key, c_in=3, in_dim=5, out_dim=128):
    def lin(k, fin, fout):
        kw, kb = jax.random.split(k)
        w = jax.random.normal(kw, (fin, fout), jnp.float32) * (fin ** -0.5)
        b = jax.random.normal(kb, (1, fout), jnp.float32) * 0.01
        return w, b

    keys = jax.random.split(key, 11)
    layers = [
        lin(keys[0], c_in, 512),      # backbone surrogate projection
        lin(keys[1], 512, 1024),      # image MLP
        lin(keys[2], 1024, 1024),
        lin(keys[3], 1024, out_dim),
        lin(keys[4], in_dim, 64),     # tabular MLP
        lin(keys[5], 64, 128),
        lin(keys[6], 256, 512),       # classifier
        lin(keys[7], 512, 256),
        lin(keys[8], 256, 5),         # breslow head
        lin(keys[9], 256, 1),         # ulceration head
        lin(keys[10], 256, 1),        # relapse head
    ]
    flat = []
    for w, b in layers:
        flat += [w, b]
    return flat


# ----------------------------------------------------------------------------
# Pure-JAX reference (bf16 matmuls, original concat / separate-head layout)
# ----------------------------------------------------------------------------
def reference(image_nchw, params, weights):
    (wp, bp, wi1, bi1, wi2, bi2, wi3, bi3,
     wt1, bt1, wt2, bt2, wc1, bc1, wc2, bc2,
     wb, bb, wu, bu, wr, br) = weights

    def dense(x, w, b, relu=False):
        y = jnp.dot(x.astype(jnp.bfloat16), w.astype(jnp.bfloat16),
                    preferred_element_type=jnp.float32) + b.astype(jnp.float32)
        return jnp.maximum(y, 0.0) if relu else y

    pooled = jnp.mean(image_nchw.astype(jnp.float32), axis=(2, 3))   # (B, C)
    f = dense(pooled, wp, bp)
    h = dense(f, wi1, bi1, relu=True)
    h = dense(h, wi2, bi2, relu=True)
    img_emb = dense(h, wi3, bi3, relu=True)
    t = dense(params.astype(jnp.float32), wt1, bt1, relu=True)
    tab_emb = dense(t, wt2, bt2, relu=True)
    emb = jnp.concatenate([img_emb, tab_emb], axis=1)
    c = dense(emb, wc1, bc1, relu=True)
    c = dense(c, wc2, bc2, relu=True)
    breslow = dense(c, wb, bb)
    ulcer = jax.nn.sigmoid(dense(c, wu, bu))
    relapse = jax.nn.sigmoid(dense(c, wr, br))
    return relapse, breslow, ulcer


# ----------------------------------------------------------------------------
if __name__ == "__main__":
    key = jax.random.PRNGKey(0)
    k_img, k_tab, k_w = jax.random.split(key, 3)

    B, C, H, W = 2, 3, 16, 16
    in_dim = 5
    image = jax.random.normal(k_img, (B, C, H, W), jnp.float32)
    params = jax.random.normal(k_tab, (B, in_dim), jnp.float32)
    weights = init_weights(k_w, c_in=C, in_dim=in_dim, out_dim=128)

    relapse, breslow, ulcer = melanoma_predictor(image, params, weights)
    jax.block_until_ready((relapse, breslow, ulcer))

    # reference uses the same int8 quantize->dequantize of wi1/wi2 so the
    # comparison isolates kernel correctness (accuracy vs the original f32
    # checkpoint is a separate numerics question).
    ref_weights = list(weights)
    wi1_q, si1 = _quantize_int8(weights[2])
    wi2_q, si2 = _quantize_int8(weights[4])
    ref_weights[2] = wi1_q.astype(jnp.float32) * si1
    ref_weights[4] = wi2_q.astype(jnp.float32) * si2
    r_ref, b_ref, u_ref = reference(image, params, ref_weights)

    assert relapse.shape == (B, 1) and breslow.shape == (B, 5) and ulcer.shape == (B, 1)
    assert jnp.allclose(relapse, r_ref, atol=2e-2, rtol=2e-2)
    assert jnp.allclose(breslow, b_ref, atol=2e-2, rtol=2e-2)
    assert jnp.allclose(ulcer, u_ref, atol=2e-2, rtol=2e-2)

    print("KERNEL_OK")
</pallas_src>

<mosaic_0001>
module attributes {stable_mosaic.version = 11 : i64} {
  func.func @melanoma_kernel(%arg0: i32, %arg1: memref<2x3xf32, #tpu.memory_space<vmem>>, %arg2: memref<2x5xf32, #tpu.memory_space<vmem>>, %arg3: memref<3x512xbf16, #tpu.memory_space<vmem>>, %arg4: memref<1x512xf32, #tpu.memory_space<vmem>>, %arg5: memref<512x1024xi8, #tpu.memory_space<vmem>>, %arg6: memref<1x1024xf32, #tpu.memory_space<vmem>>, %arg7: memref<1x1024xf32, #tpu.memory_space<vmem>>, %arg8: memref<1024x1024xi8, #tpu.memory_space<vmem>>, %arg9: memref<1x1024xf32, #tpu.memory_space<vmem>>, %arg10: memref<1x1024xf32, #tpu.memory_space<vmem>>, %arg11: memref<1024x128xbf16, #tpu.memory_space<vmem>>, %arg12: memref<1x128xf32, #tpu.memory_space<vmem>>, %arg13: memref<5x64xbf16, #tpu.memory_space<vmem>>, %arg14: memref<1x64xf32, #tpu.memory_space<vmem>>, %arg15: memref<64x128xbf16, #tpu.memory_space<vmem>>, %arg16: memref<1x128xf32, #tpu.memory_space<vmem>>, %arg17: memref<128x512xbf16, #tpu.memory_space<vmem>>, %arg18: memref<128x512xbf16, #tpu.memory_space<vmem>>, %arg19: memref<1x512xf32, #tpu.memory_space<vmem>>, %arg20: memref<512x256xbf16, #tpu.memory_space<vmem>>, %arg21: memref<1x256xf32, #tpu.memory_space<vmem>>, %arg22: memref<256x128xbf16, #tpu.memory_space<vmem>>, %arg23: memref<1x128xf32, #tpu.memory_space<vmem>>, %arg24: memref<2x128xf32, #tpu.memory_space<vmem>>) attributes {dimension_semantics = [#tpu.dimension_semantics<arbitrary>], iteration_bounds = array<i64: 1>, scalar_prefetch = 0 : i64, scratch_operands = 0 : i64, tpu.core_type = #tpu.core_type<tc>, window_params = [{transform_indices = @transform_0, window_bounds = array<i64: 2, 3>}, {transform_indices = @transform_1, window_bounds = array<i64: 2, 5>}, {pipeline_mode = #tpu.pipeline_mode<synchronous>, transform_indices = @transform_2, window_bounds = array<i64: 3, 512>}, {pipeline_mode = #tpu.pipeline_mode<synchronous>, transform_indices = @transform_3, window_bounds = array<i64: 1, 512>}, {pipeline_mode = #tpu.pipeline_mode<synchronous>, transform_indices = @transform_4, window_bounds = array<i64: 512, 1024>}, {pipeline_mode = #tpu.pipeline_mode<synchronous>, transform_indices = @transform_5, window_bounds = array<i64: 1, 1024>}, {pipeline_mode = #tpu.pipeline_mode<synchronous>, transform_indices = @transform_6, window_bounds = array<i64: 1, 1024>}, {pipeline_mode = #tpu.pipeline_mode<synchronous>, transform_indices = @transform_7, window_bounds = array<i64: 1024, 1024>}, {pipeline_mode = #tpu.pipeline_mode<synchronous>, transform_indices = @transform_8, window_bounds = array<i64: 1, 1024>}, {pipeline_mode = #tpu.pipeline_mode<synchronous>, transform_indices = @transform_9, window_bounds = array<i64: 1, 1024>}, {pipeline_mode = #tpu.pipeline_mode<synchronous>, transform_indices = @transform_10, window_bounds = array<i64: 1024, 128>}, {pipeline_mode = #tpu.pipeline_mode<synchronous>, transform_indices = @transform_11, window_bounds = array<i64: 1, 128>}, {pipeline_mode = #tpu.pipeline_mode<synchronous>, transform_indices = @transform_12, window_bounds = array<i64: 5, 64>}, {pipeline_mode = #tpu.pipeline_mode<synchronous>, transform_indices = @transform_13, window_bounds = array<i64: 1, 64>}, {pipeline_mode = #tpu.pipeline_mode<synchronous>, transform_indices = @transform_14, window_bounds = array<i64: 64, 128>}, {pipeline_mode = #tpu.pipeline_mode<synchronous>, transform_indices = @transform_15, window_bounds = array<i64: 1, 128>}, {pipeline_mode = #tpu.pipeline_mode<synchronous>, transform_indices = @transform_16, window_bounds = array<i64: 128, 512>}, {pipeline_mode = #tpu.pipeline_mode<synchronous>, transform_indices = @transform_17, window_bounds = array<i64: 128, 512>}, {pipeline_mode = #tpu.pipeline_mode<synchronous>, transform_indices = @transform_18, window_bounds = array<i64: 1, 512>}, {pipeline_mode = #tpu.pipeline_mode<synchronous>, transform_indices = @transform_19, window_bounds = array<i64: 512, 256>}, {pipeline_mode = #tpu.pipeline_mode<synchronous>, transform_indices = @transform_20, window_bounds = array<i64: 1, 256>}, {pipeline_mode = #tpu.pipeline_mode<synchronous>, transform_indices = @transform_21, window_bounds = array<i64: 256, 128>}, {pipeline_mode = #tpu.pipeline_mode<synchronous>, transform_indices = @transform_22, window_bounds = array<i64: 1, 128>}, {transform_indices = @transform_23, window_bounds = array<i64: 2, 128>}]} {
    %c0 = arith.constant 0 : index
    %c0_0 = arith.constant 0 : index
    %0 = vector.load %arg1[%c0, %c0_0] : memref<2x3xf32, #tpu.memory_space<vmem>>, vector<2x3xf32>
    %1 = arith.truncf %0 : vector<2x3xf32> to vector<2x3xbf16>
    %c0_1 = arith.constant 0 : index
    %c0_2 = arith.constant 0 : index
    %2 = vector.load %arg3[%c0_1, %c0_2] : memref<3x512xbf16, #tpu.memory_space<vmem>>, vector<3x512xbf16>
    %cst = arith.constant dense<0.000000e+00> : vector<2x512xf32>
    %3 = tpu.matmul %1, %2, %cst {dimension_numbers = #tpu.dot_dimension_numbers<[1], [0], [0], [1], [0, 0, 1, 1], [], []>} : vector<2x3xbf16>, vector<3x512xbf16>, vector<2x512xf32> -> vector<2x512xf32>
    %c0_3 = arith.constant 0 : index
    %c0_4 = arith.constant 0 : index
    %4 = vector.load %arg4[%c0_3, %c0_4] : memref<1x512xf32, #tpu.memory_space<vmem>>, vector<1x512xf32>
    %5 = vector.broadcast %4 : vector<1x512xf32> to vector<2x512xf32>
    %6 = arith.addf %3, %5 : vector<2x512xf32>
    %c0_5 = arith.constant 0 : index
    %c0_6 = arith.constant 0 : index
    %7 = vector.load %arg5[%c0_5, %c0_6] : memref<512x1024xi8, #tpu.memory_space<vmem>>, vector<512x1024xi8>
    %8 = arith.sitofp %7 : vector<512x1024xi8> to vector<512x1024xf32>
    %9 = arith.truncf %8 : vector<512x1024xf32> to vector<512x1024xbf16>
    %10 = arith.truncf %6 : vector<2x512xf32> to vector<2x512xbf16>
    %cst_7 = arith.constant dense<0.000000e+00> : vector<2x1024xf32>
    %11 = tpu.matmul %10, %9, %cst_7 {dimension_numbers = #tpu.dot_dimension_numbers<[1], [0], [0], [1], [0, 0, 1, 1], [], []>} : vector<2x512xbf16>, vector<512x1024xbf16>, vector<2x1024xf32> -> vector<2x1024xf32>
    %c0_8 = arith.constant 0 : index
    %c0_9 = arith.constant 0 : index
    %12 = vector.load %arg6[%c0_8, %c0_9] : memref<1x1024xf32, #tpu.memory_space<vmem>>, vector<1x1024xf32>
    %13 = vector.broadcast %12 : vector<1x1024xf32> to vector<2x1024xf32>
    %14 = arith.mulf %11, %13 : vector<2x1024xf32>
    %c0_10 = arith.constant 0 : index
    %c0_11 = arith.constant 0 : index
    %15 = vector.load %arg7[%c0_10, %c0_11] : memref<1x1024xf32, #tpu.memory_space<vmem>>, vector<1x1024xf32>
    %16 = vector.broadcast %15 : vector<1x1024xf32> to vector<2x1024xf32>
    %17 = arith.addf %14, %16 : vector<2x1024xf32>
    %cst_12 = arith.constant 0.000000e+00 : f32
    %18 = vector.broadcast %cst_12 : f32 to vector<2x1024xf32>
    %19 = arith.maximumf %17, %18 : vector<2x1024xf32>
    %c0_13 = arith.constant 0 : index
    %c0_14 = arith.constant 0 : index
    %20 = vector.load %arg8[%c0_13, %c0_14] : memref<1024x1024xi8, #tpu.memory_space<vmem>>, vector<1024x1024xi8>
    %21 = arith.sitofp %20 : vector<1024x1024xi8> to vector<1024x1024xf32>
    %22 = arith.truncf %21 : vector<1024x1024xf32> to vector<1024x1024xbf16>
    %23 = arith.truncf %19 : vector<2x1024xf32> to vector<2x1024xbf16>
    %cst_15 = arith.constant dense<0.000000e+00> : vector<2x1024xf32>
    %24 = tpu.matmul %23, %22, %cst_15 {dimension_numbers = #tpu.dot_dimension_numbers<[1], [0], [0], [1], [0, 0, 1, 1], [], []>} : vector<2x1024xbf16>, vector<1024x1024xbf16>, vector<2x1024xf32> -> vector<2x1024xf32>
    %c0_16 = arith.constant 0 : index
    %c0_17 = arith.constant 0 : index
    %25 = vector.load %arg9[%c0_16, %c0_17] : memref<1x1024xf32, #tpu.memory_space<vmem>>, vector<1x1024xf32>
    %26 = vector.broadcast %25 : vector<1x1024xf32> to vector<2x1024xf32>
    %27 = arith.mulf %24, %26 : vector<2x1024xf32>
    %c0_18 = arith.constant 0 : index
    %c0_19 = arith.constant 0 : index
    %28 = vector.load %arg10[%c0_18, %c0_19] : memref<1x1024xf32, #tpu.memory_space<vmem>>, vector<1x1024xf32>
    %29 = vector.broadcast %28 : vector<1x1024xf32> to vector<2x1024xf32>
    %30 = arith.addf %27, %29 : vector<2x1024xf32>
    %cst_20 = arith.constant 0.000000e+00 : f32
    %31 = vector.broadcast %cst_20 : f32 to vector<2x1024xf32>
    %32 = arith.maximumf %30, %31 : vector<2x1024xf32>
    %33 = arith.truncf %32 : vector<2x1024xf32> to vector<2x1024xbf16>
    %c0_21 = arith.constant 0 : index
    %c0_22 = arith.constant 0 : index
    %34 = vector.load %arg11[%c0_21, %c0_22] : memref<1024x128xbf16, #tpu.memory_space<vmem>>, vector<1024x128xbf16>
    %cst_23 = arith.constant dense<0.000000e+00> : vector<2x128xf32>
    %35 = tpu.matmul %33, %34, %cst_23 {dimension_numbers = #tpu.dot_dimension_numbers<[1], [0], [0], [1], [0, 0, 1, 1], [], []>} : vector<2x1024xbf16>, vector<1024x128xbf16>, vector<2x128xf32> -> vector<2x128xf32>
    %c0_24 = arith.constant 0 : index
    %c0_25 = arith.constant 0 : index
    %36 = vector.load %arg12[%c0_24, %c0_25] : memref<1x128xf32, #tpu.memory_space<vmem>>, vector<1x128xf32>
    %37 = vector.broadcast %36 : vector<1x128xf32> to vector<2x128xf32>
    %38 = arith.addf %35, %37 : vector<2x128xf32>
    %cst_26 = arith.constant 0.000000e+00 : f32
    %39 = vector.broadcast %cst_26 : f32 to vector<2x128xf32>
    %40 = arith.maximumf %38, %39 : vector<2x128xf32>
    %c0_27 = arith.constant 0 : index
    %c0_28 = arith.constant 0 : index
    %41 = vector.load %arg2[%c0_27, %c0_28] : memref<2x5xf32, #tpu.memory_space<vmem>>, vector<2x5xf32>
    %42 = arith.truncf %41 : vector<2x5xf32> to vector<2x5xbf16>
    %c0_29 = arith.constant 0 : index
    %c0_30 = arith.constant 0 : index
    %43 = vector.load %arg13[%c0_29, %c0_30] : memref<5x64xbf16, #tpu.memory_space<vmem>>, vector<5x64xbf16>
    %cst_31 = arith.constant dense<0.000000e+00> : vector<2x64xf32>
    %44 = tpu.matmul %42, %43, %cst_31 {dimension_numbers = #tpu.dot_dimension_numbers<[1], [0], [0], [1], [0, 0, 1, 1], [], []>} : vector<2x5xbf16>, vector<5x64xbf16>, vector<2x64xf32> -> vector<2x64xf32>
    %c0_32 = arith.constant 0 : index
    %c0_33 = arith.constant 0 : index
    %45 = vector.load %arg14[%c0_32, %c0_33] : memref<1x64xf32, #tpu.memory_space<vmem>>, vector<1x64xf32>
    %46 = vector.broadcast %45 : vector<1x64xf32> to vector<2x64xf32>
    %47 = arith.addf %44, %46 : vector<2x64xf32>
    %cst_34 = arith.constant 0.000000e+00 : f32
    %48 = vector.broadcast %cst_34 : f32 to vector<2x64xf32>
    %49 = arith.maximumf %47, %48 : vector<2x64xf32>
    %50 = arith.truncf %49 : vector<2x64xf32> to vector<2x64xbf16>
    %c0_35 = arith.constant 0 : index
    %c0_36 = arith.constant 0 : index
    %51 = vector.load %arg15[%c0_35, %c0_36] : memref<64x128xbf16, #tpu.memory_space<vmem>>, vector<64x128xbf16>
    %cst_37 = arith.constant dense<0.000000e+00> : vector<2x128xf32>
    %52 = tpu.matmul %50, %51, %cst_37 {dimension_numbers = #tpu.dot_dimension_numbers<[1], [0], [0], [1], [0, 0, 1, 1], [], []>} : vector<2x64xbf16>, vector<64x128xbf16>, vector<2x128xf32> -> vector<2x128xf32>
    %c0_38 = arith.constant 0 : index
    %c0_39 = arith.constant 0 : index
    %53 = vector.load %arg16[%c0_38, %c0_39] : memref<1x128xf32, #tpu.memory_space<vmem>>, vector<1x128xf32>
    %54 = vector.broadcast %53 : vector<1x128xf32> to vector<2x128xf32>
    %55 = arith.addf %52, %54 : vector<2x128xf32>
    %cst_40 = arith.constant 0.000000e+00 : f32
    %56 = vector.broadcast %cst_40 : f32 to vector<2x128xf32>
    %57 = arith.maximumf %55, %56 : vector<2x128xf32>
    %58 = arith.truncf %40 : vector<2x128xf32> to vector<2x128xbf16>
    %c0_41 = arith.constant 0 : index
    %c0_42 = arith.constant 0 : index
    %59 = vector.load %arg17[%c0_41, %c0_42] : memref<128x512xbf16, #tpu.memory_space<vmem>>, vector<128x512xbf16>
    %cst_43 = arith.constant dense<0.000000e+00> : vector<2x512xf32>
    %60 = tpu.matmul %58, %59, %cst_43 {dimension_numbers = #tpu.dot_dimension_numbers<[1], [0], [0], [1], [0, 0, 1, 1], [], []>} : vector<2x128xbf16>, vector<128x512xbf16>, vector<2x512xf32> -> vector<2x512xf32>
    %61 = arith.truncf %57 : vector<2x128xf32> to vector<2x128xbf16>
    %c0_44 = arith.constant 0 : index
    %c0_45 = arith.constant 0 : index
    %62 = vector.load %arg18[%c0_44, %c0_45] : memref<128x512xbf16, #tpu.memory_space<vmem>>, vector<128x512xbf16>
    %cst_46 = arith.constant dense<0.000000e+00> : vector<2x512xf32>
    %63 = tpu.matmul %61, %62, %cst_46 {dimension_numbers = #tpu.dot_dimension_numbers<[1], [0], [0], [1], [0, 0, 1, 1], [], []>} : vector<2x128xbf16>, vector<128x512xbf16>, vector<2x512xf32> -> vector<2x512xf32>
    %64 = arith.addf %60, %63 : vector<2x512xf32>
    %c0_47 = arith.constant 0 : index
    %c0_48 = arith.constant 0 : index
    %65 = vector.load %arg19[%c0_47, %c0_48] : memref<1x512xf32, #tpu.memory_space<vmem>>, vector<1x512xf32>
    %66 = vector.broadcast %65 : vector<1x512xf32> to vector<2x512xf32>
    %67 = arith.addf %64, %66 : vector<2x512xf32>
    %cst_49 = arith.constant 0.000000e+00 : f32
    %68 = vector.broadcast %cst_49 : f32 to vector<2x512xf32>
    %69 = arith.maximumf %67, %68 : vector<2x512xf32>
    %70 = arith.truncf %69 : vector<2x512xf32> to vector<2x512xbf16>
    %c0_50 = arith.constant 0 : index
    %c0_51 = arith.constant 0 : index
    %71 = vector.load %arg20[%c0_50, %c0_51] : memref<512x256xbf16, #tpu.memory_space<vmem>>, vector<512x256xbf16>
    %cst_52 = arith.constant dense<0.000000e+00> : vector<2x256xf32>
    %72 = tpu.matmul %70, %71, %cst_52 {dimension_numbers = #tpu.dot_dimension_numbers<[1], [0], [0], [1], [0, 0, 1, 1], [], []>} : vector<2x512xbf16>, vector<512x256xbf16>, vector<2x256xf32> -> vector<2x256xf32>
    %c0_53 = arith.constant 0 : index
    %c0_54 = arith.constant 0 : index
    %73 = vector.load %arg21[%c0_53, %c0_54] : memref<1x256xf32, #tpu.memory_space<vmem>>, vector<1x256xf32>
    %74 = vector.broadcast %73 : vector<1x256xf32> to vector<2x256xf32>
    %75 = arith.addf %72, %74 : vector<2x256xf32>
    %cst_55 = arith.constant 0.000000e+00 : f32
    %76 = vector.broadcast %cst_55 : f32 to vector<2x256xf32>
    %77 = arith.maximumf %75, %76 : vector<2x256xf32>
    %78 = arith.truncf %77 : vector<2x256xf32> to vector<2x256xbf16>
    %c0_56 = arith.constant 0 : index
    %c0_57 = arith.constant 0 : index
    %79 = vector.load %arg22[%c0_56, %c0_57] : memref<256x128xbf16, #tpu.memory_space<vmem>>, vector<256x128xbf16>
    %cst_58 = arith.constant dense<0.000000e+00> : vector<2x128xf32>
    %80 = tpu.matmul %78, %79, %cst_58 {dimension_numbers = #tpu.dot_dimension_numbers<[1], [0], [0], [1], [0, 0, 1, 1], [], []>} : vector<2x256xbf16>, vector<256x128xbf16>, vector<2x128xf32> -> vector<2x128xf32>
    %c0_59 = arith.constant 0 : index
    %c0_60 = arith.constant 0 : index
    %81 = vector.load %arg23[%c0_59, %c0_60] : memref<1x128xf32, #tpu.memory_space<vmem>>, vector<1x128xf32>
    %82 = vector.broadcast %81 : vector<1x128xf32> to vector<2x128xf32>
    %83 = arith.addf %80, %82 : vector<2x128xf32>
    %84 = tpu.iota {dimensions = array<i32: 1>} : vector<2x128xi32>
    %c5_i32 = arith.constant 5 : i32
    %85 = vector.broadcast %c5_i32 : i32 to vector<2x128xi32>
    %86 = arith.cmpi sge, %84, %85 : vector<2x128xi32>
    %c7_i32 = arith.constant 7 : i32
    %87 = vector.broadcast %c7_i32 : i32 to vector<2x128xi32>
    %88 = arith.cmpi slt, %84, %87 : vector<2x128xi32>
    %89 = arith.andi %86, %88 : vector<2x128xi1>
    %90 = arith.negf %83 : vector<2x128xf32>
    %91 = math.exp %90 : vector<2x128xf32>
    %cst_61 = arith.constant 1.000000e+00 : f32
    %92 = vector.broadcast %cst_61 : f32 to vector<2x128xf32>
    %93 = arith.addf %92, %91 : vector<2x128xf32>
    %94 = arith.divf %92, %93 : vector<2x128xf32>
    %95 = arith.select %89, %94, %83 : vector<2x128xi1>, vector<2x128xf32>
    %c0_62 = arith.constant 0 : index
    %c0_63 = arith.constant 0 : index
    %96 = vector.load %arg24[%c0_62, %c0_63] : memref<2x128xf32, #tpu.memory_space<vmem>>, vector<2x128xf32>
    tpu.vector_store %arg24[%c0_62, %c0_63], %95 {strides = array<i32>} : memref<2x128xf32, #tpu.memory_space<vmem>>, vector<2x128xf32>,
    return
  }
  func.func @transform_0(%arg0: i32) -> (i32, i32) {
    %c0_i32 = arith.constant 0 : i32
    %c0_i32_0 = arith.constant 0 : i32
    return %arg0, %c0_i32 : i32, i32
  }
  func.func @transform_1(%arg0: i32) -> (i32, i32) {
    %c0_i32 = arith.constant 0 : i32
    %c0_i32_0 = arith.constant 0 : i32
    return %arg0, %c0_i32 : i32, i32
  }
  func.func @transform_2(%arg0: i32) -> (i32, i32) {
    %c0_i32 = arith.constant 0 : i32
    %c0_i32_0 = arith.constant 0 : i32
    %c0_i32_1 = arith.constant 0 : i32
    return %c0_i32, %c0_i32_0 : i32, i32
  }
  func.func @transform_3(%arg0: i32) -> (i32, i32) {
    %c0_i32 = arith.constant 0 : i32
    %c0_i32_0 = arith.constant 0 : i32
    %c0_i32_1 = arith.constant 0 : i32
    return %c0_i32, %c0_i32_0 : i32, i32
  }
  func.func @transform_4(%arg0: i32) -> (i32, i32) {
    %c0_i32 = arith.constant 0 : i32
    %c0_i32_0 = arith.constant 0 : i32
    %c0_i32_1 = arith.constant 0 : i32
    return %c0_i32, %c0_i32_0 : i32, i32
  }
  func.func @transform_5(%arg0: i32) -> (i32, i32) {
    %c0_i32 = arith.constant 0 : i32
    %c0_i32_0 = arith.constant 0 : i32
    %c0_i32_1 = arith.constant 0 : i32
    return %c0_i32, %c0_i32_0 : i32, i32
  }
  func.func @transform_6(%arg0: i32) -> (i32, i32) {
    %c0_i32 = arith.constant 0 : i32
    %c0_i32_0 = arith.constant 0 : i32
    %c0_i32_1 = arith.constant 0 : i32
    return %c0_i32, %c0_i32_0 : i32, i32
  }
  func.func @transform_7(%arg0: i32) -> (i32, i32) {
    %c0_i32 = arith.constant 0 : i32
    %c0_i32_0 = arith.constant 0 : i32
    %c0_i32_1 = arith.constant 0 : i32
    return %c0_i32, %c0_i32_0 : i32, i32
  }
  func.func @transform_8(%arg0: i32) -> (i32, i32) {
    %c0_i32 = arith.constant 0 : i32
    %c0_i32_0 = arith.constant 0 : i32
    %c0_i32_1 = arith.constant 0 : i32
    return %c0_i32, %c0_i32_0 : i32, i32
  }
  func.func @transform_9(%arg0: i32) -> (i32, i32) {
    %c0_i32 = arith.constant 0 : i32
    %c0_i32_0 = arith.constant 0 : i32
    %c0_i32_1 = arith.constant 0 : i32
    return %c0_i32, %c0_i32_0 : i32, i32
  }
  func.func @transform_10(%arg0: i32) -> (i32, i32) {
    %c0_i32 = arith.constant 0 : i32
    %c0_i32_0 = arith.constant 0 : i32
    %c0_i32_1 = arith.constant 0 : i32
    return %c0_i32, %c0_i32_0 : i32, i32
  }
  func.func @transform_11(%arg0: i32) -> (i32, i32) {
    %c0_i32 = arith.constant 0 : i32
    %c0_i32_0 = arith.constant 0 : i32
    %c0_i32_1 = arith.constant 0 : i32
    return %c0_i32, %c0_i32_0 : i32, i32
  }
  func.func @transform_12(%arg0: i32) -> (i32, i32) {
    %c0_i32 = arith.constant 0 : i32
    %c0_i32_0 = arith.constant 0 : i32
    %c0_i32_1 = arith.constant 0 : i32
    return %c0_i32, %c0_i32_0 : i32, i32
  }
  func.func @transform_13(%arg0: i32) -> (i32, i32) {
    %c0_i32 = arith.constant 0 : i32
    %c0_i32_0 = arith.constant 0 : i32
    %c0_i32_1 = arith.constant 0 : i32
    return %c0_i32, %c0_i32_0 : i32, i32
  }
  func.func @transform_14(%arg0: i32) -> (i32, i32) {
    %c0_i32 = arith.constant 0 : i32
    %c0_i32_0 = arith.constant 0 : i32
    %c0_i32_1 = arith.constant 0 : i32
    return %c0_i32, %c0_i32_0 : i32, i32
  }
  func.func @transform_15(%arg0: i32) -> (i32, i32) {
    %c0_i32 = arith.constant 0 : i32
    %c0_i32_0 = arith.constant 0 : i32
    %c0_i32_1 = arith.constant 0 : i32
    return %c0_i32, %c0_i32_0 : i32, i32
  }
  func.func @transform_16(%arg0: i32) -> (i32, i32) {
    %c0_i32 = arith.constant 0 : i32
    %c0_i32_0 = arith.constant 0 : i32
    %c0_i32_1 = arith.constant 0 : i32
    return %c0_i32, %c0_i32_0 : i32, i32
  }
  func.func @transform_17(%arg0: i32) -> (i32, i32) {
    %c0_i32 = arith.constant 0 : i32
    %c0_i32_0 = arith.constant 0 : i32
    %c0_i32_1 = arith.constant 0 : i32
    return %c0_i32, %c0_i32_0 : i32, i32
  }
  func.func @transform_18(%arg0: i32) -> (i32, i32) {
    %c0_i32 = arith.constant 0 : i32
    %c0_i32_0 = arith.constant 0 : i32
    %c0_i32_1 = arith.constant 0 : i32
    return %c0_i32, %c0_i32_0 : i32, i32
  }
  func.func @transform_19(%arg0: i32) -> (i32, i32) {
    %c0_i32 = arith.constant 0 : i32
    %c0_i32_0 = arith.constant 0 : i32
    %c0_i32_1 = arith.constant 0 : i32
    return %c0_i32, %c0_i32_0 : i32, i32
  }
  func.func @transform_20(%arg0: i32) -> (i32, i32) {
    %c0_i32 = arith.constant 0 : i32
    %c0_i32_0 = arith.constant 0 : i32
    %c0_i32_1 = arith.constant 0 : i32
    return %c0_i32, %c0_i32_0 : i32, i32
  }
  func.func @transform_21(%arg0: i32) -> (i32, i32) {
    %c0_i32 = arith.constant 0 : i32
    %c0_i32_0 = arith.constant 0 : i32
    %c0_i32_1 = arith.constant 0 : i32
    return %c0_i32, %c0_i32_0 : i32, i32
  }
  func.func @transform_22(%arg0: i32) -> (i32, i32) {
    %c0_i32 = arith.constant 0 : i32
    %c0_i32_0 = arith.constant 0 : i32
    %c0_i32_1 = arith.constant 0 : i32
    return %c0_i32, %c0_i32_0 : i32, i32
  }
  func.func @transform_23(%arg0: i32) -> (i32, i32) {
    %c0_i32 = arith.constant 0 : i32
    %c0_i32_0 = arith.constant 0 : i32
    return %arg0, %c0_i32 : i32, i32
  }
}

</mosaic_0001>

<llo_original>
// kernel: tpu_custom_call.1
$region0: #{tpu_custom_call.1}
  #allocation0 [shape = 'u32[]', space=smem, size = 0x4, offset = 0x4, fixed_abs, tag = 'smem constant byte address 0x4 - core index']
  #allocation1 [shape = 'u32[144,128]{1,0:T(1,128)}', space=vmem, size = 0x12000, scoped, tag = 'internal scratch']
  %s0 = inlined_call_operand.hbm [shape: f32[2,3], index: 0, kind: input, shape index: {}]
  %s1 = inlined_call_operand.hbm [shape: f32[2,5], index: 1, kind: input, shape index: {}]
  %s2 = inlined_call_operand.hbm [shape: bf16[3,512], index: 2, kind: input, shape index: {}]
  %s3 = inlined_call_operand.hbm [shape: f32[1,512], index: 3, kind: input, shape index: {}]
  %s4 = inlined_call_operand.hbm [shape: s8[512,1024], index: 4, kind: input, shape index: {}]
  %s5 = inlined_call_operand.vmem [shape: f32[1,1024], index: 5, kind: input, shape index: {}]
  %s6 = inlined_call_operand.vmem [shape: f32[1,1024], index: 6, kind: input, shape index: {}]
  %s7 = inlined_call_operand.hbm [shape: s8[1024,1024], index: 7, kind: input, shape index: {}]
  %s8 = inlined_call_operand.hbm [shape: f32[1,1024], index: 8, kind: input, shape index: {}]
  %s9 = inlined_call_operand.hbm [shape: f32[1,1024], index: 9, kind: input, shape index: {}]
  %s10 = inlined_call_operand.hbm [shape: bf16[1024,128], index: 10, kind: input, shape index: {}]
  %s11 = inlined_call_operand.hbm [shape: f32[1,128], index: 11, kind: input, shape index: {}]
  %s12 = inlined_call_operand.vmem [shape: bf16[5,64], index: 12, kind: input, shape index: {}]
  %s13 = inlined_call_operand.hbm [shape: f32[1,64], index: 13, kind: input, shape index: {}]
  %s14 = inlined_call_operand.vmem [shape: bf16[64,128], index: 14, kind: input, shape index: {}]
  %s15 = inlined_call_operand.hbm [shape: f32[1,128], index: 15, kind: input, shape index: {}]
  %s16 = inlined_call_operand.hbm [shape: bf16[128,512], index: 16, kind: input, shape index: {}]
  %s17 = inlined_call_operand.hbm [shape: bf16[128,512], index: 17, kind: input, shape index: {}]
  %s18 = inlined_call_operand.vmem [shape: f32[1,512], index: 18, kind: input, shape index: {}]
  %s19 = inlined_call_operand.hbm [shape: bf16[512,256], index: 19, kind: input, shape index: {}]
  %s20 = inlined_call_operand.vmem [shape: f32[1,256], index: 20, kind: input, shape index: {}]
  %s21 = inlined_call_operand.hbm [shape: bf16[256,128], index: 21, kind: input, shape index: {}]
  %s22 = inlined_call_operand.vmem [shape: f32[1,128], index: 22, kind: input, shape index: {}]
  %s23 = inlined_call_operand.hbm [shape: f32[2,128], index: 23, kind: output, shape index: {}]
  %s24 = sld [smem:[#allocation0]]
  $region166: #{tpu_custom_call.1} parent=0
    _
  %s26 = ssub.s32 1, %s24
  %s27 = scalar_select 0, %s26, %s24
  $region1: #{tpu_custom_call.1} parent=0
    #allocation2 [shape = 'u8[1024]{0}', space=vmem, size = 0x400, scoped, tag = 'input window, operand 0, single buffered']
    #allocation3 [shape = 's32[1]{0}', space=sflag, size = 0x4, scoped, tag = 'scoped memory for tpu_custom_call.1']
    #allocation4 [shape = 's32[1]{0}', space=sflag, size = 0x4, scoped, tag = 'scoped memory for tpu_custom_call.1']
    #allocation5 [shape = 'u8[1024]{0}', space=vmem, size = 0x400, scoped, tag = 'input window, operand 1, single buffered']
    #allocation6 [shape = 's32[1]{0}', space=sflag, size = 0x4, scoped, tag = 'scoped memory for tpu_custom_call.1']
    #allocation7 [shape = 'u8[4096]{0}', space=vmem, size = 0x1000, scoped, tag = 'input window, operand 2, single buffered']
    #allocation8 [shape = 'u8[2048]{0}', space=vmem, size = 0x800, scoped, tag = 'input window, operand 3, single buffered']
    #allocation9 [shape = 's32[1]{0}', space=sflag, size = 0x4, scoped, tag = 'scoped memory for tpu_custom_call.1']
    #allocation10 [shape = 'u8[524288]{0}', space=vmem, size = 0x80000, scoped, tag = 'input window, operand 4, single buffered']
    #allocation11 [shape = 'u8[1048576]{0}', space=vmem, size = 0x100000, scoped, tag = 'input window, operand 7, single buffered']
    #allocation12 [shape = 's32[1]{0}', space=sflag, size = 0x4, scoped, tag = 'scoped memory for tpu_custom_call.1']
    #allocation13 [shape = 'u8[4096]{0}', space=vmem, size = 0x1000, scoped, tag = 'input window, operand 8, single buffered']
    #allocation14 [shape = 'u8[4096]{0}', space=vmem, size = 0x1000, scoped, tag = 'input window, operand 9, single buffered']
    #allocation15 [shape = 's32[1]{0}', space=sflag, size = 0x4, scoped, tag = 'scoped memory for tpu_custom_call.1']
    #allocation16 [shape = 'u8[262144]{0}', space=vmem, size = 0x40000, scoped, tag = 'input window, operand 10, single buffered']
    #allocation17 [shape = 'u8[512]{0}', space=vmem, size = 0x400, scoped, tag = 'input window, operand 11, single buffered']
    #allocation18 [shape = 's32[1]{0}', space=sflag, size = 0x4, scoped, tag = 'scoped memory for tpu_custom_call.1']
    #allocation19 [shape = 'u8[512]{0}', space=vmem, size = 0x400, scoped, tag = 'input window, operand 13, single buffered']
    #allocation20 [shape = 'u8[512]{0}', space=vmem, size = 0x400, scoped, tag = 'input window, operand 15, single buffered']
    #allocation21 [shape = 's32[1]{0}', space=sflag, size = 0x4, scoped, tag = 'scoped memory for tpu_custom_call.1']
    #allocation22 [shape = 'u8[131072]{0}', space=vmem, size = 0x20000, scoped, tag = 'input window, operand 16, single buffered']
    #allocation23 [shape = 'u8[131072]{0}', space=vmem, size = 0x20000, scoped, tag = 'input window, operand 17, single buffered']
    #allocation24 [shape = 's32[1]{0}', space=sflag, size = 0x4, scoped, tag = 'scoped memory for tpu_custom_call.1']
    #allocation25 [shape = 'u8[262144]{0}', space=vmem, size = 0x40000, scoped, tag = 'input window, operand 19, single buffered']
    #allocation26 [shape = 'u8[65536]{0}', space=vmem, size = 0x10000, scoped, tag = 'input window, operand 21, single buffered']
    #allocation27 [shape = 's32[1]{0}', space=sflag, size = 0x4, scoped, tag = 'scoped memory for tpu_custom_call.1']
    #allocation28 [shape = 'u8[1024]{0}', space=vmem, size = 0x400, scoped, tag = 'output window, operand 0, single buffered']
    %28 = vsyncpa [#allocation3], 0
    %29 = vsyncpa [#allocation6], 0
    %30 = vsyncpa [#allocation9], 0
    %31 = vsyncpa [#allocation12], 0
    %32 = vsyncpa [#allocation15], 0
    %33 = vsyncpa [#allocation18], 0
    %34 = vsyncpa [#allocation21], 0
    %35 = vsyncpa [#allocation24], 0
    %36 = vsyncpa [#allocation27], 0
    %37 = vsyncpa [#allocation4], 0
    // Predicated region
    $region2: #{tpu_custom_call.1} parent=1 // pred_check
      _
    $region3: #{tpu_custom_call.1} parent=1 // pred_check_branch
      %39 = sbr.rel (0) target = $region5
    $region4: #{tpu_custom_call.1} parent=1 // pred_region
      %s41 = ssub.s32 32, 32
      %42 = vsyncadd [#allocation3], %s41
      %s44 = sshll.u32 [#allocation2], 4
      %s45 = int_to_ptr.vmem [resolvable:$true] %s44
      %47 = dma.hbm_to_vmem [thread:$0]  %s0, 32, %s45, [#allocation3]
    $region5: #{tpu_custom_call.1} parent=1 // pred_fallthru
      _
    // Predicated region
    $region6: #{tpu_custom_call.1} parent=1 // pred_check
      _
    $region7: #{tpu_custom_call.1} parent=1 // pred_check_branch
      %49 = sbr.rel (0) target = $region9
    $region8: #{tpu_custom_call.1} parent=1 // pred_region
      %s51 = ssub.s32 32, 32
      %52 = vsyncadd [#allocation6], %s51
      %s54 = sshll.u32 [#allocation5], 4
      %s55 = int_to_ptr.vmem [resolvable:$true] %s54
      %57 = dma.hbm_to_vmem [thread:$0]  %s1, 32, %s55, [#allocation6]
    $region9: #{tpu_custom_call.1} parent=1 // pred_fallthru
      _
    // Predicated region
    $region10: #{tpu_custom_call.1} parent=1 // pred_check
      _
    $region11: #{tpu_custom_call.1} parent=1 // pred_check_branch
      %59 = sbr.rel (0) target = $region13
    $region12: #{tpu_custom_call.1} parent=1 // pred_region
      %s61 = ssub.s32 128, 128
      %62 = vsyncadd [#allocation6], %s61
      %s64 = sshll.u32 [#allocation7], 4
      %s65 = int_to_ptr.vmem [resolvable:$true] %s64
      %67 = dma.hbm_to_vmem [thread:$0]  %s2, 128, %s65, [#allocation6]
    $region13: #{tpu_custom_call.1} parent=1 // pred_fallthru
      _
    // Predicated region
    $region14: #{tpu_custom_call.1} parent=1 // pred_check
      _
    $region15: #{tpu_custom_call.1} parent=1 // pred_check_branch
      %69 = sbr.rel (0) target = $region17
    $region16: #{tpu_custom_call.1} parent=1 // pred_region
      %s71 = ssub.s32 64, 64
      %72 = vsyncadd [#allocation9], %s71
      %s74 = sshll.u32 [#allocation8], 4
      %s75 = int_to_ptr.vmem [resolvable:$true] %s74
      %77 = dma.hbm_to_vmem [thread:$0]  %s3, 64, %s75, [#allocation9]
    $region17: #{tpu_custom_call.1} parent=1 // pred_fallthru
      _
    // Predicated region
    $region18: #{tpu_custom_call.1} parent=1 // pred_check
      _
    $region19: #{tpu_custom_call.1} parent=1 // pred_check_branch
      %79 = sbr.rel (0) target = $region21
    $region20: #{tpu_custom_call.1} parent=1 // pred_region
      %s81 = ssub.s32 16384, 16384
      %82 = vsyncadd [#allocation9], %s81
      %s83 = sshll.u32 [#allocation10], 4
      %s84 = int_to_ptr.vmem [resolvable:$true] %s83
      %89 = dma.hbm_to_vmem [thread:$0]  %s4, 16384, %s84, [#allocation9], 1024, 1024, 64
    $region21: #{tpu_custom_call.1} parent=1 // pred_fallthru
      _
    // Predicated region
    $region22: #{tpu_custom_call.1} parent=1 // pred_check
      _
    $region23: #{tpu_custom_call.1} parent=1 // pred_check_branch
      %91 = sbr.rel (0) target = $region25
    $region24: #{tpu_custom_call.1} parent=1 // pred_region
      _
    $region25: #{tpu_custom_call.1} parent=1 // pred_fallthru
      _
    // Predicated region
    $region26: #{tpu_custom_call.1} parent=1 // pred_check
      _
    $region27: #{tpu_custom_call.1} parent=1 // pred_check_branch
      %93 = sbr.rel (0) target = $region29
    $region28: #{tpu_custom_call.1} parent=1 // pred_region
      _
    $region29: #{tpu_custom_call.1} parent=1 // pred_fallthru
      _
    // Predicated region
    $region30: #{tpu_custom_call.1} parent=1 // pred_check
      _
    $region31: #{tpu_custom_call.1} parent=1 // pred_check_branch
      %95 = sbr.rel (0) target = $region33
    $region32: #{tpu_custom_call.1} parent=1 // pred_region
      %s97 = ssub.s32 32768, 32768
      %98 = vsyncadd [#allocation12], %s97
      %s99 = sshll.u32 [#allocation11], 4
      %s100 = int_to_ptr.vmem [resolvable:$true] %s99
      %105 = dma.hbm_to_vmem [thread:$0]  %s7, 32768, %s100, [#allocation12], 1024, 1024, 64
    $region33: #{tpu_custom_call.1} parent=1 // pred_fallthru
      _
    // Predicated region
    $region34: #{tpu_custom_call.1} parent=1 // pred_check
      _
    $region35: #{tpu_custom_call.1} parent=1 // pred_check_branch
      %107 = sbr.rel (0) target = $region37
    $region36: #{tpu_custom_call.1} parent=1 // pred_region
      %s109 = ssub.s32 128, 128
      %110 = vsyncadd [#allocation12], %s109
      %s112 = sshll.u32 [#allocation13], 4
      %s113 = int_to_ptr.vmem [resolvable:$true] %s112
      %115 = dma.hbm_to_vmem [thread:$0]  %s8, 128, %s113, [#allocation12]
    $region37: #{tpu_custom_call.1} parent=1 // pred_fallthru
      _
    // Predicated region
    $region38: #{tpu_custom_call.1} parent=1 // pred_check
      _
    $region39: #{tpu_custom_call.1} parent=1 // pred_check_branch
      %117 = sbr.rel (0) target = $region41
    $region40: #{tpu_custom_call.1} parent=1 // pred_region
      %s119 = ssub.s32 128, 128
      %120 = vsyncadd [#allocation15], %s119
      %s122 = sshll.u32 [#allocation14], 4
      %s123 = int_to_ptr.vmem [resolvable:$true] %s122
      %125 = dma.hbm_to_vmem [thread:$0]  %s9, 128, %s123, [#allocation15]
    $region41: #{tpu_custom_call.1} parent=1 // pred_fallthru
      _
    // Predicated region
    $region42: #{tpu_custom_call.1} parent=1 // pred_check
      _
    $region43: #{tpu_custom_call.1} parent=1 // pred_check_branch
      %127 = sbr.rel (0) target = $region45
    $region44: #{tpu_custom_call.1} parent=1 // pred_region
      %s129 = ssub.s32 8192, 8192
      %130 = vsyncadd [#allocation15], %s129
      %s131 = sshll.u32 [#allocation16], 4
      %s132 = int_to_ptr.vmem [resolvable:$true] %s131
      %137 = dma.hbm_to_vmem [thread:$0]  %s10, 8192, %s132, [#allocation15], 64, 64, 4
    $region45: #{tpu_custom_call.1} parent=1 // pred_fallthru
      _
    // Predicated region
    $region46: #{tpu_custom_call.1} parent=1 // pred_check
      _
    $region47: #{tpu_custom_call.1} parent=1 // pred_check_branch
      %139 = sbr.rel (0) target = $region49
    $region48: #{tpu_custom_call.1} parent=1 // pred_region
      %s141 = ssub.s32 16, 16
      %142 = vsyncadd [#allocation18], %s141
      %s144 = sshll.u32 [#allocation17], 4
      %s145 = int_to_ptr.vmem [resolvable:$true] %s144
      %147 = dma.hbm_to_vmem [thread:$0]  %s11, 16, %s145, [#allocation18]
    $region49: #{tpu_custom_call.1} parent=1 // pred_fallthru
      _
    // Predicated region
    $region50: #{tpu_custom_call.1} parent=1 // pred_check
      _
    $region51: #{tpu_custom_call.1} parent=1 // pred_check_branch
      %149 = sbr.rel (0) target = $region53
    $region52: #{tpu_custom_call.1} parent=1 // pred_region
      _
    $region53: #{tpu_custom_call.1} parent=1 // pred_fallthru
      _
    // Predicated region
    $region54: #{tpu_custom_call.1} parent=1 // pred_check
      _
    $region55: #{tpu_custom_call.1} parent=1 // pred_check_branch
      %151 = sbr.rel (0) target = $region57
    $region56: #{tpu_custom_call.1} parent=1 // pred_region
      %s153 = ssub.s32 16, 16
      %154 = vsyncadd [#allocation18], %s153
      %s156 = sshll.u32 [#allocation19], 4
      %s157 = int_to_ptr.vmem [resolvable:$true] %s156
      %159 = dma.hbm_to_vmem [thread:$0]  %s13, 16, %s157, [#allocation18]
    $region57: #{tpu_custom_call.1} parent=1 // pred_fallthru
      _
    // Predicated region
    $region58: #{tpu_custom_call.1} parent=1 // pred_check
      _
    $region59: #{tpu_custom_call.1} parent=1 // pred_check_branch
      %161 = sbr.rel (0) target = $region61
    $region60: #{tpu_custom_call.1} parent=1 // pred_region
      _
    $region61: #{tpu_custom_call.1} parent=1 // pred_fallthru
      _
    // Predicated region
    $region62: #{tpu_custom_call.1} parent=1 // pred_check
      _
    $region63: #{tpu_custom_call.1} parent=1 // pred_check_branch
      %163 = sbr.rel (0) target = $region65
    $region64: #{tpu_custom_call.1} parent=1 // pred_region
      %s165 = ssub.s32 16, 16
      %166 = vsyncadd [#allocation21], %s165
      %s168 = sshll.u32 [#allocation20], 4
      %s169 = int_to_ptr.vmem [resolvable:$true] %s168
      %171 = dma.hbm_to_vmem [thread:$0]  %s15, 16, %s169, [#allocation21]
    $region65: #{tpu_custom_call.1} parent=1 // pred_fallthru
      _
    // Predicated region
    $region66: #{tpu_custom_call.1} parent=1 // pred_check
      _
    $region67: #{tpu_custom_call.1} parent=1 // pred_check_branch
      %173 = sbr.rel (0) target = $region69
    $region68: #{tpu_custom_call.1} parent=1 // pred_region
      %s175 = ssub.s32 4096, 4096
      %176 = vsyncadd [#allocation21], %s175
      %s177 = sshll.u32 [#allocation22], 4
      %s178 = int_to_ptr.vmem [resolvable:$true] %s177
      %183 = dma.hbm_to_vmem [thread:$0]  %s16, 4096, %s178, [#allocation21], 256, 256, 16
    $region69: #{tpu_custom_call.1} parent=1 // pred_fallthru
      _
    // Predicated region
    $region70: #{tpu_custom_call.1} parent=1 // pred_check
      _
    $region71: #{tpu_custom_call.1} parent=1 // pred_check_branch
      %185 = sbr.rel (0) target = $region73
    $region72: #{tpu_custom_call.1} parent=1 // pred_region
      %s187 = ssub.s32 4096, 4096
      %188 = vsyncadd [#allocation24], %s187
      %s189 = sshll.u32 [#allocation23], 4
      %s190 = int_to_ptr.vmem [resolvable:$true] %s189
      %195 = dma.hbm_to_vmem [thread:$0]  %s17, 4096, %s190, [#allocation24], 256, 256, 16
    $region73: #{tpu_custom_call.1} parent=1 // pred_fallthru
      _
    // Predicated region
    $region74: #{tpu_custom_call.1} parent=1 // pred_check
      _
    $region75: #{tpu_custom_call.1} parent=1 // pred_check_branch
      %197 = sbr.rel (0) target = $region77
    $region76: #{tpu_custom_call.1} parent=1 // pred_region
      _
    $region77: #{tpu_custom_call.1} parent=1 // pred_fallthru
      _
    // Predicated region
    $region78: #{tpu_custom_call.1} parent=1 // pred_check
      _
    $region79: #{tpu_custom_call.1} parent=1 // pred_check_branch
      %199 = sbr.rel (0) target = $region81
    $region80: #{tpu_custom_call.1} parent=1 // pred_region
      %s201 = ssub.s32 8192, 8192
      %202 = vsyncadd [#allocation24], %s201
      %s203 = sshll.u32 [#allocation25], 4
      %s204 = int_to_ptr.vmem [resolvable:$true] %s203
      %209 = dma.hbm_to_vmem [thread:$0]  %s19, 8192, %s204, [#allocation24], 128, 128, 8
    $region81: #{tpu_custom_call.1} parent=1 // pred_fallthru
      _
    // Predicated region
    $region82: #{tpu_custom_call.1} parent=1 // pred_check
      _
    $region83: #{tpu_custom_call.1} parent=1 // pred_check_branch
      %211 = sbr.rel (0) target = $region85
    $region84: #{tpu_custom_call.1} parent=1 // pred_region
      _
    $region85: #{tpu_custom_call.1} parent=1 // pred_fallthru
      _
    // Predicated region
    $region86: #{tpu_custom_call.1} parent=1 // pred_check
      _
    $region87: #{tpu_custom_call.1} parent=1 // pred_check_branch
      %213 = sbr.rel (0) target = $region89
    $region88: #{tpu_custom_call.1} parent=1 // pred_region
      %s215 = ssub.s32 2048, 2048
      %216 = vsyncadd [#allocation27], %s215
      %s217 = sshll.u32 [#allocation26], 4
      %s218 = int_to_ptr.vmem [resolvable:$true] %s217
      %223 = dma.hbm_to_vmem [thread:$0]  %s21, 2048, %s218, [#allocation27], 64, 64, 4
    $region89: #{tpu_custom_call.1} parent=1 // pred_fallthru
      _
    // Predicated region
    $region90: #{tpu_custom_call.1} parent=1 // pred_check
      _
    $region91: #{tpu_custom_call.1} parent=1 // pred_check_branch
      %225 = sbr.rel (0) target = $region93
    $region92: #{tpu_custom_call.1} parent=1 // pred_region
      _
    $region93: #{tpu_custom_call.1} parent=1 // pred_fallthru
      _
    // Predicated region
    $region94: #{tpu_custom_call.1} parent=1 // pred_check
      _
    $region95: #{tpu_custom_call.1} parent=1 // pred_check_branch
      %227 = sbr.rel (0) target = $region97
    $region96: #{tpu_custom_call.1} parent=1 // pred_region
      %228 = dma.done [#allocation3], 32
    $region97: #{tpu_custom_call.1} parent=1 // pred_fallthru
      _
    // Predicated region
    $region98: #{tpu_custom_call.1} parent=1 // pred_check
      _
    $region99: #{tpu_custom_call.1} parent=1 // pred_check_branch
      %230 = sbr.rel (0) target = $region101
    $region100: #{tpu_custom_call.1} parent=1 // pred_region
      %231 = dma.done [#allocation6], 32
    $region101: #{tpu_custom_call.1} parent=1 // pred_fallthru
      _
    // Predicated region
    $region102: #{tpu_custom_call.1} parent=1 // pred_check
      _
    $region103: #{tpu_custom_call.1} parent=1 // pred_check_branch
      %233 = sbr.rel (0) target = $region105
    $region104: #{tpu_custom_call.1} parent=1 // pred_region
      %234 = dma.done [#allocation6], 128
    $region105: #{tpu_custom_call.1} parent=1 // pred_fallthru
      _
    // Predicated region
    $region106: #{tpu_custom_call.1} parent=1 // pred_check
      _
    $region107: #{tpu_custom_call.1} parent=1 // pred_check_branch
      %236 = sbr.rel (0) target = $region109
    $region108: #{tpu_custom_call.1} parent=1 // pred_region
      %237 = dma.done [#allocation9], 64
    $region109: #{tpu_custom_call.1} parent=1 // pred_fallthru
      _
    // Predicated region
    $region110: #{tpu_custom_call.1} parent=1 // pred_check
      _
    $region111: #{tpu_custom_call.1} parent=1 // pred_check_branch
      %239 = sbr.rel (0) target = $region113
    $region112: #{tpu_custom_call.1} parent=1 // pred_region
      %240 = dma.done [#allocation9], 16384
    $region113: #{tpu_custom_call.1} parent=1 // pred_fallthru
      _
    // Predicated region
    $region114: #{tpu_custom_call.1} parent=1 // pred_check
      _
    $region115: #{tpu_custom_call.1} parent=1 // pred_check_branch
      %242 = sbr.rel (0) target = $region117
    $region116: #{tpu_custom_call.1} parent=1 // pred_region
      %243 = dma.done [#allocation12], 32768
    $region117: #{tpu_custom_call.1} parent=1 // pred_fallthru
      _
    // Predicated region
    $region118: #{tpu_custom_call.1} parent=1 // pred_check
      _
    $region119: #{tpu_custom_call.1} parent=1 // pred_check_branch
      %245 = sbr.rel (0) target = $region121
    $region120: #{tpu_custom_call.1} parent=1 // pred_region
      %246 = dma.done [#allocation12], 128
    $region121: #{tpu_custom_call.1} parent=1 // pred_fallthru
      _
    // Predicated region
    $region122: #{tpu_custom_call.1} parent=1 // pred_check
      _
    $region123: #{tpu_custom_call.1} parent=1 // pred_check_branch
      %248 = sbr.rel (0) target = $region125
    $region124: #{tpu_custom_call.1} parent=1 // pred_region
      %249 = dma.done [#allocation15], 128
    $region125: #{tpu_custom_call.1} parent=1 // pred_fallthru
      _
    // Predicated region
    $region126: #{tpu_custom_call.1} parent=1 // pred_check
      _
    $region127: #{tpu_custom_call.1} parent=1 // pred_check_branch
      %251 = sbr.rel (0) target = $region129
    $region128: #{tpu_custom_call.1} parent=1 // pred_region
      %252 = dma.done [#allocation15], 8192
    $region129: #{tpu_custom_call.1} parent=1 // pred_fallthru
      _
    // Predicated region
    $region130: #{tpu_custom_call.1} parent=1 // pred_check
      _
    $region131: #{tpu_custom_call.1} parent=1 // pred_check_branch
      %254 = sbr.rel (0) target = $region133
    $region132: #{tpu_custom_call.1} parent=1 // pred_region
      %255 = dma.done [#allocation18], 16
    $region133: #{tpu_custom_call.1} parent=1 // pred_fallthru
      _
    // Predicated region
    $region134: #{tpu_custom_call.1} parent=1 // pred_check
      _
    $region135: #{tpu_custom_call.1} parent=1 // pred_check_branch
      %257 = sbr.rel (0) target = $region137
    $region136: #{tpu_custom_call.1} parent=1 // pred_region
      %258 = dma.done [#allocation18], 16
    $region137: #{tpu_custom_call.1} parent=1 // pred_fallthru
      _
    // Predicated region
    $region138: #{tpu_custom_call.1} parent=1 // pred_check
      _
    $region139: #{tpu_custom_call.1} parent=1 // pred_check_branch
      %260 = sbr.rel (0) target = $region141
    $region140: #{tpu_custom_call.1} parent=1 // pred_region
      %261 = dma.done [#allocation21], 16
    $region141: #{tpu_custom_call.1} parent=1 // pred_fallthru
      _
    // Predicated region
    $region142: #{tpu_custom_call.1} parent=1 // pred_check
      _
    $region143: #{tpu_custom_call.1} parent=1 // pred_check_branch
      %263 = sbr.rel (0) target = $region145
    $region144: #{tpu_custom_call.1} parent=1 // pred_region
      %264 = dma.done [#allocation21], 4096
    $region145: #{tpu_custom_call.1} parent=1 // pred_fallthru
      _
    // Predicated region
    $region146: #{tpu_custom_call.1} parent=1 // pred_check
      _
    $region147: #{tpu_custom_call.1} parent=1 // pred_check_branch
      %266 = sbr.rel (0) target = $region149
    $region148: #{tpu_custom_call.1} parent=1 // pred_region
      %267 = dma.done [#allocation24], 4096
    $region149: #{tpu_custom_call.1} parent=1 // pred_fallthru
      _
    // Predicated region
    $region150: #{tpu_custom_call.1} parent=1 // pred_check
      _
    $region151: #{tpu_custom_call.1} parent=1 // pred_check_branch
      %269 = sbr.rel (0) target = $region153
    $region152: #{tpu_custom_call.1} parent=1 // pred_region
      %270 = dma.done [#allocation24], 8192
    $region153: #{tpu_custom_call.1} parent=1 // pred_fallthru
      _
    // Predicated region
    $region154: #{tpu_custom_call.1} parent=1 // pred_check
      _
    $region155: #{tpu_custom_call.1} parent=1 // pred_check_branch
      %272 = sbr.rel (0) target = $region157
    $region156: #{tpu_custom_call.1} parent=1 // pred_region
      %273 = dma.done [#allocation27], 2048
    $region157: #{tpu_custom_call.1} parent=1 // pred_fallthru
      _
    %v275 = vld [vmem:[#allocation2] sm:$0x3]
    %v276 = vpack.c.bf16 %v275, %v275
    %v277 = vld [vmem:[#allocation7] sm:$0xff]
    %v278 = vld [vmem:[#allocation8] sm:$0xf]
    %v280 = vlaneseq
    %v281 = vshrl.u32 %v280, 7
    %v282 = vsub.s32 0, %v281
    %v283 = vrot.slane %v278, %v282
    %v284 = vlaneseq
    %v285 = vshrl.u32 %v284, 7
    %v286 = vsub.s32 1, %v285
    %v287 = vrot.slane %v278, %v286
    %v288 = vlaneseq
    %v289 = vshrl.u32 %v288, 7
    %v290 = vsub.s32 2, %v289
    %v291 = vrot.slane %v278, %v290
    %v292 = vlaneseq
    %v293 = vshrl.u32 %v292, 7
    %v294 = vsub.s32 3, %v293
    %v295 = vrot.slane %v278, %v294
    %v301 = vcombine.high %v277, %v277
    %v303 = vunpack.c.l.s4 1983009808
    %v304 = vunpack.c.0.s8 %v303
    %v305 = vlaneseq
    %v306 = vshrl.u32 %v305, 7
    %v307 = vsub.s32 %v304, %v306
    %v308 = vrot.slane %v277, %v307
    %v310 = vunpack.c.l.s4 1983009808
    %v311 = vunpack.c.0.s8 %v310
    %v312 = vlaneseq
    %v313 = vshrl.u32 %v312, 7
    %v314 = vsub.s32 %v311, %v313
    %v315 = vrot.slane %v301, %v314
    %v316 = vcombine.high %v308, %v308
    %v317 = vcombine.high %v315, %v315
    %vm318 = vcmask 23552
    %v320 = vsel %vm318, %v276, 0
    %vm322 = vcmask 1040384
    %vm323 = vcmask 1041408
    %v324 = vsel %vm322, 4294967295, 65535
    %v325 = vsel %vm323, %v324, 0
    %v327 = vand.u32 %v308, %v325
    %v330 = vand.u32 %v316, %v325
    %v333 = vand.u32 %v315, %v325
    %v336 = vand.u32 %v317, %v325
    %338 = vmatprep.subr.bf16.mxu0 %v330
    %339 = vmatpush1.bf16.msra.mxu0 %v327
    %340 = vmatprep.subr.bf16.mxu0 0
    %341 = vmatpush1.bf16.msra.mxu0 0
    %342 = vmatprep.subr.bf16.mxu0 0
    %343 = vmatpush1.bf16.msra.mxu0 0
    %344 = vmatprep.subr.bf16.mxu0 0
    %345 = vmatpush1.bf16.msra.mxu0 0
    %346 = vmatprep.subr.bf16.mxu0 0
    %347 = vmatpush1.bf16.msra.mxu0 0
    %348 = vmatprep.subr.bf16.mxu0 0
    %349 = vmatpush1.bf16.msra.mxu0 0
    %350 = vmatprep.subr.bf16.mxu0 0
    %351 = vmatpush1.bf16.msra.mxu0 0
    %352 = vmatprep.subr.bf16.mxu0 0
    %353 = vmatpush1.bf16.msra.mxu0 0
    %354 = vmatprep.subr.bf16.mxu0 0
    %355 = vmatpush1.bf16.msra.mxu0 0
    %356 = vmatprep.subr.bf16.mxu0 0
    %357 = vmatpush1.bf16.msra.mxu0 0
    %358 = vmatprep.subr.bf16.mxu0 0
    %359 = vmatpush1.bf16.msra.mxu0 0
    %360 = vmatprep.subr.bf16.mxu0 0
    %361 = vmatpush1.bf16.msra.mxu0 0
    %362 = vmatprep.subr.bf16.mxu0 0
    %363 = vmatpush1.bf16.msra.mxu0 0
    %364 = vmatprep.subr.bf16.mxu0 0
    %365 = vmatpush1.bf16.msra.mxu0 0
    %366 = vmatprep.subr.bf16.mxu0 0
    %367 = vmatpush1.bf16.msra.mxu0 0
    %368 = vmatprep.subr.bf16.mxu0 0
    %369 = vmatpush1.bf16.msra.mxu0 0
    %370 = vmatprep.mubr.bf16.mxu0 0
    %371 = vmatmul.mubr.bf16.gmra.mrb[0].mxu0 %v320
    %v372 = vpop.f32.mrb[0].mxu0
    %v373 = vadd.f32 %v283, %v372
    %v374 = vpop.f32.mrb[0].mxu0
    %v375 = vadd.f32 %v287, %v374
    %v376 = vpop.f32.mrb[0].mxu0
    %v377 = vpop.f32.mrb[0].mxu0
    %378 = vdwg.mxu0
    %379 = vmatprep.subr.bf16.mxu0 %v336
    %380 = vmatpush1.bf16.msra.mxu0 %v333
    %381 = vmatprep.subr.bf16.mxu0 0
    %382 = vmatpush1.bf16.msra.mxu0 0
    %383 = vmatprep.subr.bf16.mxu0 0
    %384 = vmatpush1.bf16.msra.mxu0 0
    %385 = vmatprep.subr.bf16.mxu0 0
    %386 = vmatpush1.bf16.msra.mxu0 0
    %387 = vmatprep.subr.bf16.mxu0 0
    %388 = vmatpush1.bf16.msra.mxu0 0
    %389 = vmatprep.subr.bf16.mxu0 0
    %390 = vmatpush1.bf16.msra.mxu0 0
    %391 = vmatprep.subr.bf16.mxu0 0
    %392 = vmatpush1.bf16.msra.mxu0 0
    %393 = vmatprep.subr.bf16.mxu0 0
    %394 = vmatpush1.bf16.msra.mxu0 0
    %395 = vmatprep.subr.bf16.mxu0 0
    %396 = vmatpush1.bf16.msra.mxu0 0
    %397 = vmatprep.subr.bf16.mxu0 0
    %398 = vmatpush1.bf16.msra.mxu0 0
    %399 = vmatprep.subr.bf16.mxu0 0
    %400 = vmatpush1.bf16.msra.mxu0 0
    %401 = vmatprep.subr.bf16.mxu0 0
    %402 = vmatpush1.bf16.msra.mxu0 0
    %403 = vmatprep.subr.bf16.mxu0 0
    %404 = vmatpush1.bf16.msra.mxu0 0
    %405 = vmatprep.subr.bf16.mxu0 0
    %406 = vmatpush1.bf16.msra.mxu0 0
    %407 = vmatprep.subr.bf16.mxu0 0
    %408 = vmatpush1.bf16.msra.mxu0 0
    %409 = vmatprep.subr.bf16.mxu0 0
    %410 = vmatpush1.bf16.msra.mxu0 0
    %411 = vmatprep.mubr.bf16.mxu0 0
    %412 = vmatmul.mubr.bf16.gmra.mrb[0].mxu0 %v320
    %v413 = vpop.f32.mrb[0].mxu0
    %v414 = vadd.f32 %v291, %v413
    %v415 = vpop.f32.mrb[0].mxu0
    %v416 = vadd.f32 %v295, %v415
    %v417 = vpop.f32.mrb[0].mxu0
    %v418 = vpop.f32.mrb[0].mxu0
    %419 = vdwg.mxu0
    %v420 = vld [vmem:[#allocation10] sm:$0xff]
    %v421 = vld [vmem:[#allocation10 + $0x8] sm:$0xff]
    %v422 = vld [vmem:[#allocation10 + $0x10] sm:$0xff]
    %v423 = vld [vmem:[#allocation10 + $0x18] sm:$0xff]
    %v424 = vld [vmem:[#allocation10 + $0x20] sm:$0xff]
    %v425 = vld [vmem:[#allocation10 + $0x28] sm:$0xff]
    %v426 = vld [vmem:[#allocation10 + $0x30] sm:$0xff]
    %v427 = vld [vmem:[#allocation10 + $0x38] sm:$0xff]
    %v428 = vld [vmem:[#allocation10 + $0x40] sm:$0xff]
    %v429 = vld [vmem:[#allocation10 + $0x48] sm:$0xff]
    %v430 = vld [vmem:[#allocation10 + $0x50] sm:$0xff]
    %v431 = vld [vmem:[#allocation10 + $0x58] sm:$0xff]
    %v432 = vld [vmem:[#allocation10 + $0x60] sm:$0xff]
    %v433 = vld [vmem:[#allocation10 + $0x68] sm:$0xff]
    %v434 = vld [vmem:[#allocation10 + $0x70] sm:$0xff]
    %v435 = vld [vmem:[#allocation10 + $0x78] sm:$0xff]
    %v436 = vld [vmem:[#allocation10 + $0x80] sm:$0xff]
    %v437 = vld [vmem:[#allocation10 + $0x88] sm:$0xff]
    %v438 = vld [vmem:[#allocation10 + $0x90] sm:$0xff]
    %v439 = vld [vmem:[#allocation10 + $0x98] sm:$0xff]
    %v440 = vld [vmem:[#allocation10 + $0xa0] sm:$0xff]
    %v441 = vld [vmem:[#allocation10 + $0xa8] sm:$0xff]
    %v442 = vld [vmem:[#allocation10 + $0xb0] sm:$0xff]
    %v443 = vld [vmem:[#allocation10 + $0xb8] sm:$0xff]
    %v444 = vld [vmem:[#allocation10 + $0xc0] sm:$0xff]
    %v445 = vld [vmem:[#allocation10 + $0xc8] sm:$0xff]
    %v446 = vld [vmem:[#allocation10 + $0xd0] sm:$0xff]
    %v447 = vld [vmem:[#allocation10 + $0xd8] sm:$0xff]
    %v448 = vld [vmem:[#allocation10 + $0xe0] sm:$0xff]
    %v449 = vld [vmem:[#allocation10 + $0xe8] sm:$0xff]
    %v450 = vld [vmem:[#allocation10 + $0xf0] sm:$0xff]
    %v451 = vld [vmem:[#allocation10 + $0xf8] sm:$0xff]
    %v452 = vld [vmem:[#allocation10 + $0x100] sm:$0xff]
    %v453 = vld [vmem:[#allocation10 + $0x108] sm:$0xff]
    %v454 = vld [vmem:[#allocation10 + $0x110] sm:$0xff]
    %v455 = vld [vmem:[#allocation10 + $0x118] sm:$0xff]
    %v456 = vld [vmem:[#allocation10 + $0x120] sm:$0xff]
    %v457 = vld [vmem:[#allocation10 + $0x128] sm:$0xff]
    %v458 = vld [vmem:[#allocation10 + $0x130] sm:$0xff]
    %v459 = vld [vmem:[#allocation10 + $0x138] sm:$0xff]
    %v460 = vld [vmem:[#allocation10 + $0x140] sm:$0xff]
    %v461 = vld [vmem:[#allocation10 + $0x148] sm:$0xff]
    %v462 = vld [vmem:[#allocation10 + $0x150] sm:$0xff]
    %v463 = vld [vmem:[#allocation10 + $0x158] sm:$0xff]
    %v464 = vld [vmem:[#allocation10 + $0x160] sm:$0xff]
    %v465 = vld [vmem:[#allocation10 + $0x168] sm:$0xff]
    %v466 = vld [vmem:[#allocation10 + $0x170] sm:$0xff]
    %v467 = vld [vmem:[#allocation10 + $0x178] sm:$0xff]
    %v468 = vld [vmem:[#allocation10 + $0x180] sm:$0xff]
    %v469 = vld [vmem:[#allocation10 + $0x188] sm:$0xff]
    %v470 = vld [vmem:[#allocation10 + $0x190] sm:$0xff]
    %v471 = vld [vmem:[#allocation10 + $0x198] sm:$0xff]
    %v472 = vld [vmem:[#allocation10 + $0x1a0] sm:$0xff]
    %v473 = vld [vmem:[#allocation10 + $0x1a8] sm:$0xff]
    %v474 = vld [vmem:[#allocation10 + $0x1b0] sm:$0xff]
    %v475 = vld [vmem:[#allocation10 + $0x1b8] sm:$0xff]
    %v476 = vld [vmem:[#allocation10 + $0x1c0] sm:$0xff]
    %v477 = vld [vmem:[#allocation10 + $0x1c8] sm:$0xff]
    %v478 = vld [vmem:[#allocation10 + $0x1d0] sm:$0xff]
    %v479 = vld [vmem:[#allocation10 + $0x1d8] sm:$0xff]
    %v480 = vld [vmem:[#allocation10 + $0x1e0] sm:$0xff]
    %v481 = vld [vmem:[#allocation10 + $0x1e8] sm:$0xff]
    %v482 = vld [vmem:[#allocation10 + $0x1f0] sm:$0xff]
    %v483 = vld [vmem:[#allocation10 + $0x1f8] sm:$0xff]
    %v484 = vld [vmem:[#allocation10 + $0x200] sm:$0xff]
    %v485 = vld [vmem:[#allocation10 + $0x208] sm:$0xff]
    %v486 = vld [vmem:[#allocation10 + $0x210] sm:$0xff]
    %v487 = vld [vmem:[#allocation10 + $0x218] sm:$0xff]
    %v488 = vld [vmem:[#allocation10 + $0x220] sm:$0xff]
    %v489 = vld [vmem:[#allocation10 + $0x228] sm:$0xff]
    %v490 = vld [vmem:[#allocation10 + $0x230] sm:$0xff]
    %v491 = vld [vmem:[#allocation10 + $0x238] sm:$0xff]
    %v492 = vld [vmem:[#allocation10 + $0x240] sm:$0xff]
    %v493 = vld [vmem:[#allocation10 + $0x248] sm:$0xff]
    %v494 = vld [vmem:[#allocation10 + $0x250] sm:$0xff]
    %v495 = vld [vmem:[#allocation10 + $0x258] sm:$0xff]
    %v496 = vld [vmem:[#allocation10 + $0x260] sm:$0xff]
    %v497 = vld [vmem:[#allocation10 + $0x268] sm:$0xff]
    %v498 = vld [vmem:[#allocation10 + $0x270] sm:$0xff]
    %v499 = vld [vmem:[#allocation10 + $0x278] sm:$0xff]
    %v500 = vld [vmem:[#allocation10 + $0x280] sm:$0xff]
    %v501 = vld [vmem:[#allocation10 + $0x288] sm:$0xff]
    %v502 = vld [vmem:[#allocation10 + $0x290] sm:$0xff]
    %v503 = vld [vmem:[#allocation10 + $0x298] sm:$0xff]
    %v504 = vld [vmem:[#allocation10 + $0x2a0] sm:$0xff]
    %v505 = vld [vmem:[#allocation10 + $0x2a8] sm:$0xff]
    %v506 = vld [vmem:[#allocation10 + $0x2b0] sm:$0xff]
    %v507 = vld [vmem:[#allocation10 + $0x2b8] sm:$0xff]
    %v508 = vld [vmem:[#allocation10 + $0x2c0] sm:$0xff]
    %v509 = vld [vmem:[#allocation10 + $0x2c8] sm:$0xff]
    %v510 = vld [vmem:[#allocation10 + $0x2d0] sm:$0xff]
    %v511 = vld [vmem:[#allocation10 + $0x2d8] sm:$0xff]
    %v512 = vld [vmem:[#allocation10 + $0x2e0] sm:$0xff]
    %v513 = vld [vmem:[#allocation10 + $0x2e8] sm:$0xff]
    %v514 = vld [vmem:[#allocation10 + $0x2f0] sm:$0xff]
    %v515 = vld [vmem:[#allocation10 + $0x2f8] sm:$0xff]
    %v516 = vld [vmem:[#allocation10 + $0x300] sm:$0xff]
    %v517 = vld [vmem:[#allocation10 + $0x308] sm:$0xff]
    %v518 = vld [vmem:[#allocation10 + $0x310] sm:$0xff]
    %v519 = vld [vmem:[#allocation10 + $0x318] sm:$0xff]
    %v520 = vld [vmem:[#allocation10 + $0x320] sm:$0xff]
    %v521 = vld [vmem:[#allocation10 + $0x328] sm:$0xff]
    %v522 = vld [vmem:[#allocation10 + $0x330] sm:$0xff]
    %v523 = vld [vmem:[#allocation10 + $0x338] sm:$0xff]
    %v524 = vld [vmem:[#allocation10 + $0x340] sm:$0xff]
    %v525 = vld [vmem:[#allocation10 + $0x348] sm:$0xff]
    %v526 = vld [vmem:[#allocation10 + $0x350] sm:$0xff]
    %v527 = vld [vmem:[#allocation10 + $0x358] sm:$0xff]
    %v528 = vld [vmem:[#allocation10 + $0x360] sm:$0xff]
    %v529 = vld [vmem:[#allocation10 + $0x368] sm:$0xff]
    %v530 = vld [vmem:[#allocation10 + $0x370] sm:$0xff]
    %v531 = vld [vmem:[#allocation10 + $0x378] sm:$0xff]
    %v532 = vld [vmem:[#allocation10 + $0x380] sm:$0xff]
    %v533 = vld [vmem:[#allocation10 + $0x388] sm:$0xff]
    %v534 = vld [vmem:[#allocation10 + $0x390] sm:$0xff]
    %v535 = vld [vmem:[#allocation10 + $0x398] sm:$0xff]
    %v536 = vld [vmem:[#allocation10 + $0x3a0] sm:$0xff]
    %v537 = vld [vmem:[#allocation10 + $0x3a8] sm:$0xff]
    %v538 = vld [vmem:[#allocation10 + $0x3b0] sm:$0xff]
    %v539 = vld [vmem:[#allocation10 + $0x3b8] sm:$0xff]
    %v540 = vld [vmem:[#allocation10 + $0x3c0] sm:$0xff]
    %v541 = vld [vmem:[#allocation10 + $0x3c8] sm:$0xff]
    %v542 = vld [vmem:[#allocation10 + $0x3d0] sm:$0xff]
    %v543 = vld [vmem:[#allocation10 + $0x3d8] sm:$0xff]
    %v544 = vld [vmem:[#allocation10 + $0x3e0] sm:$0xff]
    %v545 = vld [vmem:[#allocation10 + $0x3e8] sm:$0xff]
    %v546 = vld [vmem:[#allocation10 + $0x3f0] sm:$0xff]
    %v547 = vld [vmem:[#allocation10 + $0x3f8] sm:$0xff]
    %v548 = vunpack.c.l.s8.bf16 %v420
    %v549 = vunpack.c.l.s8.bf16 %v421
    %v550 = vunpack.c.l.s8.bf16 %v422
    %v551 = vunpack.c.l.s8.bf16 %v423
    %v552 = vunpack.c.l.s8.bf16 %v424
    %v553 = vunpack.c.l.s8.bf16 %v425
    %v554 = vunpack.c.l.s8.bf16 %v426
    %v555 = vunpack.c.l.s8.bf16 %v427
    %v556 = vunpack.c.h.s8.bf16 %v420
    %v557 = vunpack.c.h.s8.bf16 %v421
    %v558 = vunpack.c.h.s8.bf16 %v422
    %v559 = vunpack.c.h.s8.bf16 %v423
    %v560 = vunpack.c.h.s8.bf16 %v424
    %v561 = vunpack.c.h.s8.bf16 %v425
    %v562 = vunpack.c.h.s8.bf16 %v426
    %v563 = vunpack.c.h.s8.bf16 %v427
    %v564 = vunpack.c.l.s8.bf16 %v428
    %v565 = vunpack.c.l.s8.bf16 %v429
    %v566 = vunpack.c.l.s8.bf16 %v430
    %v567 = vunpack.c.l.s8.bf16 %v431
    %v568 = vunpack.c.l.s8.bf16 %v432
    %v569 = vunpack.c.l.s8.bf16 %v433
    %v570 = vunpack.c.l.s8.bf16 %v434
    %v571 = vunpack.c.l.s8.bf16 %v435
    %v572 = vunpack.c.h.s8.bf16 %v428
    %v573 = vunpack.c.h.s8.bf16 %v429
    %v574 = vunpack.c.h.s8.bf16 %v430
    %v575 = vunpack.c.h.s8.bf16 %v431
    %v576 = vunpack.c.h.s8.bf16 %v432
    %v577 = vunpack.c.h.s8.bf16 %v433
    %v578 = vunpack.c.h.s8.bf16 %v434
    %v579 = vunpack.c.h.s8.bf16 %v435
    %v580 = vunpack.c.l.s8.bf16 %v436
    %v581 = vunpack.c.l.s8.bf16 %v437
    %v582 = vunpack.c.l.s8.bf16 %v438
    %v583 = vunpack.c.l.s8.bf16 %v439
    %v584 = vunpack.c.l.s8.bf16 %v440
    %v585 = vunpack.c.l.s8.bf16 %v441
    %v586 = vunpack.c.l.s8.bf16 %v442
    %v587 = vunpack.c.l.s8.bf16 %v443
    %v588 = vunpack.c.h.s8.bf16 %v436
    %v589 = vunpack.c.h.s8.bf16 %v437
    %v590 = vunpack.c.h.s8.bf16 %v438
    %v591 = vunpack.c.h.s8.bf16 %v439
    %v592 = vunpack.c.h.s8.bf16 %v440
    %v593 = vunpack.c.h.s8.bf16 %v441
    %v594 = vunpack.c.h.s8.bf16 %v442
    %v595 = vunpack.c.h.s8.bf16 %v443
    %v596 = vunpack.c.l.s8.bf16 %v444
    %v597 = vunpack.c.l.s8.bf16 %v445
    %v598 = vunpack.c.l.s8.bf16 %v446
    %v599 = vunpack.c.l.s8.bf16 %v447
    %v600 = vunpack.c.l.s8.bf16 %v448
    %v601 = vunpack.c.l.s8.bf16 %v449
    %v602 = vunpack.c.l.s8.bf16 %v450
    %v603 = vunpack.c.l.s8.bf16 %v451
    %v604 = vunpack.c.h.s8.bf16 %v444
    %v605 = vunpack.c.h.s8.bf16 %v445
    %v606 = vunpack.c.h.s8.bf16 %v446
    %v607 = vunpack.c.h.s8.bf16 %v447
    %v608 = vunpack.c.h.s8.bf16 %v448
    %v609 = vunpack.c.h.s8.bf16 %v449
    %v610 = vunpack.c.h.s8.bf16 %v450
    %v611 = vunpack.c.h.s8.bf16 %v451
    %v612 = vunpack.c.l.s8.bf16 %v452
    %v613 = vunpack.c.l.s8.bf16 %v453
    %v614 = vunpack.c.l.s8.bf16 %v454
    %v615 = vunpack.c.l.s8.bf16 %v455
    %v616 = vunpack.c.l.s8.bf16 %v456
    %v617 = vunpack.c.l.s8.bf16 %v457
    %v618 = vunpack.c.l.s8.bf16 %v458
    %v619 = vunpack.c.l.s8.bf16 %v459
    %v620 = vunpack.c.h.s8.bf16 %v452
    %v621 = vunpack.c.h.s8.bf16 %v453
    %v622 = vunpack.c.h.s8.bf16 %v454
    %v623 = vunpack.c.h.s8.bf16 %v455
    %v624 = vunpack.c.h.s8.bf16 %v456
    %v625 = vunpack.c.h.s8.bf16 %v457
    %v626 = vunpack.c.h.s8.bf16 %v458
    %v627 = vunpack.c.h.s8.bf16 %v459
    %v628 = vunpack.c.l.s8.bf16 %v460
    %v629 = vunpack.c.l.s8.bf16 %v461
    %v630 = vunpack.c.l.s8.bf16 %v462
    %v631 = vunpack.c.l.s8.bf16 %v463
    %v632 = vunpack.c.l.s8.bf16 %v464
    %v633 = vunpack.c.l.s8.bf16 %v465
    %v634 = vunpack.c.l.s8.bf16 %v466
    %v635 = vunpack.c.l.s8.bf16 %v467
    %v636 = vunpack.c.h.s8.bf16 %v460
    %v637 = vunpack.c.h.s8.bf16 %v461
    %v638 = vunpack.c.h.s8.bf16 %v462
    %v639 = vunpack.c.h.s8.bf16 %v463
    %v640 = vunpack.c.h.s8.bf16 %v464
    %v641 = vunpack.c.h.s8.bf16 %v465
    %v642 = vunpack.c.h.s8.bf16 %v466
    %v643 = vunpack.c.h.s8.bf16 %v467
    %v644 = vunpack.c.l.s8.bf16 %v468
    %v645 = vunpack.c.l.s8.bf16 %v469
    %v646 = vunpack.c.l.s8.bf16 %v470
    %v647 = vunpack.c.l.s8.bf16 %v471
    %v648 = vunpack.c.l.s8.bf16 %v472
    %v649 = vunpack.c.l.s8.bf16 %v473
    %v650 = vunpack.c.l.s8.bf16 %v474
    %v651 = vunpack.c.l.s8.bf16 %v475
    %v652 = vunpack.c.h.s8.bf16 %v468
    %v653 = vunpack.c.h.s8.bf16 %v469
    %v654 = vunpack.c.h.s8.bf16 %v470
    %v655 = vunpack.c.h.s8.bf16 %v471
    %v656 = vunpack.c.h.s8.bf16 %v472
    %v657 = vunpack.c.h.s8.bf16 %v473
    %v658 = vunpack.c.h.s8.bf16 %v474
    %v659 = vunpack.c.h.s8.bf16 %v475
    %v660 = vunpack.c.l.s8.bf16 %v476
    %v661 = vunpack.c.l.s8.bf16 %v477
    %v662 = vunpack.c.l.s8.bf16 %v478
    %v663 = vunpack.c.l.s8.bf16 %v479
    %v664 = vunpack.c.l.s8.bf16 %v480
    %v665 = vunpack.c.l.s8.bf16 %v481
    %v666 = vunpack.c.l.s8.bf16 %v482
    %v667 = vunpack.c.l.s8.bf16 %v483
    %v668 = vunpack.c.h.s8.bf16 %v476
    %v669 = vunpack.c.h.s8.bf16 %v477
    %v670 = vunpack.c.h.s8.bf16 %v478
    %v671 = vunpack.c.h.s8.bf16 %v479
    %v672 = vunpack.c.h.s8.bf16 %v480
    %v673 = vunpack.c.h.s8.bf16 %v481
    %v674 = vunpack.c.h.s8.bf16 %v482
    %v675 = vunpack.c.h.s8.bf16 %v483
    %v676 = vunpack.c.l.s8.bf16 %v484
    %v677 = vunpack.c.l.s8.bf16 %v485
    %v678 = vunpack.c.l.s8.bf16 %v486
    %v679 = vunpack.c.l.s8.bf16 %v487
    %v680 = vunpack.c.l.s8.bf16 %v488
    %v681 = vunpack.c.l.s8.bf16 %v489
    %v682 = vunpack.c.l.s8.bf16 %v490
    %v683 = vunpack.c.l.s8.bf16 %v491
    %v684 = vunpack.c.h.s8.bf16 %v484
    %v685 = vunpack.c.h.s8.bf16 %v485
    %v686 = vunpack.c.h.s8.bf16 %v486
    %v687 = vunpack.c.h.s8.bf16 %v487
    %v688 = vunpack.c.h.s8.bf16 %v488
    %v689 = vunpack.c.h.s8.bf16 %v489
    %v690 = vunpack.c.h.s8.bf16 %v490
    %v691 = vunpack.c.h.s8.bf16 %v491
    %v692 = vunpack.c.l.s8.bf16 %v492
    %v693 = vunpack.c.l.s8.bf16 %v493
    %v694 = vunpack.c.l.s8.bf16 %v494
    %v695 = vunpack.c.l.s8.bf16 %v495
    %v696 = vunpack.c.l.s8.bf16 %v496
    %v697 = vunpack.c.l.s8.bf16 %v497
    %v698 = vunpack.c.l.s8.bf16 %v498
    %v699 = vunpack.c.l.s8.bf16 %v499
    %v700 = vunpack.c.h.s8.bf16 %v492
    %v701 = vunpack.c.h.s8.bf16 %v493
    %v702 = vunpack.c.h.s8.bf16 %v494
    %v703 = vunpack.c.h.s8.bf16 %v495
    %v704 = vunpack.c.h.s8.bf16 %v496
    %v705 = vunpack.c.h.s8.bf16 %v497
    %v706 = vunpack.c.h.s8.bf16 %v498
    %v707 = vunpack.c.h.s8.bf16 %v499
    %v708 = vunpack.c.l.s8.bf16 %v500
    %v709 = vunpack.c.l.s8.bf16 %v501
    %v710 = vunpack.c.l.s8.bf16 %v502
    %v711 = vunpack.c.l.s8.bf16 %v503
    %v712 = vunpack.c.l.s8.bf16 %v504
    %v713 = vunpack.c.l.s8.bf16 %v505
    %v714 = vunpack.c.l.s8.bf16 %v506
    %v715 = vunpack.c.l.s8.bf16 %v507
    %v716 = vunpack.c.h.s8.bf16 %v500
    %v717 = vunpack.c.h.s8.bf16 %v501
    %v718 = vunpack.c.h.s8.bf16 %v502
    %v719 = vunpack.c.h.s8.bf16 %v503
    %v720 = vunpack.c.h.s8.bf16 %v504
    %v721 = vunpack.c.h.s8.bf16 %v505
    %v722 = vunpack.c.h.s8.bf16 %v506
    %v723 = vunpack.c.h.s8.bf16 %v507
    %v724 = vunpack.c.l.s8.bf16 %v508
    %v725 = vunpack.c.l.s8.bf16 %v509
    %v726 = vunpack.c.l.s8.bf16 %v510
    %v727 = vunpack.c.l.s8.bf16 %v511
    %v728 = vunpack.c.l.s8.bf16 %v512
    %v729 = vunpack.c.l.s8.bf16 %v513
    %v730 = vunpack.c.l.s8.bf16 %v514
    %v731 = vunpack.c.l.s8.bf16 %v515
    %v732 = vunpack.c.h.s8.bf16 %v508
    %v733 = vunpack.c.h.s8.bf16 %v509
    %v734 = vunpack.c.h.s8.bf16 %v510
    %v735 = vunpack.c.h.s8.bf16 %v511
    %v736 = vunpack.c.h.s8.bf16 %v512
    %v737 = vunpack.c.h.s8.bf16 %v513
    %v738 = vunpack.c.h.s8.bf16 %v514
    %v739 = vunpack.c.h.s8.bf16 %v515
    %v740 = vunpack.c.l.s8.bf16 %v516
    %v741 = vunpack.c.l.s8.bf16 %v517
    %v742 = vunpack.c.l.s8.bf16 %v518
    %v743 = vunpack.c.l.s8.bf16 %v519
    %v744 = vunpack.c.l.s8.bf16 %v520
    %v745 = vunpack.c.l.s8.bf16 %v521
    %v746 = vunpack.c.l.s8.bf16 %v522
    %v747 = vunpack.c.l.s8.bf16 %v523
    %v748 = vunpack.c.h.s8.bf16 %v516
    %v749 = vunpack.c.h.s8.bf16 %v517
    %v750 = vunpack.c.h.s8.bf16 %v518
    %v751 = vunpack.c.h.s8.bf16 %v519
    %v752 = vunpack.c.h.s8.bf16 %v520
    %v753 = vunpack.c.h.s8.bf16 %v521
    %v754 = vunpack.c.h.s8.bf16 %v522
    %v755 = vunpack.c.h.s8.bf16 %v523
    %v756 = vunpack.c.l.s8.bf16 %v524
    %v757 = vunpack.c.l.s8.bf16 %v525
    %v758 = vunpack.c.l.s8.bf16 %v526
    %v759 = vunpack.c.l.s8.bf16 %v527
    %v760 = vunpack.c.l.s8.bf16 %v528
    %v761 = vunpack.c.l.s8.bf16 %v529
    %v762 = vunpack.c.l.s8.bf16 %v530
    %v763 = vunpack.c.l.s8.bf16 %v531
    %v764 = vunpack.c.h.s8.bf16 %v524
    %v765 = vunpack.c.h.s8.bf16 %v525
    %v766 = vunpack.c.h.s8.bf16 %v526
    %v767 = vunpack.c.h.s8.bf16 %v527
    %v768 = vunpack.c.h.s8.bf16 %v528
    %v769 = vunpack.c.h.s8.bf16 %v529
    %v770 = vunpack.c.h.s8.bf16 %v530
    %v771 = vunpack.c.h.s8.bf16 %v531
    %v772 = vunpack.c.l.s8.bf16 %v532
    %v773 = vunpack.c.l.s8.bf16 %v533
    %v774 = vunpack.c.l.s8.bf16 %v534
    %v775 = vunpack.c.l.s8.bf16 %v535
    %v776 = vunpack.c.l.s8.bf16 %v536
    %v777 = vunpack.c.l.s8.bf16 %v537
    %v778 = vunpack.c.l.s8.bf16 %v538
    %v779 = vunpack.c.l.s8.bf16 %v539
    %v780 = vunpack.c.h.s8.bf16 %v532
    %v781 = vunpack.c.h.s8.bf16 %v533
    %v782 = vunpack.c.h.s8.bf16 %v534
    %v783 = vunpack.c.h.s8.bf16 %v535
    %v784 = vunpack.c.h.s8.bf16 %v536
    %v785 = vunpack.c.h.s8.bf16 %v537
    %v786 = vunpack.c.h.s8.bf16 %v538
    %v787 = vunpack.c.h.s8.bf16 %v539
    %v788 = vunpack.c.l.s8.bf16 %v540
    %v789 = vunpack.c.l.s8.bf16 %v541
    %v790 = vunpack.c.l.s8.bf16 %v542
    %v791 = vunpack.c.l.s8.bf16 %v543
    %v792 = vunpack.c.l.s8.bf16 %v544
    %v793 = vunpack.c.l.s8.bf16 %v545
    %v794 = vunpack.c.l.s8.bf16 %v546
    %v795 = vunpack.c.l.s8.bf16 %v547
    %v796 = vunpack.c.h.s8.bf16 %v540
    %v797 = vunpack.c.h.s8.bf16 %v541
    %v798 = vunpack.c.h.s8.bf16 %v542
    %v799 = vunpack.c.h.s8.bf16 %v543
    %v800 = vunpack.c.h.s8.bf16 %v544
    %v801 = vunpack.c.h.s8.bf16 %v545
    %v802 = vunpack.c.h.s8.bf16 %v546
    %v803 = vunpack.c.h.s8.bf16 %v547
    %v804 = vpack.c.bf16 %v373, %v373
    %v805 = vpack.c.bf16 %v375, %v375
    %v806 = vpack.c.bf16 %v414, %v414
    %v807 = vpack.c.bf16 %v416, %v416
    %808 = vmatprep.subr.bf16.mxu0 %v549
    %809 = vmatpush1.bf16.msra.mxu0 %v548
    %810 = vmatprep.subr.bf16.mxu0 %v557
    %811 = vmatpush1.bf16.msra.mxu0 %v556
    %812 = vmatprep.subr.bf16.mxu0 %v565
    %813 = vmatpush1.bf16.msra.mxu0 %v564
    %814 = vmatprep.subr.bf16.mxu0 %v573
    %815 = vmatpush1.bf16.msra.mxu0 %v572
    %816 = vmatprep.subr.bf16.mxu0 %v581
    %817 = vmatpush1.bf16.msra.mxu0 %v580
    %818 = vmatprep.subr.bf16.mxu0 %v589
    %819 = vmatpush1.bf16.msra.mxu0 %v588
    %820 = vmatprep.subr.bf16.mxu0 %v597
    %821 = vmatpush1.bf16.msra.mxu0 %v596
    %822 = vmatprep.subr.bf16.mxu0 %v605
    %823 = vmatpush1.bf16.msra.mxu0 %v604
    %824 = vmatprep.subr.bf16.mxu0 %v613
    %825 = vmatpush1.bf16.msra.mxu0 %v612
    %826 = vmatprep.subr.bf16.mxu0 %v621
    %827 = vmatpush1.bf16.msra.mxu0 %v620
    %828 = vmatprep.subr.bf16.mxu0 %v629
    %829 = vmatpush1.bf16.msra.mxu0 %v628
    %830 = vmatprep.subr.bf16.mxu0 %v637
    %831 = vmatpush1.bf16.msra.mxu0 %v636
    %832 = vmatprep.subr.bf16.mxu0 %v645
    %833 = vmatpush1.bf16.msra.mxu0 %v644
    %834 = vmatprep.subr.bf16.mxu0 %v653
    %835 = vmatpush1.bf16.msra.mxu0 %v652
    %836 = vmatprep.subr.bf16.mxu0 %v661
    %837 = vmatpush1.bf16.msra.mxu0 %v660
    %838 = vmatprep.subr.bf16.mxu0 %v669
    %839 = vmatpush1.bf16.msra.mxu0 %v668
    %840 = vmatprep.mubr.bf16.mxu0 %v805
    %841 = vmatmul.mubr.bf16.gmra.mrb[0].mxu0 %v804
    %v842 = vpop.f32.mrb[0].mxu0
    %v843 = vadd.f32 0.0, %v842
    %v844 = vpop.f32.mrb[0].mxu0
    %v845 = vadd.f32 0.0, %v844
    %v846 = vpop.f32.mrb[0].mxu0
    %v847 = vpop.f32.mrb[0].mxu0
    %848 = vdwg.mxu0
    %849 = vmatprep.subr.bf16.mxu0 %v677
    %850 = vmatpush1.bf16.msra.mxu0 %v676
    %851 = vmatprep.subr.bf16.mxu0 %v685
    %852 = vmatpush1.bf16.msra.mxu0 %v684
    %853 = vmatprep.subr.bf16.mxu0 %v693
    %854 = vmatpush1.bf16.msra.mxu0 %v692
    %855 = vmatprep.subr.bf16.mxu0 %v701
    %856 = vmatpush1.bf16.msra.mxu0 %v700
    %857 = vmatprep.subr.bf16.mxu0 %v709
    %858 = vmatpush1.bf16.msra.mxu0 %v708
    %859 = vmatprep.subr.bf16.mxu0 %v717
    %860 = vmatpush1.bf16.msra.mxu0 %v716
    %861 = vmatprep.subr.bf16.mxu0 %v725
    %862 = vmatpush1.bf16.msra.mxu0 %v724
    %863 = vmatprep.subr.bf16.mxu0 %v733
    %864 = vmatpush1.bf16.msra.mxu0 %v732
    %865 = vmatprep.subr.bf16.mxu0 %v741
    %866 = vmatpush1.bf16.msra.mxu0 %v740
    %867 = vmatprep.subr.bf16.mxu0 %v749
    %868 = vmatpush1.bf16.msra.mxu0 %v748
    %869 = vmatprep.subr.bf16.mxu0 %v757
    %870 = vmatpush1.bf16.msra.mxu0 %v756
    %871 = vmatprep.subr.bf16.mxu0 %v765
    %872 = vmatpush1.bf16.msra.mxu0 %v764
    %873 = vmatprep.subr.bf16.mxu0 %v773
    %874 = vmatpush1.bf16.msra.mxu0 %v772
    %875 = vmatprep.subr.bf16.mxu0 %v781
    %876 = vmatpush1.bf16.msra.mxu0 %v780
    %877 = vmatprep.subr.bf16.mxu0 %v789
    %878 = vmatpush1.bf16.msra.mxu0 %v788
    %879 = vmatprep.subr.bf16.mxu0 %v797
    %880 = vmatpush1.bf16.msra.mxu0 %v796
    %881 = vmatprep.mubr.bf16.mxu0 %v807
    %882 = vmatmul.mubr.bf16.gmra.mrb[0].mxu0 %v806
    %v883 = vpop.f32.mrb[0].mxu0
    %v884 = vadd.f32 %v843, %v883
    %v885 = vpop.f32.mrb[0].mxu0
    %v886 = vadd.f32 %v845, %v885
    %v887 = vpop.f32.mrb[0].mxu0
    %v888 = vpop.f32.mrb[0].mxu0
    %889 = vdwg.mxu0
    %890 = vmatprep.subr.bf16.mxu0 %v551
    %891 = vmatpush1.bf16.msra.mxu0 %v550
    %892 = vmatprep.subr.bf16.mxu0 %v559
    %893 = vmatpush1.bf16.msra.mxu0 %v558
    %894 = vmatprep.subr.bf16.mxu0 %v567
    %895 = vmatpush1.bf16.msra.mxu0 %v566
    %896 = vmatprep.subr.bf16.mxu0 %v575
    %897 = vmatpush1.bf16.msra.mxu0 %v574
    %898 = vmatprep.subr.bf16.mxu0 %v583
    %899 = vmatpush1.bf16.msra.mxu0 %v582
    %900 = vmatprep.subr.bf16.mxu0 %v591
    %901 = vmatpush1.bf16.msra.mxu0 %v590
    %902 = vmatprep.subr.bf16.mxu0 %v599
    %903 = vmatpush1.bf16.msra.mxu0 %v598
    %904 = vmatprep.subr.bf16.mxu0 %v607
    %905 = vmatpush1.bf16.msra.mxu0 %v606
    %906 = vmatprep.subr.bf16.mxu0 %v615
    %907 = vmatpush1.bf16.msra.mxu0 %v614
    %908 = vmatprep.subr.bf16.mxu0 %v623
    %909 = vmatpush1.bf16.msra.mxu0 %v622
    %910 = vmatprep.subr.bf16.mxu0 %v631
    %911 = vmatpush1.bf16.msra.mxu0 %v630
    %912 = vmatprep.subr.bf16.mxu0 %v639
    %913 = vmatpush1.bf16.msra.mxu0 %v638
    %914 = vmatprep.subr.bf16.mxu0 %v647
    %915 = vmatpush1.bf16.msra.mxu0 %v646
    %916 = vmatprep.subr.bf16.mxu0 %v655
    %917 = vmatpush1.bf16.msra.mxu0 %v654
    %918 = vmatprep.subr.bf16.mxu0 %v663
    %919 = vmatpush1.bf16.msra.mxu0 %v662
    %920 = vmatprep.subr.bf16.mxu0 %v671
    %921 = vmatpush1.bf16.msra.mxu0 %v670
    %922 = vmatprep.mubr.bf16.mxu0 %v805
    %923 = vmatmul.mubr.bf16.gmra.mrb[0].mxu0 %v804
    %v924 = vpop.f32.mrb[0].mxu0
    %v925 = vadd.f32 0.0, %v924
    %v926 = vpop.f32.mrb[0].mxu0
    %v927 = vadd.f32 0.0, %v926
    %v928 = vpop.f32.mrb[0].mxu0
    %v929 = vpop.f32.mrb[0].mxu0
    %930 = vdwg.mxu0
    %931 = vmatprep.subr.bf16.mxu0 %v679
    %932 = vmatpush1.bf16.msra.mxu0 %v678
    %933 = vmatprep.subr.bf16.mxu0 %v687
    %934 = vmatpush1.bf16.msra.mxu0 %v686
    %935 = vmatprep.subr.bf16.mxu0 %v695
    %936 = vmatpush1.bf16.msra.mxu0 %v694
    %937 = vmatprep.subr.bf16.mxu0 %v703
    %938 = vmatpush1.bf16.msra.mxu0 %v702
    %939 = vmatprep.subr.bf16.mxu0 %v711
    %940 = vmatpush1.bf16.msra.mxu0 %v710
    %941 = vmatprep.subr.bf16.mxu0 %v719
    %942 = vmatpush1.bf16.msra.mxu0 %v718
    %943 = vmatprep.subr.bf16.mxu0 %v727
    %944 = vmatpush1.bf16.msra.mxu0 %v726
    %945 = vmatprep.subr.bf16.mxu0 %v735
    %946 = vmatpush1.bf16.msra.mxu0 %v734
    %947 = vmatprep.subr.bf16.mxu0 %v743
    %948 = vmatpush1.bf16.msra.mxu0 %v742
    %949 = vmatprep.subr.bf16.mxu0 %v751
    %950 = vmatpush1.bf16.msra.mxu0 %v750
    %951 = vmatprep.subr.bf16.mxu0 %v759
    %952 = vmatpush1.bf16.msra.mxu0 %v758
    %953 = vmatprep.subr.bf16.mxu0 %v767
    %954 = vmatpush1.bf16.msra.mxu0 %v766
    %955 = vmatprep.subr.bf16.mxu0 %v775
    %956 = vmatpush1.bf16.msra.mxu0 %v774
    %957 = vmatprep.subr.bf16.mxu0 %v783
    %958 = vmatpush1.bf16.msra.mxu0 %v782
    %959 = vmatprep.subr.bf16.mxu0 %v791
    %960 = vmatpush1.bf16.msra.mxu0 %v790
    %961 = vmatprep.subr.bf16.mxu0 %v799
    %962 = vmatpush1.bf16.msra.mxu0 %v798
    %963 = vmatprep.mubr.bf16.mxu0 %v807
    %964 = vmatmul.mubr.bf16.gmra.mrb[0].mxu0 %v806
    %v965 = vpop.f32.mrb[0].mxu0
    %v966 = vadd.f32 %v925, %v965
    %v967 = vpop.f32.mrb[0].mxu0
    %v968 = vadd.f32 %v927, %v967
    %v969 = vpop.f32.mrb[0].mxu0
    %v970 = vpop.f32.mrb[0].mxu0
    %971 = vdwg.mxu0
    %972 = vmatprep.subr.bf16.mxu0 %v553
    %973 = vmatpush1.bf16.msra.mxu0 %v552
    %974 = vmatprep.subr.bf16.mxu0 %v561
    %975 = vmatpush1.bf16.msra.mxu0 %v560
    %976 = vmatprep.subr.bf16.mxu0 %v569
    %977 = vmatpush1.bf16.msra.mxu0 %v568
    %978 = vmatprep.subr.bf16.mxu0 %v577
    %979 = vmatpush1.bf16.msra.mxu0 %v576
    %980 = vmatprep.subr.bf16.mxu0 %v585
    %981 = vmatpush1.bf16.msra.mxu0 %v584
    %982 = vmatprep.subr.bf16.mxu0 %v593
    %983 = vmatpush1.bf16.msra.mxu0 %v592
    %984 = vmatprep.subr.bf16.mxu0 %v601
    %985 = vmatpush1.bf16.msra.mxu0 %v600
    %986 = vmatprep.subr.bf16.mxu0 %v609
    %987 = vmatpush1.bf16.msra.mxu0 %v608
    %988 = vmatprep.subr.bf16.mxu0 %v617
    %989 = vmatpush1.bf16.msra.mxu0 %v616
    %990 = vmatprep.subr.bf16.mxu0 %v625
    %991 = vmatpush1.bf16.msra.mxu0 %v624
    %992 = vmatprep.subr.bf16.mxu0 %v633
    %993 = vmatpush1.bf16.msra.mxu0 %v632
    %994 = vmatprep.subr.bf16.mxu0 %v641
    %995 = vmatpush1.bf16.msra.mxu0 %v640
    %996 = vmatprep.subr.bf16.mxu0 %v649
    %997 = vmatpush1.bf16.msra.mxu0 %v648
    %998 = vmatprep.subr.bf16.mxu0 %v657
    %999 = vmatpush1.bf16.msra.mxu0 %v656
    %1000 = vmatprep.subr.bf16.mxu0 %v665
    %1001 = vmatpush1.bf16.msra.mxu0 %v664
    %1002 = vmatprep.subr.bf16.mxu0 %v673
    %1003 = vmatpush1.bf16.msra.mxu0 %v672
    %1004 = vmatprep.mubr.bf16.mxu0 %v805
    %1005 = vmatmul.mubr.bf16.gmra.mrb[0].mxu0 %v804
    %v1006 = vpop.f32.mrb[0].mxu0
    %v1007 = vadd.f32 0.0, %v1006
    %v1008 = vpop.f32.mrb[0].mxu0
    %v1009 = vadd.f32 0.0, %v1008
    %v1010 = vpop.f32.mrb[0].mxu0
    %v1011 = vpop.f32.mrb[0].mxu0
    %1012 = vdwg.mxu0
    %1013 = vmatprep.subr.bf16.mxu0 %v681
    %1014 = vmatpush1.bf16.msra.mxu0 %v680
    %1015 = vmatprep.subr.bf16.mxu0 %v689
    %1016 = vmatpush1.bf16.msra.mxu0 %v688
    %1017 = vmatprep.subr.bf16.mxu0 %v697
    %1018 = vmatpush1.bf16.msra.mxu0 %v696
    %1019 = vmatprep.subr.bf16.mxu0 %v705
    %1020 = vmatpush1.bf16.msra.mxu0 %v704
    %1021 = vmatprep.subr.bf16.mxu0 %v713
    %1022 = vmatpush1.bf16.msra.mxu0 %v712
    %1023 = vmatprep.subr.bf16.mxu0 %v721
    %1024 = vmatpush1.bf16.msra.mxu0 %v720
    %1025 = vmatprep.subr.bf16.mxu0 %v729
    %1026 = vmatpush1.bf16.msra.mxu0 %v728
    %1027 = vmatprep.subr.bf16.mxu0 %v737
    %1028 = vmatpush1.bf16.msra.mxu0 %v736
    %1029 = vmatprep.subr.bf16.mxu0 %v745
    %1030 = vmatpush1.bf16.msra.mxu0 %v744
    %1031 = vmatprep.subr.bf16.mxu0 %v753
    %1032 = vmatpush1.bf16.msra.mxu0 %v752
    %1033 = vmatprep.subr.bf16.mxu0 %v761
    %1034 = vmatpush1.bf16.msra.mxu0 %v760
    %1035 = vmatprep.subr.bf16.mxu0 %v769
    %1036 = vmatpush1.bf16.msra.mxu0 %v768
    %1037 = vmatprep.subr.bf16.mxu0 %v777
    %1038 = vmatpush1.bf16.msra.mxu0 %v776
    %1039 = vmatprep.subr.bf16.mxu0 %v785
    %1040 = vmatpush1.bf16.msra.mxu0 %v784
    %1041 = vmatprep.subr.bf16.mxu0 %v793
    %1042 = vmatpush1.bf16.msra.mxu0 %v792
    %1043 = vmatprep.subr.bf16.mxu0 %v801
    %1044 = vmatpush1.bf16.msra.mxu0 %v800
    %1045 = vmatprep.mubr.bf16.mxu0 %v807
    %1046 = vmatmul.mubr.bf16.gmra.mrb[0].mxu0 %v806
    %v1047 = vpop.f32.mrb[0].mxu0
    %v1048 = vadd.f32 %v1007, %v1047
    %v1049 = vpop.f32.mrb[0].mxu0
    %v1050 = vadd.f32 %v1009, %v1049
    %v1051 = vpop.f32.mrb[0].mxu0
    %v1052 = vpop.f32.mrb[0].mxu0
    %1053 = vdwg.mxu0
    %1054 = vmatprep.subr.bf16.mxu0 %v555
    %1055 = vmatpush1.bf16.msra.mxu0 %v554
    %1056 = vmatprep.subr.bf16.mxu0 %v563
    %1057 = vmatpush1.bf16.msra.mxu0 %v562
    %1058 = vmatprep.subr.bf16.mxu0 %v571
    %1059 = vmatpush1.bf16.msra.mxu0 %v570
    %1060 = vmatprep.subr.bf16.mxu0 %v579
    %1061 = vmatpush1.bf16.msra.mxu0 %v578
    %1062 = vmatprep.subr.bf16.mxu0 %v587
    %1063 = vmatpush1.bf16.msra.mxu0 %v586
    %1064 = vmatprep.subr.bf16.mxu0 %v595
    %1065 = vmatpush1.bf16.msra.mxu0 %v594
    %1066 = vmatprep.subr.bf16.mxu0 %v603
    %1067 = vmatpush1.bf16.msra.mxu0 %v602
    %1068 = vmatprep.subr.bf16.mxu0 %v611
    %1069 = vmatpush1.bf16.msra.mxu0 %v610
    %1070 = vmatprep.subr.bf16.mxu0 %v619
    %1071 = vmatpush1.bf16.msra.mxu0 %v618
    %1072 = vmatprep.subr.bf16.mxu0 %v627
    %1073 = vmatpush1.bf16.msra.mxu0 %v626
    %1074 = vmatprep.subr.bf16.mxu0 %v635
    %1075 = vmatpush1.bf16.msra.mxu0 %v634
    %1076 = vmatprep.subr.bf16.mxu0 %v643
    %1077 = vmatpush1.bf16.msra.mxu0 %v642
    %1078 = vmatprep.subr.bf16.mxu0 %v651
    %1079 = vmatpush1.bf16.msra.mxu0 %v650
    %1080 = vmatprep.subr.bf16.mxu0 %v659
    %1081 = vmatpush1.bf16.msra.mxu0 %v658
    %1082 = vmatprep.subr.bf16.mxu0 %v667
    %1083 = vmatpush1.bf16.msra.mxu0 %v666
    %1084 = vmatprep.subr.bf16.mxu0 %v675
    %1085 = vmatpush1.bf16.msra.mxu0 %v674
    %1086 = vmatprep.mubr.bf16.mxu0 %v805
    %1087 = vmatmul.mubr.bf16.gmra.mrb[0].mxu0 %v804
    %v1088 = vpop.f32.mrb[0].mxu0
    %v1089 = vadd.f32 0.0, %v1088
    %v1090 = vpop.f32.mrb[0].mxu0
    %v1091 = vadd.f32 0.0, %v1090
    %v1092 = vpop.f32.mrb[0].mxu0
    %v1093 = vpop.f32.mrb[0].mxu0
    %1094 = vdwg.mxu0
    %1095 = vmatprep.subr.bf16.mxu0 %v683
    %1096 = vmatpush1.bf16.msra.mxu0 %v682
    %1097 = vmatprep.subr.bf16.mxu0 %v691
    %1098 = vmatpush1.bf16.msra.mxu0 %v690
    %1099 = vmatprep.subr.bf16.mxu0 %v699
    %1100 = vmatpush1.bf16.msra.mxu0 %v698
    %1101 = vmatprep.subr.bf16.mxu0 %v707
    %1102 = vmatpush1.bf16.msra.mxu0 %v706
    %1103 = vmatprep.subr.bf16.mxu0 %v715
    %1104 = vmatpush1.bf16.msra.mxu0 %v714
    %1105 = vmatprep.subr.bf16.mxu0 %v723
    %1106 = vmatpush1.bf16.msra.mxu0 %v722
    %1107 = vmatprep.subr.bf16.mxu0 %v731
    %1108 = vmatpush1.bf16.msra.mxu0 %v730
    %1109 = vmatprep.subr.bf16.mxu0 %v739
    %1110 = vmatpush1.bf16.msra.mxu0 %v738
    %1111 = vmatprep.subr.bf16.mxu0 %v747
    %1112 = vmatpush1.bf16.msra.mxu0 %v746
    %1113 = vmatprep.subr.bf16.mxu0 %v755
    %1114 = vmatpush1.bf16.msra.mxu0 %v754
    %1115 = vmatprep.subr.bf16.mxu0 %v763
    %1116 = vmatpush1.bf16.msra.mxu0 %v762
    %1117 = vmatprep.subr.bf16.mxu0 %v771
    %1118 = vmatpush1.bf16.msra.mxu0 %v770
    %1119 = vmatprep.subr.bf16.mxu0 %v779
    %1120 = vmatpush1.bf16.msra.mxu0 %v778
    %1121 = vmatprep.subr.bf16.mxu0 %v787
    %1122 = vmatpush1.bf16.msra.mxu0 %v786
    %1123 = vmatprep.subr.bf16.mxu0 %v795
    %1124 = vmatpush1.bf16.msra.mxu0 %v794
    %1125 = vmatprep.subr.bf16.mxu0 %v803
    %1126 = vmatpush1.bf16.msra.mxu0 %v802
    %1127 = vmatprep.mubr.bf16.mxu0 %v807
    %1128 = vmatmul.mubr.bf16.gmra.mrb[0].mxu0 %v806
    %v1129 = vpop.f32.mrb[0].mxu0
    %v1130 = vadd.f32 %v1089, %v1129
    %v1131 = vpop.f32.mrb[0].mxu0
    %v1132 = vadd.f32 %v1091, %v1131
    %v1133 = vpop.f32.mrb[0].mxu0
    %v1134 = vpop.f32.mrb[0].mxu0
    %1135 = vdwg.mxu0
    %v1136 = vld [vmem:[%s5] sm:$0xff]
    %v1138 = vlaneseq
    %v1139 = vshrl.u32 %v1138, 7
    %v1140 = vsub.s32 0, %v1139
    %v1141 = vrot.slane %v1136, %v1140
    %v1142 = vlaneseq
    %v1143 = vshrl.u32 %v1142, 7
    %v1144 = vsub.s32 1, %v1143
    %v1145 = vrot.slane %v1136, %v1144
    %v1146 = vlaneseq
    %v1147 = vshrl.u32 %v1146, 7
    %v1148 = vsub.s32 2, %v1147
    %v1149 = vrot.slane %v1136, %v1148
    %v1150 = vlaneseq
    %v1151 = vshrl.u32 %v1150, 7
    %v1152 = vsub.s32 3, %v1151
    %v1153 = vrot.slane %v1136, %v1152
    %v1154 = vlaneseq
    %v1155 = vshrl.u32 %v1154, 7
    %v1156 = vsub.s32 4, %v1155
    %v1157 = vrot.slane %v1136, %v1156
    %v1158 = vlaneseq
    %v1159 = vshrl.u32 %v1158, 7
    %v1160 = vsub.s32 5, %v1159
    %v1161 = vrot.slane %v1136, %v1160
    %v1162 = vlaneseq
    %v1163 = vshrl.u32 %v1162, 7
    %v1164 = vsub.s32 6, %v1163
    %v1165 = vrot.slane %v1136, %v1164
    %v1166 = vlaneseq
    %v1167 = vshrl.u32 %v1166, 7
    %v1168 = vsub.s32 7, %v1167
    %v1169 = vrot.slane %v1136, %v1168
    %v1178 = vmul.f32 %v884, %v1141
    %v1179 = vmul.f32 %v886, %v1145
    %v1180 = vmul.f32 %v966, %v1149
    %v1181 = vmul.f32 %v968, %v1153
    %v1182 = vmul.f32 %v1048, %v1157
    %v1183 = vmul.f32 %v1050, %v1161
    %v1184 = vmul.f32 %v1130, %v1165
    %v1185 = vmul.f32 %v1132, %v1169
    %v1186 = vld [vmem:[%s6] sm:$0xff]
    %v1188 = vlaneseq
    %v1189 = vshrl.u32 %v1188, 7
    %v1190 = vsub.s32 0, %v1189
    %v1191 = vrot.slane %v1186, %v1190
    %v1192 = vlaneseq
    %v1193 = vshrl.u32 %v1192, 7
    %v1194 = vsub.s32 1, %v1193
    %v1195 = vrot.slane %v1186, %v1194
    %v1196 = vlaneseq
    %v1197 = vshrl.u32 %v1196, 7
    %v1198 = vsub.s32 2, %v1197
    %v1199 = vrot.slane %v1186, %v1198
    %v1200 = vlaneseq
    %v1201 = vshrl.u32 %v1200, 7
    %v1202 = vsub.s32 3, %v1201
    %v1203 = vrot.slane %v1186, %v1202
    %v1204 = vlaneseq
    %v1205 = vshrl.u32 %v1204, 7
    %v1206 = vsub.s32 4, %v1205
    %v1207 = vrot.slane %v1186, %v1206
    %v1208 = vlaneseq
    %v1209 = vshrl.u32 %v1208, 7
    %v1210 = vsub.s32 5, %v1209
    %v1211 = vrot.slane %v1186, %v1210
    %v1212 = vlaneseq
    %v1213 = vshrl.u32 %v1212, 7
    %v1214 = vsub.s32 6, %v1213
    %v1215 = vrot.slane %v1186, %v1214
    %v1216 = vlaneseq
    %v1217 = vshrl.u32 %v1216, 7
    %v1218 = vsub.s32 7, %v1217
    %v1219 = vrot.slane %v1186, %v1218
    %v1228 = vadd.f32 %v1178, %v1191
    %v1229 = vadd.f32 %v1179, %v1195
    %v1230 = vadd.f32 %v1180, %v1199
    %v1231 = vadd.f32 %v1181, %v1203
    %v1232 = vadd.f32 %v1182, %v1207
    %v1233 = vadd.f32 %v1183, %v1211
    %v1234 = vadd.f32 %v1184, %v1215
    %v1235 = vadd.f32 %v1185, %v1219
    %v1236 = vmax.f32 %v1228, 0.0
    %v1237 = vmax.f32 %v1229, 0.0
    %v1238 = vmax.f32 %v1230, 0.0
    %v1239 = vmax.f32 %v1231, 0.0
    %v1240 = vmax.f32 %v1232, 0.0
    %v1241 = vmax.f32 %v1233, 0.0
    %v1242 = vmax.f32 %v1234, 0.0
    %v1243 = vmax.f32 %v1235, 0.0
    %v1244 = vld [vmem:[#allocation11] sm:$0xff]
    %v1245 = vld [vmem:[#allocation11 + $0x8] sm:$0xff]
    %v1246 = vld [vmem:[#allocation11 + $0x10] sm:$0xff]
    %v1247 = vld [vmem:[#allocation11 + $0x18] sm:$0xff]
    %v1248 = vld [vmem:[#allocation11 + $0x20] sm:$0xff]
    %v1249 = vld [vmem:[#allocation11 + $0x28] sm:$0xff]
    %v1250 = vld [vmem:[#allocation11 + $0x30] sm:$0xff]
    %v1251 = vld [vmem:[#allocation11 + $0x38] sm:$0xff]
    %v1252 = vld [vmem:[#allocation11 + $0x40] sm:$0xff]
    %v1253 = vld [vmem:[#allocation11 + $0x48] sm:$0xff]
    %v1254 = vld [vmem:[#allocation11 + $0x50] sm:$0xff]
    %v1255 = vld [vmem:[#allocation11 + $0x58] sm:$0xff]
    %v1256 = vld [vmem:[#allocation11 + $0x60] sm:$0xff]
    %v1257 = vld [vmem:[#allocation11 + $0x68] sm:$0xff]
    %v1258 = vld [vmem:[#allocation11 + $0x70] sm:$0xff]
    %v1259 = vld [vmem:[#allocation11 + $0x78] sm:$0xff]
    %v1260 = vld [vmem:[#allocation11 + $0x80] sm:$0xff]
    %v1261 = vld [vmem:[#allocation11 + $0x88] sm:$0xff]
    %v1262 = vld [vmem:[#allocation11 + $0x90] sm:$0xff]
    %v1263 = vld [vmem:[#allocation11 + $0x98] sm:$0xff]
    %v1264 = vld [vmem:[#allocation11 + $0xa0] sm:$0xff]
    %v1265 = vld [vmem:[#allocation11 + $0xa8] sm:$0xff]
    %v1266 = vld [vmem:[#allocation11 + $0xb0] sm:$0xff]
    %v1267 = vld [vmem:[#allocation11 + $0xb8] sm:$0xff]
    %v1268 = vld [vmem:[#allocation11 + $0xc0] sm:$0xff]
    %v1269 = vld [vmem:[#allocation11 + $0xc8] sm:$0xff]
    %v1270 = vld [vmem:[#allocation11 + $0xd0] sm:$0xff]
    %v1271 = vld [vmem:[#allocation11 + $0xd8] sm:$0xff]
    %v1272 = vld [vmem:[#allocation11 + $0xe0] sm:$0xff]
    %v1273 = vld [vmem:[#allocation11 + $0xe8] sm:$0xff]
    %v1274 = vld [vmem:[#allocation11 + $0xf0] sm:$0xff]
    %v1275 = vld [vmem:[#allocation11 + $0xf8] sm:$0xff]
    %v1276 = vld [vmem:[#allocation11 + $0x100] sm:$0xff]
    %v1277 = vld [vmem:[#allocation11 + $0x108] sm:$0xff]
    %v1278 = vld [vmem:[#allocation11 + $0x110] sm:$0xff]
    %v1279 = vld [vmem:[#allocation11 + $0x118] sm:$0xff]
    %v1280 = vld [vmem:[#allocation11 + $0x120] sm:$0xff]
    %v1281 = vld [vmem:[#allocation11 + $0x128] sm:$0xff]
    %v1282 = vld [vmem:[#allocation11 + $0x130] sm:$0xff]
    %v1283 = vld [vmem:[#allocation11 + $0x138] sm:$0xff]
    %v1284 = vld [vmem:[#allocation11 + $0x140] sm:$0xff]
    %v1285 = vld [vmem:[#allocation11 + $0x148] sm:$0xff]
    %v1286 = vld [vmem:[#allocation11 + $0x150] sm:$0xff]
    %v1287 = vld [vmem:[#allocation11 + $0x158] sm:$0xff]
    %v1288 = vld [vmem:[#allocation11 + $0x160] sm:$0xff]
    %v1289 = vld [vmem:[#allocation11 + $0x168] sm:$0xff]
    %v1290 = vld [vmem:[#allocation11 + $0x170] sm:$0xff]
    %v1291 = vld [vmem:[#allocation11 + $0x178] sm:$0xff]
    %v1292 = vld [vmem:[#allocation11 + $0x180] sm:$0xff]
    %v1293 = vld [vmem:[#allocation11 + $0x188] sm:$0xff]
    %v1294 = vld [vmem:[#allocation11 + $0x190] sm:$0xff]
    %v1295 = vld [vmem:[#allocation11 + $0x198] sm:$0xff]
    %v1296 = vld [vmem:[#allocation11 + $0x1a0] sm:$0xff]
    %v1297 = vld [vmem:[#allocation11 + $0x1a8] sm:$0xff]
    %v1298 = vld [vmem:[#allocation11 + $0x1b0] sm:$0xff]
    %v1299 = vld [vmem:[#allocation11 + $0x1b8] sm:$0xff]
    %v1300 = vld [vmem:[#allocation11 + $0x1c0] sm:$0xff]
    %v1301 = vld [vmem:[#allocation11 + $0x1c8] sm:$0xff]
    %v1302 = vld [vmem:[#allocation11 + $0x1d0] sm:$0xff]
    %v1303 = vld [vmem:[#allocation11 + $0x1d8] sm:$0xff]
    %v1304 = vld [vmem:[#allocation11 + $0x1e0] sm:$0xff]
    %v1305 = vld [vmem:[#allocation11 + $0x1e8] sm:$0xff]
    %v1306 = vld [vmem:[#allocation11 + $0x1f0] sm:$0xff]
    %v1307 = vld [vmem:[#allocation11 + $0x1f8] sm:$0xff]
    %v1308 = vld [vmem:[#allocation11 + $0x200] sm:$0xff]
    %v1309 = vld [vmem:[#allocation11 + $0x208] sm:$0xff]
    %v1310 = vld [vmem:[#allocation11 + $0x210] sm:$0xff]
    %v1311 = vld [vmem:[#allocation11 + $0x218] sm:$0xff]
    %v1312 = vld [vmem:[#allocation11 + $0x220] sm:$0xff]
    %v1313 = vld [vmem:[#allocation11 + $0x228] sm:$0xff]
    %v1314 = vld [vmem:[#allocation11 + $0x230] sm:$0xff]
    %v1315 = vld [vmem:[#allocation11 + $0x238] sm:$0xff]
    %v1316 = vld [vmem:[#allocation11 + $0x240] sm:$0xff]
    %v1317 = vld [vmem:[#allocation11 + $0x248] sm:$0xff]
    %v1318 = vld [vmem:[#allocation11 + $0x250] sm:$0xff]
    %v1319 = vld [vmem:[#allocation11 + $0x258] sm:$0xff]
    %v1320 = vld [vmem:[#allocation11 + $0x260] sm:$0xff]
    %v1321 = vld [vmem:[#allocation11 + $0x268] sm:$0xff]
    %v1322 = vld [vmem:[#allocation11 + $0x270] sm:$0xff]
    %v1323 = vld [vmem:[#allocation11 + $0x278] sm:$0xff]
    %v1324 = vld [vmem:[#allocation11 + $0x280] sm:$0xff]
    %v1325 = vld [vmem:[#allocation11 + $0x288] sm:$0xff]
    %v1326 = vld [vmem:[#allocation11 + $0x290] sm:$0xff]
    %v1327 = vld [vmem:[#allocation11 + $0x298] sm:$0xff]
    %v1328 = vld [vmem:[#allocation11 + $0x2a0] sm:$0xff]
    %v1329 = vld [vmem:[#allocation11 + $0x2a8] sm:$0xff]
    %v1330 = vld [vmem:[#allocation11 + $0x2b0] sm:$0xff]
    %v1331 = vld [vmem:[#allocation11 + $0x2b8] sm:$0xff]
    %v1332 = vld [vmem:[#allocation11 + $0x2c0] sm:$0xff]
    %v1333 = vld [vmem:[#allocation11 + $0x2c8] sm:$0xff]
    %v1334 = vld [vmem:[#allocation11 + $0x2d0] sm:$0xff]
    %v1335 = vld [vmem:[#allocation11 + $0x2d8] sm:$0xff]
    %v1336 = vld [vmem:[#allocation11 + $0x2e0] sm:$0xff]
    %v1337 = vld [vmem:[#allocation11 + $0x2e8] sm:$0xff]
    %v1338 = vld [vmem:[#allocation11 + $0x2f0] sm:$0xff]
    %v1339 = vld [vmem:[#allocation11 + $0x2f8] sm:$0xff]
    %v1340 = vld [vmem:[#allocation11 + $0x300] sm:$0xff]
    %v1341 = vld [vmem:[#allocation11 + $0x308] sm:$0xff]
    %v1342 = vld [vmem:[#allocation11 + $0x310] sm:$0xff]
    %v1343 = vld [vmem:[#allocation11 + $0x318] sm:$0xff]
    %v1344 = vld [vmem:[#allocation11 + $0x320] sm:$0xff]
    %v1345 = vld [vmem:[#allocation11 + $0x328] sm:$0xff]
    %v1346 = vld [vmem:[#allocation11 + $0x330] sm:$0xff]
    %v1347 = vld [vmem:[#allocation11 + $0x338] sm:$0xff]
    %v1348 = vld [vmem:[#allocation11 + $0x340] sm:$0xff]
    %v1349 = vld [vmem:[#allocation11 + $0x348] sm:$0xff]
    %v1350 = vld [vmem:[#allocation11 + $0x350] sm:$0xff]
    %v1351 = vld [vmem:[#allocation11 + $0x358] sm:$0xff]
    %v1352 = vld [vmem:[#allocation11 + $0x360] sm:$0xff]
    %v1353 = vld [vmem:[#allocation11 + $0x368] sm:$0xff]
    %v1354 = vld [vmem:[#allocation11 + $0x370] sm:$0xff]
    %v1355 = vld [vmem:[#allocation11 + $0x378] sm:$0xff]
    %v1356 = vld [vmem:[#allocation11 + $0x380] sm:$0xff]
    %v1357 = vld [vmem:[#allocation11 + $0x388] sm:$0xff]
    %v1358 = vld [vmem:[#allocation11 + $0x390] sm:$0xff]
    %v1359 = vld [vmem:[#allocation11 + $0x398] sm:$0xff]
    %v1360 = vld [vmem:[#allocation11 + $0x3a0] sm:$0xff]
    %v1361 = vld [vmem:[#allocation11 + $0x3a8] sm:$0xff]
    %v1362 = vld [vmem:[#allocation11 + $0x3b0] sm:$0xff]
    %v1363 = vld [vmem:[#allocation11 + $0x3b8] sm:$0xff]
    %v1364 = vld [vmem:[#allocation11 + $0x3c0] sm:$0xff]
    %v1365 = vld [vmem:[#allocation11 + $0x3c8] sm:$0xff]
    %v1366 = vld [vmem:[#allocation11 + $0x3d0] sm:$0xff]
    %v1367 = vld [vmem:[#allocation11 + $0x3d8] sm:$0xff]
    %v1368 = vld [vmem:[#allocation11 + $0x3e0] sm:$0xff]
    %v1369 = vld [vmem:[#allocation11 + $0x3e8] sm:$0xff]
    %v1370 = vld [vmem:[#allocation11 + $0x3f0] sm:$0xff]
    %v1371 = vld [vmem:[#allocation11 + $0x3f8] sm:$0xff]
    %v1372 = vld [vmem:[#allocation11 + $0x400] sm:$0xff]
    %v1373 = vld [vmem:[#allocation11 + $0x408] sm:$0xff]
    %v1374 = vld [vmem:[#allocation11 + $0x410] sm:$0xff]
    %v1375 = vld [vmem:[#allocation11 + $0x418] sm:$0xff]
    %v1376 = vld [vmem:[#allocation11 + $0x420] sm:$0xff]
    %v1377 = vld [vmem:[#allocation11 + $0x428] sm:$0xff]
    %v1378 = vld [vmem:[#allocation11 + $0x430] sm:$0xff]
    %v1379 = vld [vmem:[#allocation11 + $0x438] sm:$0xff]
    %v1380 = vld [vmem:[#allocation11 + $0x440] sm:$0xff]
    %v1381 = vld [vmem:[#allocation11 + $0x448] sm:$0xff]
    %v1382 = vld [vmem:[#allocation11 + $0x450] sm:$0xff]
    %v1383 = vld [vmem:[#allocation11 + $0x458] sm:$0xff]
    %v1384 = vld [vmem:[#allocation11 + $0x460] sm:$0xff]
    %v1385 = vld [vmem:[#allocation11 + $0x468] sm:$0xff]
    %v1386 = vld [vmem:[#allocation11 + $0x470] sm:$0xff]
    %v1387 = vld [vmem:[#allocation11 + $0x478] sm:$0xff]
    %v1388 = vld [vmem:[#allocation11 + $0x480] sm:$0xff]
    %v1389 = vld [vmem:[#allocation11 + $0x488] sm:$0xff]
    %v1390 = vld [vmem:[#allocation11 + $0x490] sm:$0xff]
    %v1391 = vld [vmem:[#allocation11 + $0x498] sm:$0xff]
    %v1392 = vld [vmem:[#allocation11 + $0x4a0] sm:$0xff]
    %v1393 = vld [vmem:[#allocation11 + $0x4a8] sm:$0xff]
    %v1394 = vld [vmem:[#allocation11 + $0x4b0] sm:$0xff]
    %v1395 = vld [vmem:[#allocation11 + $0x4b8] sm:$0xff]
    %v1396 = vld [vmem:[#allocation11 + $0x4c0] sm:$0xff]
    %v1397 = vld [vmem:[#allocation11 + $0x4c8] sm:$0xff]
    %v1398 = vld [vmem:[#allocation11 + $0x4d0] sm:$0xff]
    %v1399 = vld [vmem:[#allocation11 + $0x4d8] sm:$0xff]
    %v1400 = vld [vmem:[#allocation11 + $0x4e0] sm:$0xff]
    %v1401 = vld [vmem:[#allocation11 + $0x4e8] sm:$0xff]
    %v1402 = vld [vmem:[#allocation11 + $0x4f0] sm:$0xff]
    %v1403 = vld [vmem:[#allocation11 + $0x4f8] sm:$0xff]
    %v1404 = vld [vmem:[#allocation11 + $0x500] sm:$0xff]
    %v1405 = vld [vmem:[#allocation11 + $0x508] sm:$0xff]
    %v1406 = vld [vmem:[#allocation11 + $0x510] sm:$0xff]
    %v1407 = vld [vmem:[#allocation11 + $0x518] sm:$0xff]
    %v1408 = vld [vmem:[#allocation11 + $0x520] sm:$0xff]
    %v1409 = vld [vmem:[#allocation11 + $0x528] sm:$0xff]
    %v1410 = vld [vmem:[#allocation11 + $0x530] sm:$0xff]
    %v1411 = vld [vmem:[#allocation11 + $0x538] sm:$0xff]
    %v1412 = vld [vmem:[#allocation11 + $0x540] sm:$0xff]
    %v1413 = vld [vmem:[#allocation11 + $0x548] sm:$0xff]
    %v1414 = vld [vmem:[#allocation11 + $0x550] sm:$0xff]
    %v1415 = vld [vmem:[#allocation11 + $0x558] sm:$0xff]
    %v1416 = vld [vmem:[#allocation11 + $0x560] sm:$0xff]
    %v1417 = vld [vmem:[#allocation11 + $0x568] sm:$0xff]
    %v1418 = vld [vmem:[#allocation11 + $0x570] sm:$0xff]
    %v1419 = vld [vmem:[#allocation11 + $0x578] sm:$0xff]
    %v1420 = vld [vmem:[#allocation11 + $0x580] sm:$0xff]
    %v1421 = vld [vmem:[#allocation11 + $0x588] sm:$0xff]
    %v1422 = vld [vmem:[#allocation11 + $0x590] sm:$0xff]
    %v1423 = vld [vmem:[#allocation11 + $0x598] sm:$0xff]
    %v1424 = vld [vmem:[#allocation11 + $0x5a0] sm:$0xff]
    %v1425 = vld [vmem:[#allocation11 + $0x5a8] sm:$0xff]
    %v1426 = vld [vmem:[#allocation11 + $0x5b0] sm:$0xff]
    %v1427 = vld [vmem:[#allocation11 + $0x5b8] sm:$0xff]
    %v1428 = vld [vmem:[#allocation11 + $0x5c0] sm:$0xff]
    %v1429 = vld [vmem:[#allocation11 + $0x5c8] sm:$0xff]
    %v1430 = vld [vmem:[#allocation11 + $0x5d0] sm:$0xff]
    %v1431 = vld [vmem:[#allocation11 + $0x5d8] sm:$0xff]
    %v1432 = vld [vmem:[#allocation11 + $0x5e0] sm:$0xff]
    %v1433 = vld [vmem:[#allocation11 + $0x5e8] sm:$0xff]
    %v1434 = vld [vmem:[#allocation11 + $0x5f0] sm:$0xff]
    %v1435 = vld [vmem:[#allocation11 + $0x5f8] sm:$0xff]
    %v1436 = vld [vmem:[#allocation11 + $0x600] sm:$0xff]
    %v1437 = vld [vmem:[#allocation11 + $0x608] sm:$0xff]
    %v1438 = vld [vmem:[#allocation11 + $0x610] sm:$0xff]
    %v1439 = vld [vmem:[#allocation11 + $0x618] sm:$0xff]
    %v1440 = vld [vmem:[#allocation11 + $0x620] sm:$0xff]
    %v1441 = vld [vmem:[#allocation11 + $0x628] sm:$0xff]
    %v1442 = vld [vmem:[#allocation11 + $0x630] sm:$0xff]
    %v1443 = vld [vmem:[#allocation11 + $0x638] sm:$0xff]
    %v1444 = vld [vmem:[#allocation11 + $0x640] sm:$0xff]
    %v1445 = vld [vmem:[#allocation11 + $0x648] sm:$0xff]
    %v1446 = vld [vmem:[#allocation11 + $0x650] sm:$0xff]
    %v1447 = vld [vmem:[#allocation11 + $0x658] sm:$0xff]
    %v1448 = vld [vmem:[#allocation11 + $0x660] sm:$0xff]
    %v1449 = vld [vmem:[#allocation11 + $0x668] sm:$0xff]
    %v1450 = vld [vmem:[#allocation11 + $0x670] sm:$0xff]
    %v1451 = vld [vmem:[#allocation11 + $0x678] sm:$0xff]
    %v1452 = vld [vmem:[#allocation11 + $0x680] sm:$0xff]
    %v1453 = vld [vmem:[#allocation11 + $0x688] sm:$0xff]
    %v1454 = vld [vmem:[#allocation11 + $0x690] sm:$0xff]
    %v1455 = vld [vmem:[#allocation11 + $0x698] sm:$0xff]
    %v1456 = vld [vmem:[#allocation11 + $0x6a0] sm:$0xff]
    %v1457 = vld [vmem:[#allocation11 + $0x6a8] sm:$0xff]
    %v1458 = vld [vmem:[#allocation11 + $0x6b0] sm:$0xff]
    %v1459 = vld [vmem:[#allocation11 + $0x6b8] sm:$0xff]
    %v1460 = vld [vmem:[#allocation11 + $0x6c0] sm:$0xff]
    %v1461 = vld [vmem:[#allocation11 + $0x6c8] sm:$0xff]
    %v1462 = vld [vmem:[#allocation11 + $0x6d0] sm:$0xff]
    %v1463 = vld [vmem:[#allocation11 + $0x6d8] sm:$0xff]
    %v1464 = vld [vmem:[#allocation11 + $0x6e0] sm:$0xff]
    %v1465 = vld [vmem:[#allocation11 + $0x6e8] sm:$0xff]
    %v1466 = vld [vmem:[#allocation11 + $0x6f0] sm:$0xff]
    %v1467 = vld [vmem:[#allocation11 + $0x6f8] sm:$0xff]
    %v1468 = vld [vmem:[#allocation11 + $0x700] sm:$0xff]
    %v1469 = vld [vmem:[#allocation11 + $0x708] sm:$0xff]
    %v1470 = vld [vmem:[#allocation11 + $0x710] sm:$0xff]
    %v1471 = vld [vmem:[#allocation11 + $0x718] sm:$0xff]
    %v1472 = vld [vmem:[#allocation11 + $0x720] sm:$0xff]
    %v1473 = vld [vmem:[#allocation11 + $0x728] sm:$0xff]
    %v1474 = vld [vmem:[#allocation11 + $0x730] sm:$0xff]
    %v1475 = vld [vmem:[#allocation11 + $0x738] sm:$0xff]
    %v1476 = vld [vmem:[#allocation11 + $0x740] sm:$0xff]
    %v1477 = vld [vmem:[#allocation11 + $0x748] sm:$0xff]
    %v1478 = vld [vmem:[#allocation11 + $0x750] sm:$0xff]
    %v1479 = vld [vmem:[#allocation11 + $0x758] sm:$0xff]
    %v1480 = vld [vmem:[#allocation11 + $0x760] sm:$0xff]
    %v1481 = vld [vmem:[#allocation11 + $0x768] sm:$0xff]
    %v1482 = vld [vmem:[#allocation11 + $0x770] sm:$0xff]
    %v1483 = vld [vmem:[#allocation11 + $0x778] sm:$0xff]
    %v1484 = vld [vmem:[#allocation11 + $0x780] sm:$0xff]
    %v1485 = vld [vmem:[#allocation11 + $0x788] sm:$0xff]
    %v1486 = vld [vmem:[#allocation11 + $0x790] sm:$0xff]
    %v1487 = vld [vmem:[#allocation11 + $0x798] sm:$0xff]
    %v1488 = vld [vmem:[#allocation11 + $0x7a0] sm:$0xff]
    %v1489 = vld [vmem:[#allocation11 + $0x7a8] sm:$0xff]
    %v1490 = vld [vmem:[#allocation11 + $0x7b0] sm:$0xff]
    %v1491 = vld [vmem:[#allocation11 + $0x7b8] sm:$0xff]
    %v1492 = vld [vmem:[#allocation11 + $0x7c0] sm:$0xff]
    %v1493 = vld [vmem:[#allocation11 + $0x7c8] sm:$0xff]
    %v1494 = vld [vmem:[#allocation11 + $0x7d0] sm:$0xff]
    %v1495 = vld [vmem:[#allocation11 + $0x7d8] sm:$0xff]
    %v1496 = vld [vmem:[#allocation11 + $0x7e0] sm:$0xff]
    %v1497 = vld [vmem:[#allocation11 + $0x7e8] sm:$0xff]
    %v1498 = vld [vmem:[#allocation11 + $0x7f0] sm:$0xff]
    %v1499 = vld [vmem:[#allocation11 + $0x7f8] sm:$0xff]
    %v1500 = vunpack.c.l.s8.bf16 %v1244
    %v1501 = vunpack.c.l.s8.bf16 %v1245
    %v1502 = vunpack.c.l.s8.bf16 %v1246
    %v1503 = vunpack.c.l.s8.bf16 %v1247
    %v1504 = vunpack.c.l.s8.bf16 %v1248
    %v1505 = vunpack.c.l.s8.bf16 %v1249
    %v1506 = vunpack.c.l.s8.bf16 %v1250
    %v1507 = vunpack.c.l.s8.bf16 %v1251
    %v1508 = vunpack.c.h.s8.bf16 %v1244
    %v1509 = vunpack.c.h.s8.bf16 %v1245
    %v1510 = vunpack.c.h.s8.bf16 %v1246
    %v1511 = vunpack.c.h.s8.bf16 %v1247
    %v1512 = vunpack.c.h.s8.bf16 %v1248
    %v1513 = vunpack.c.h.s8.bf16 %v1249
    %v1514 = vunpack.c.h.s8.bf16 %v1250
    %v1515 = vunpack.c.h.s8.bf16 %v1251
    %v1516 = vunpack.c.l.s8.bf16 %v1252
    %v1517 = vunpack.c.l.s8.bf16 %v1253
    %v1518 = vunpack.c.l.s8.bf16 %v1254
    %v1519 = vunpack.c.l.s8.bf16 %v1255
    %v1520 = vunpack.c.l.s8.bf16 %v1256
    %v1521 = vunpack.c.l.s8.bf16 %v1257
    %v1522 = vunpack.c.l.s8.bf16 %v1258
    %v1523 = vunpack.c.l.s8.bf16 %v1259
    %v1524 = vunpack.c.h.s8.bf16 %v1252
    %v1525 = vunpack.c.h.s8.bf16 %v1253
    %v1526 = vunpack.c.h.s8.bf16 %v1254
    %v1527 = vunpack.c.h.s8.bf16 %v1255
    %v1528 = vunpack.c.h.s8.bf16 %v1256
    %v1529 = vunpack.c.h.s8.bf16 %v1257
    %v1530 = vunpack.c.h.s8.bf16 %v1258
    %v1531 = vunpack.c.h.s8.bf16 %v1259
    %v1532 = vunpack.c.l.s8.bf16 %v1260
    %v1533 = vunpack.c.l.s8.bf16 %v1261
    %v1534 = vunpack.c.l.s8.bf16 %v1262
    %v1535 = vunpack.c.l.s8.bf16 %v1263
    %v1536 = vunpack.c.l.s8.bf16 %v1264
    %v1537 = vunpack.c.l.s8.bf16 %v1265
    %v1538 = vunpack.c.l.s8.bf16 %v1266
    %v1539 = vunpack.c.l.s8.bf16 %v1267
    %v1540 = vunpack.c.h.s8.bf16 %v1260
    %v1541 = vunpack.c.h.s8.bf16 %v1261
    %v1542 = vunpack.c.h.s8.bf16 %v1262
    %v1543 = vunpack.c.h.s8.bf16 %v1263
    %v1544 = vunpack.c.h.s8.bf16 %v1264
    %v1545 = vunpack.c.h.s8.bf16 %v1265
    %v1546 = vunpack.c.h.s8.bf16 %v1266
    %v1547 = vunpack.c.h.s8.bf16 %v1267
    %v1548 = vunpack.c.l.s8.bf16 %v1268
    %v1549 = vunpack.c.l.s8.bf16 %v1269
    %v1550 = vunpack.c.l.s8.bf16 %v1270
    %v1551 = vunpack.c.l.s8.bf16 %v1271
    %v1552 = vunpack.c.l.s8.bf16 %v1272
    %v1553 = vunpack.c.l.s8.bf16 %v1273
    %v1554 = vunpack.c.l.s8.bf16 %v1274
    %v1555 = vunpack.c.l.s8.bf16 %v1275
    %v1556 = vunpack.c.h.s8.bf16 %v1268
    %v1557 = vunpack.c.h.s8.bf16 %v1269
    %v1558 = vunpack.c.h.s8.bf16 %v1270
    %v1559 = vunpack.c.h.s8.bf16 %v1271
    %v1560 = vunpack.c.h.s8.bf16 %v1272
    %v1561 = vunpack.c.h.s8.bf16 %v1273
    %v1562 = vunpack.c.h.s8.bf16 %v1274
    %v1563 = vunpack.c.h.s8.bf16 %v1275
    %v1564 = vunpack.c.l.s8.bf16 %v1276
    %v1565 = vunpack.c.l.s8.bf16 %v1277
    %v1566 = vunpack.c.l.s8.bf16 %v1278
    %v1567 = vunpack.c.l.s8.bf16 %v1279
    %v1568 = vunpack.c.l.s8.bf16 %v1280
    %v1569 = vunpack.c.l.s8.bf16 %v1281
    %v1570 = vunpack.c.l.s8.bf16 %v1282
    %v1571 = vunpack.c.l.s8.bf16 %v1283
    %v1572 = vunpack.c.h.s8.bf16 %v1276
    %v1573 = vunpack.c.h.s8.bf16 %v1277
    %v1574 = vunpack.c.h.s8.bf16 %v1278
    %v1575 = vunpack.c.h.s8.bf16 %v1279
    %v1576 = vunpack.c.h.s8.bf16 %v1280
    %v1577 = vunpack.c.h.s8.bf16 %v1281
    %v1578 = vunpack.c.h.s8.bf16 %v1282
    %v1579 = vunpack.c.h.s8.bf16 %v1283
    %v1580 = vunpack.c.l.s8.bf16 %v1284
    %v1581 = vunpack.c.l.s8.bf16 %v1285
    %v1582 = vunpack.c.l.s8.bf16 %v1286
    %v1583 = vunpack.c.l.s8.bf16 %v1287
    %v1584 = vunpack.c.l.s8.bf16 %v1288
    %v1585 = vunpack.c.l.s8.bf16 %v1289
    %v1586 = vunpack.c.l.s8.bf16 %v1290
    %v1587 = vunpack.c.l.s8.bf16 %v1291
    %v1588 = vunpack.c.h.s8.bf16 %v1284
    %v1589 = vunpack.c.h.s8.bf16 %v1285
    %v1590 = vunpack.c.h.s8.bf16 %v1286
    %v1591 = vunpack.c.h.s8.bf16 %v1287
    %v1592 = vunpack.c.h.s8.bf16 %v1288
    %v1593 = vunpack.c.h.s8.bf16 %v1289
    %v1594 = vunpack.c.h.s8.bf16 %v1290
    %v1595 = vunpack.c.h.s8.bf16 %v1291
    %v1596 = vunpack.c.l.s8.bf16 %v1292
    %v1597 = vunpack.c.l.s8.bf16 %v1293
    %v1598 = vunpack.c.l.s8.bf16 %v1294
    %v1599 = vunpack.c.l.s8.bf16 %v1295
    %v1600 = vunpack.c.l.s8.bf16 %v1296
    %v1601 = vunpack.c.l.s8.bf16 %v1297
    %v1602 = vunpack.c.l.s8.bf16 %v1298
    %v1603 = vunpack.c.l.s8.bf16 %v1299
    %v1604 = vunpack.c.h.s8.bf16 %v1292
    %v1605 = vunpack.c.h.s8.bf16 %v1293
    %v1606 = vunpack.c.h.s8.bf16 %v1294
    %v1607 = vunpack.c.h.s8.bf16 %v1295
    %v1608 = vunpack.c.h.s8.bf16 %v1296
    %v1609 = vunpack.c.h.s8.bf16 %v1297
    %v1610 = vunpack.c.h.s8.bf16 %v1298
    %v1611 = vunpack.c.h.s8.bf16 %v1299
    %v1612 = vunpack.c.l.s8.bf16 %v1300
    %v1613 = vunpack.c.l.s8.bf16 %v1301
    %v1614 = vunpack.c.l.s8.bf16 %v1302
    %v1615 = vunpack.c.l.s8.bf16 %v1303
    %v1616 = vunpack.c.l.s8.bf16 %v1304
    %v1617 = vunpack.c.l.s8.bf16 %v1305
    %v1618 = vunpack.c.l.s8.bf16 %v1306
    %v1619 = vunpack.c.l.s8.bf16 %v1307
    %v1620 = vunpack.c.h.s8.bf16 %v1300
    %v1621 = vunpack.c.h.s8.bf16 %v1301
    %v1622 = vunpack.c.h.s8.bf16 %v1302
    %v1623 = vunpack.c.h.s8.bf16 %v1303
    %v1624 = vunpack.c.h.s8.bf16 %v1304
    %v1625 = vunpack.c.h.s8.bf16 %v1305
    %v1626 = vunpack.c.h.s8.bf16 %v1306
    %v1627 = vunpack.c.h.s8.bf16 %v1307
    %v1628 = vunpack.c.l.s8.bf16 %v1308
    %v1629 = vunpack.c.l.s8.bf16 %v1309
    %v1630 = vunpack.c.l.s8.bf16 %v1310
    %v1631 = vunpack.c.l.s8.bf16 %v1311
    %v1632 = vunpack.c.l.s8.bf16 %v1312
    %v1633 = vunpack.c.l.s8.bf16 %v1313
    %v1634 = vunpack.c.l.s8.bf16 %v1314
    %v1635 = vunpack.c.l.s8.bf16 %v1315
    %v1636 = vunpack.c.h.s8.bf16 %v1308
    %v1637 = vunpack.c.h.s8.bf16 %v1309
    %v1638 = vunpack.c.h.s8.bf16 %v1310
    %v1639 = vunpack.c.h.s8.bf16 %v1311
    %v1640 = vunpack.c.h.s8.bf16 %v1312
    %v1641 = vunpack.c.h.s8.bf16 %v1313
    %v1642 = vunpack.c.h.s8.bf16 %v1314
    %v1643 = vunpack.c.h.s8.bf16 %v1315
    %v1644 = vunpack.c.l.s8.bf16 %v1316
    %v1645 = vunpack.c.l.s8.bf16 %v1317
    %v1646 = vunpack.c.l.s8.bf16 %v1318
    %v1647 = vunpack.c.l.s8.bf16 %v1319
    %v1648 = vunpack.c.l.s8.bf16 %v1320
    %v1649 = vunpack.c.l.s8.bf16 %v1321
    %v1650 = vunpack.c.l.s8.bf16 %v1322
    %v1651 = vunpack.c.l.s8.bf16 %v1323
    %v1652 = vunpack.c.h.s8.bf16 %v1316
    %v1653 = vunpack.c.h.s8.bf16 %v1317
    %v1654 = vunpack.c.h.s8.bf16 %v1318
    %v1655 = vunpack.c.h.s8.bf16 %v1319
    %v1656 = vunpack.c.h.s8.bf16 %v1320
    %v1657 = vunpack.c.h.s8.bf16 %v1321
    %v1658 = vunpack.c.h.s8.bf16 %v1322
    %v1659 = vunpack.c.h.s8.bf16 %v1323
    %v1660 = vunpack.c.l.s8.bf16 %v1324
    %v1661 = vunpack.c.l.s8.bf16 %v1325
    %v1662 = vunpack.c.l.s8.bf16 %v1326
    %v1663 = vunpack.c.l.s8.bf16 %v1327
    %v1664 = vunpack.c.l.s8.bf16 %v1328
    %v1665 = vunpack.c.l.s8.bf16 %v1329
    %v1666 = vunpack.c.l.s8.bf16 %v1330
    %v1667 = vunpack.c.l.s8.bf16 %v1331
    %v1668 = vunpack.c.h.s8.bf16 %v1324
    %v1669 = vunpack.c.h.s8.bf16 %v1325
    %v1670 = vunpack.c.h.s8.bf16 %v1326
    %v1671 = vunpack.c.h.s8.bf16 %v1327
    %v1672 = vunpack.c.h.s8.bf16 %v1328
    %v1673 = vunpack.c.h.s8.bf16 %v1329
    %v1674 = vunpack.c.h.s8.bf16 %v1330
    %v1675 = vunpack.c.h.s8.bf16 %v1331
    %v1676 = vunpack.c.l.s8.bf16 %v1332
    %v1677 = vunpack.c.l.s8.bf16 %v1333
    %v1678 = vunpack.c.l.s8.bf16 %v1334
    %v1679 = vunpack.c.l.s8.bf16 %v1335
    %v1680 = vunpack.c.l.s8.bf16 %v1336
    %v1681 = vunpack.c.l.s8.bf16 %v1337
    %v1682 = vunpack.c.l.s8.bf16 %v1338
    %v1683 = vunpack.c.l.s8.bf16 %v1339
    %v1684 = vunpack.c.h.s8.bf16 %v1332
    %v1685 = vunpack.c.h.s8.bf16 %v1333
    %v1686 = vunpack.c.h.s8.bf16 %v1334
    %v1687 = vunpack.c.h.s8.bf16 %v1335
    %v1688 = vunpack.c.h.s8.bf16 %v1336
    %v1689 = vunpack.c.h.s8.bf16 %v1337
    %v1690 = vunpack.c.h.s8.bf16 %v1338
    %v1691 = vunpack.c.h.s8.bf16 %v1339
    %v1692 = vunpack.c.l.s8.bf16 %v1340
    %v1693 = vunpack.c.l.s8.bf16 %v1341
    %v1694 = vunpack.c.l.s8.bf16 %v1342
    %v1695 = vunpack.c.l.s8.bf16 %v1343
    %v1696 = vunpack.c.l.s8.bf16 %v1344
    %v1697 = vunpack.c.l.s8.bf16 %v1345
    %v1698 = vunpack.c.l.s8.bf16 %v1346
    %v1699 = vunpack.c.l.s8.bf16 %v1347
    %v1700 = vunpack.c.h.s8.bf16 %v1340
    %v1701 = vunpack.c.h.s8.bf16 %v1341
    %v1702 = vunpack.c.h.s8.bf16 %v1342
    %v1703 = vunpack.c.h.s8.bf16 %v1343
    %v1704 = vunpack.c.h.s8.bf16 %v1344
    %v1705 = vunpack.c.h.s8.bf16 %v1345
    %v1706 = vunpack.c.h.s8.bf16 %v1346
    %v1707 = vunpack.c.h.s8.bf16 %v1347
    %v1708 = vunpack.c.l.s8.bf16 %v1348
    %v1709 = vunpack.c.l.s8.bf16 %v1349
    %v1710 = vunpack.c.l.s8.bf16 %v1350
    %v1711 = vunpack.c.l.s8.bf16 %v1351
    %v1712 = vunpack.c.l.s8.bf16 %v1352
    %v1713 = vunpack.c.l.s8.bf16 %v1353
    %v1714 = vunpack.c.l.s8.bf16 %v1354
    %v1715 = vunpack.c.l.s8.bf16 %v1355
    %v1716 = vunpack.c.h.s8.bf16 %v1348
    %v1717 = vunpack.c.h.s8.bf16 %v1349
    %v1718 = vunpack.c.h.s8.bf16 %v1350
    %v1719 = vunpack.c.h.s8.bf16 %v1351
    %v1720 = vunpack.c.h.s8.bf16 %v1352
    %v1721 = vunpack.c.h.s8.bf16 %v1353
    %v1722 = vunpack.c.h.s8.bf16 %v1354
    %v1723 = vunpack.c.h.s8.bf16 %v1355
    %v1724 = vunpack.c.l.s8.bf16 %v1356
    %v1725 = vunpack.c.l.s8.bf16 %v1357
    %v1726 = vunpack.c.l.s8.bf16 %v1358
    %v1727 = vunpack.c.l.s8.bf16 %v1359
    %v1728 = vunpack.c.l.s8.bf16 %v1360
    %v1729 = vunpack.c.l.s8.bf16 %v1361
    %v1730 = vunpack.c.l.s8.bf16 %v1362
    %v1731 = vunpack.c.l.s8.bf16 %v1363
    %v1732 = vunpack.c.h.s8.bf16 %v1356
    %v1733 = vunpack.c.h.s8.bf16 %v1357
    %v1734 = vunpack.c.h.s8.bf16 %v1358
    %v1735 = vunpack.c.h.s8.bf16 %v1359
    %v1736 = vunpack.c.h.s8.bf16 %v1360
    %v1737 = vunpack.c.h.s8.bf16 %v1361
    %v1738 = vunpack.c.h.s8.bf16 %v1362
    %v1739 = vunpack.c.h.s8.bf16 %v1363
    %v1740 = vunpack.c.l.s8.bf16 %v1364
    %v1741 = vunpack.c.l.s8.bf16 %v1365
    %v1742 = vunpack.c.l.s8.bf16 %v1366
    %v1743 = vunpack.c.l.s8.bf16 %v1367
    %v1744 = vunpack.c.l.s8.bf16 %v1368
    %v1745 = vunpack.c.l.s8.bf16 %v1369
    %v1746 = vunpack.c.l.s8.bf16 %v1370
    %v1747 = vunpack.c.l.s8.bf16 %v1371
    %v1748 = vunpack.c.h.s8.bf16 %v1364
    %v1749 = vunpack.c.h.s8.bf16 %v1365
    %v1750 = vunpack.c.h.s8.bf16 %v1366
    %v1751 = vunpack.c.h.s8.bf16 %v1367
    %v1752 = vunpack.c.h.s8.bf16 %v1368
    %v1753 = vunpack.c.h.s8.bf16 %v1369
    %v1754 = vunpack.c.h.s8.bf16 %v1370
    %v1755 = vunpack.c.h.s8.bf16 %v1371
    %v1756 = vunpack.c.l.s8.bf16 %v1372
    %v1757 = vunpack.c.l.s8.bf16 %v1373
    %v1758 = vunpack.c.l.s8.bf16 %v1374
    %v1759 = vunpack.c.l.s8.bf16 %v1375
    %v1760 = vunpack.c.l.s8.bf16 %v1376
    %v1761 = vunpack.c.l.s8.bf16 %v1377
    %v1762 = vunpack.c.l.s8.bf16 %v1378
    %v1763 = vunpack.c.l.s8.bf16 %v1379
    %v1764 = vunpack.c.h.s8.bf16 %v1372
    %v1765 = vunpack.c.h.s8.bf16 %v1373
    %v1766 = vunpack.c.h.s8.bf16 %v1374
    %v1767 = vunpack.c.h.s8.bf16 %v1375
    %v1768 = vunpack.c.h.s8.bf16 %v1376
    %v1769 = vunpack.c.h.s8.bf16 %v1377
    %v1770 = vunpack.c.h.s8.bf16 %v1378
    %v1771 = vunpack.c.h.s8.bf16 %v1379
    %v1772 = vunpack.c.l.s8.bf16 %v1380
    %v1773 = vunpack.c.l.s8.bf16 %v1381
    %v1774 = vunpack.c.l.s8.bf16 %v1382
    %v1775 = vunpack.c.l.s8.bf16 %v1383
    %v1776 = vunpack.c.l.s8.bf16 %v1384
    %v1777 = vunpack.c.l.s8.bf16 %v1385
    %v1778 = vunpack.c.l.s8.bf16 %v1386
    %v1779 = vunpack.c.l.s8.bf16 %v1387
    %v1780 = vunpack.c.h.s8.bf16 %v1380
    %v1781 = vunpack.c.h.s8.bf16 %v1381
    %v1782 = vunpack.c.h.s8.bf16 %v1382
    %v1783 = vunpack.c.h.s8.bf16 %v1383
    %v1784 = vunpack.c.h.s8.bf16 %v1384
    %v1785 = vunpack.c.h.s8.bf16 %v1385
    %v1786 = vunpack.c.h.s8.bf16 %v1386
    %v1787 = vunpack.c.h.s8.bf16 %v1387
    %v1788 = vunpack.c.l.s8.bf16 %v1388
    %v1789 = vunpack.c.l.s8.bf16 %v1389
    %v1790 = vunpack.c.l.s8.bf16 %v1390
    %v1791 = vunpack.c.l.s8.bf16 %v1391
    %v1792 = vunpack.c.l.s8.bf16 %v1392
    %v1793 = vunpack.c.l.s8.bf16 %v1393
    %v1794 = vunpack.c.l.s8.bf16 %v1394
    %v1795 = vunpack.c.l.s8.bf16 %v1395
    %v1796 = vunpack.c.h.s8.bf16 %v1388
    %v1797 = vunpack.c.h.s8.bf16 %v1389
    %v1798 = vunpack.c.h.s8.bf16 %v1390
    %v1799 = vunpack.c.h.s8.bf16 %v1391
    %v1800 = vunpack.c.h.s8.bf16 %v1392
    %v1801 = vunpack.c.h.s8.bf16 %v1393
    %v1802 = vunpack.c.h.s8.bf16 %v1394
    %v1803 = vunpack.c.h.s8.bf16 %v1395
    %v1804 = vunpack.c.l.s8.bf16 %v1396
    %v1805 = vunpack.c.l.s8.bf16 %v1397
    %v1806 = vunpack.c.l.s8.bf16 %v1398
    %v1807 = vunpack.c.l.s8.bf16 %v1399
    %v1808 = vunpack.c.l.s8.bf16 %v1400
    %v1809 = vunpack.c.l.s8.bf16 %v1401
    %v1810 = vunpack.c.l.s8.bf16 %v1402
    %v1811 = vunpack.c.l.s8.bf16 %v1403
    %v1812 = vunpack.c.h.s8.bf16 %v1396
    %v1813 = vunpack.c.h.s8.bf16 %v1397
    %v1814 = vunpack.c.h.s8.bf16 %v1398
    %v1815 = vunpack.c.h.s8.bf16 %v1399
    %v1816 = vunpack.c.h.s8.bf16 %v1400
    %v1817 = vunpack.c.h.s8.bf16 %v1401
    %v1818 = vunpack.c.h.s8.bf16 %v1402
    %v1819 = vunpack.c.h.s8.bf16 %v1403
    %v1820 = vunpack.c.l.s8.bf16 %v1404
    %v1821 = vunpack.c.l.s8.bf16 %v1405
    %v1822 = vunpack.c.l.s8.bf16 %v1406
    %v1823 = vunpack.c.l.s8.bf16 %v1407
    %v1824 = vunpack.c.l.s8.bf16 %v1408
    %v1825 = vunpack.c.l.s8.bf16 %v1409
    %v1826 = vunpack.c.l.s8.bf16 %v1410
    %v1827 = vunpack.c.l.s8.bf16 %v1411
    %v1828 = vunpack.c.h.s8.bf16 %v1404
    %v1829 = vunpack.c.h.s8.bf16 %v1405
    %v1830 = vunpack.c.h.s8.bf16 %v1406
    %v1831 = vunpack.c.h.s8.bf16 %v1407
    %v1832 = vunpack.c.h.s8.bf16 %v1408
    %v1833 = vunpack.c.h.s8.bf16 %v1409
    %v1834 = vunpack.c.h.s8.bf16 %v1410
    %v1835 = vunpack.c.h.s8.bf16 %v1411
    %v1836 = vunpack.c.l.s8.bf16 %v1412
    %v1837 = vunpack.c.l.s8.bf16 %v1413
    %v1838 = vunpack.c.l.s8.bf16 %v1414
    %v1839 = vunpack.c.l.s8.bf16 %v1415
    %v1840 = vunpack.c.l.s8.bf16 %v1416
    %v1841 = vunpack.c.l.s8.bf16 %v1417
    %v1842 = vunpack.c.l.s8.bf16 %v1418
    %v1843 = vunpack.c.l.s8.bf16 %v1419
    %v1844 = vunpack.c.h.s8.bf16 %v1412
    %v1845 = vunpack.c.h.s8.bf16 %v1413
    %v1846 = vunpack.c.h.s8.bf16 %v1414
    %v1847 = vunpack.c.h.s8.bf16 %v1415
    %v1848 = vunpack.c.h.s8.bf16 %v1416
    %v1849 = vunpack.c.h.s8.bf16 %v1417
    %v1850 = vunpack.c.h.s8.bf16 %v1418
    %v1851 = vunpack.c.h.s8.bf16 %v1419
    %v1852 = vunpack.c.l.s8.bf16 %v1420
    %v1853 = vunpack.c.l.s8.bf16 %v1421
    %v1854 = vunpack.c.l.s8.bf16 %v1422
    %v1855 = vunpack.c.l.s8.bf16 %v1423
    %v1856 = vunpack.c.l.s8.bf16 %v1424
    %v1857 = vunpack.c.l.s8.bf16 %v1425
    %v1858 = vunpack.c.l.s8.bf16 %v1426
    %v1859 = vunpack.c.l.s8.bf16 %v1427
    %v1860 = vunpack.c.h.s8.bf16 %v1420
    %v1861 = vunpack.c.h.s8.bf16 %v1421
    %v1862 = vunpack.c.h.s8.bf16 %v1422
    %v1863 = vunpack.c.h.s8.bf16 %v1423
    %v1864 = vunpack.c.h.s8.bf16 %v1424
    %v1865 = vunpack.c.h.s8.bf16 %v1425
    %v1866 = vunpack.c.h.s8.bf16 %v1426
    %v1867 = vunpack.c.h.s8.bf16 %v1427
    %v1868 = vunpack.c.l.s8.bf16 %v1428
    %v1869 = vunpack.c.l.s8.bf16 %v1429
    %v1870 = vunpack.c.l.s8.bf16 %v1430
    %v1871 = vunpack.c.l.s8.bf16 %v1431
    %v1872 = vunpack.c.l.s8.bf16 %v1432
    %v1873 = vunpack.c.l.s8.bf16 %v1433
    %v1874 = vunpack.c.l.s8.bf16 %v1434
    %v1875 = vunpack.c.l.s8.bf16 %v1435
    %v1876 = vunpack.c.h.s8.bf16 %v1428
    %v1877 = vunpack.c.h.s8.bf16 %v1429
    %v1878 = vunpack.c.h.s8.bf16 %v1430
    %v1879 = vunpack.c.h.s8.bf16 %v1431
    %v1880 = vunpack.c.h.s8.bf16 %v1432
    %v1881 = vunpack.c.h.s8.bf16 %v1433
    %v1882 = vunpack.c.h.s8.bf16 %v1434
    %v1883 = vunpack.c.h.s8.bf16 %v1435
    %v1884 = vunpack.c.l.s8.bf16 %v1436
    %v1885 = vunpack.c.l.s8.bf16 %v1437
    %v1886 = vunpack.c.l.s8.bf16 %v1438
    %v1887 = vunpack.c.l.s8.bf16 %v1439
    %v1888 = vunpack.c.l.s8.bf16 %v1440
    %v1889 = vunpack.c.l.s8.bf16 %v1441
    %v1890 = vunpack.c.l.s8.bf16 %v1442
    %v1891 = vunpack.c.l.s8.bf16 %v1443
    %v1892 = vunpack.c.h.s8.bf16 %v1436
    %v1893 = vunpack.c.h.s8.bf16 %v1437
    %v1894 = vunpack.c.h.s8.bf16 %v1438
    %v1895 = vunpack.c.h.s8.bf16 %v1439
    %v1896 = vunpack.c.h.s8.bf16 %v1440
    %v1897 = vunpack.c.h.s8.bf16 %v1441
    %v1898 = vunpack.c.h.s8.bf16 %v1442
    %v1899 = vunpack.c.h.s8.bf16 %v1443
    %v1900 = vunpack.c.l.s8.bf16 %v1444
    %v1901 = vunpack.c.l.s8.bf16 %v1445
    %v1902 = vunpack.c.l.s8.bf16 %v1446
    %v1903 = vunpack.c.l.s8.bf16 %v1447
    %v1904 = vunpack.c.l.s8.bf16 %v1448
    %v1905 = vunpack.c.l.s8.bf16 %v1449
    %v1906 = vunpack.c.l.s8.bf16 %v1450
    %v1907 = vunpack.c.l.s8.bf16 %v1451
    %v1908 = vunpack.c.h.s8.bf16 %v1444
    %v1909 = vunpack.c.h.s8.bf16 %v1445
    %v1910 = vunpack.c.h.s8.bf16 %v1446
    %v1911 = vunpack.c.h.s8.bf16 %v1447
    %v1912 = vunpack.c.h.s8.bf16 %v1448
    %v1913 = vunpack.c.h.s8.bf16 %v1449
    %v1914 = vunpack.c.h.s8.bf16 %v1450
    %v1915 = vunpack.c.h.s8.bf16 %v1451
    %v1916 = vunpack.c.l.s8.bf16 %v1452
    %v1917 = vunpack.c.l.s8.bf16 %v1453
    %v1918 = vunpack.c.l.s8.bf16 %v1454
    %v1919 = vunpack.c.l.s8.bf16 %v1455
    %v1920 = vunpack.c.l.s8.bf16 %v1456
    %v1921 = vunpack.c.l.s8.bf16 %v1457
    %v1922 = vunpack.c.l.s8.bf16 %v1458
    %v1923 = vunpack.c.l.s8.bf16 %v1459
    %v1924 = vunpack.c.h.s8.bf16 %v1452
    %v1925 = vunpack.c.h.s8.bf16 %v1453
    %v1926 = vunpack.c.h.s8.bf16 %v1454
    %v1927 = vunpack.c.h.s8.bf16 %v1455
    %v1928 = vunpack.c.h.s8.bf16 %v1456
    %v1929 = vunpack.c.h.s8.bf16 %v1457
    %v1930 = vunpack.c.h.s8.bf16 %v1458
    %v1931 = vunpack.c.h.s8.bf16 %v1459
    %v1932 = vunpack.c.l.s8.bf16 %v1460
    %v1933 = vunpack.c.l.s8.bf16 %v1461
    %v1934 = vunpack.c.l.s8.bf16 %v1462
    %v1935 = vunpack.c.l.s8.bf16 %v1463
    %v1936 = vunpack.c.l.s8.bf16 %v1464
    %v1937 = vunpack.c.l.s8.bf16 %v1465
    %v1938 = vunpack.c.l.s8.bf16 %v1466
    %v1939 = vunpack.c.l.s8.bf16 %v1467
    %v1940 = vunpack.c.h.s8.bf16 %v1460
    %v1941 = vunpack.c.h.s8.bf16 %v1461
    %v1942 = vunpack.c.h.s8.bf16 %v1462
    %v1943 = vunpack.c.h.s8.bf16 %v1463
    %v1944 = vunpack.c.h.s8.bf16 %v1464
    %v1945 = vunpack.c.h.s8.bf16 %v1465
    %v1946 = vunpack.c.h.s8.bf16 %v1466
    %v1947 = vunpack.c.h.s8.bf16 %v1467
    %v1948 = vunpack.c.l.s8.bf16 %v1468
    %v1949 = vunpack.c.l.s8.bf16 %v1469
    %v1950 = vunpack.c.l.s8.bf16 %v1470
    %v1951 = vunpack.c.l.s8.bf16 %v1471
    %v1952 = vunpack.c.l.s8.bf16 %v1472
    %v1953 = vunpack.c.l.s8.bf16 %v1473
    %v1954 = vunpack.c.l.s8.bf16 %v1474
    %v1955 = vunpack.c.l.s8.bf16 %v1475
    %v1956 = vunpack.c.h.s8.bf16 %v1468
    %v1957 = vunpack.c.h.s8.bf16 %v1469
    %v1958 = vunpack.c.h.s8.bf16 %v1470
    %v1959 = vunpack.c.h.s8.bf16 %v1471
    %v1960 = vunpack.c.h.s8.bf16 %v1472
    %v1961 = vunpack.c.h.s8.bf16 %v1473
    %v1962 = vunpack.c.h.s8.bf16 %v1474
    %v1963 = vunpack.c.h.s8.bf16 %v1475
    %v1964 = vunpack.c.l.s8.bf16 %v1476
    %v1965 = vunpack.c.l.s8.bf16 %v1477
    %v1966 = vunpack.c.l.s8.bf16 %v1478
    %v1967 = vunpack.c.l.s8.bf16 %v1479
    %v1968 = vunpack.c.l.s8.bf16 %v1480
    %v1969 = vunpack.c.l.s8.bf16 %v1481
    %v1970 = vunpack.c.l.s8.bf16 %v1482
    %v1971 = vunpack.c.l.s8.bf16 %v1483
    %v1972 = vunpack.c.h.s8.bf16 %v1476
    %v1973 = vunpack.c.h.s8.bf16 %v1477
    %v1974 = vunpack.c.h.s8.bf16 %v1478
    %v1975 = vunpack.c.h.s8.bf16 %v1479
    %v1976 = vunpack.c.h.s8.bf16 %v1480
    %v1977 = vunpack.c.h.s8.bf16 %v1481
    %v1978 = vunpack.c.h.s8.bf16 %v1482
    %v1979 = vunpack.c.h.s8.bf16 %v1483
    %v1980 = vunpack.c.l.s8.bf16 %v1484
    %v1981 = vunpack.c.l.s8.bf16 %v1485
    %v1982 = vunpack.c.l.s8.bf16 %v1486
    %v1983 = vunpack.c.l.s8.bf16 %v1487
    %v1984 = vunpack.c.l.s8.bf16 %v1488
    %v1985 = vunpack.c.l.s8.bf16 %v1489
    %v1986 = vunpack.c.l.s8.bf16 %v1490
    %v1987 = vunpack.c.l.s8.bf16 %v1491
    %v1988 = vunpack.c.h.s8.bf16 %v1484
    %v1989 = vunpack.c.h.s8.bf16 %v1485
    %v1990 = vunpack.c.h.s8.bf16 %v1486
    %v1991 = vunpack.c.h.s8.bf16 %v1487
    %v1992 = vunpack.c.h.s8.bf16 %v1488
    %v1993 = vunpack.c.h.s8.bf16 %v1489
    %v1994 = vunpack.c.h.s8.bf16 %v1490
    %v1995 = vunpack.c.h.s8.bf16 %v1491
    %v1996 = vunpack.c.l.s8.bf16 %v1492
    %v1997 = vunpack.c.l.s8.bf16 %v1493
    %v1998 = vunpack.c.l.s8.bf16 %v1494
    %v1999 = vunpack.c.l.s8.bf16 %v1495
    %v2000 = vunpack.c.l.s8.bf16 %v1496
    %v2001 = vunpack.c.l.s8.bf16 %v1497
    %v2002 = vunpack.c.l.s8.bf16 %v1498
    %v2003 = vunpack.c.l.s8.bf16 %v1499
    %v2004 = vunpack.c.h.s8.bf16 %v1492
    %v2005 = vunpack.c.h.s8.bf16 %v1493
    %v2006 = vunpack.c.h.s8.bf16 %v1494
    %v2007 = vunpack.c.h.s8.bf16 %v1495
    %v2008 = vunpack.c.h.s8.bf16 %v1496
    %v2009 = vunpack.c.h.s8.bf16 %v1497
    %v2010 = vunpack.c.h.s8.bf16 %v1498
    %v2011 = vunpack.c.h.s8.bf16 %v1499
    %v2012 = vpack.c.bf16 %v1236, %v1236
    %v2013 = vpack.c.bf16 %v1237, %v1237
    %v2014 = vpack.c.bf16 %v1238, %v1238
    %v2015 = vpack.c.bf16 %v1239, %v1239
    %v2016 = vpack.c.bf16 %v1240, %v1240
    %v2017 = vpack.c.bf16 %v1241, %v1241
    %v2018 = vpack.c.bf16 %v1242, %v1242
    %v2019 = vpack.c.bf16 %v1243, %v1243
    %2020 = vmatprep.subr.bf16.mxu0 %v1501
    %2021 = vmatpush1.bf16.msra.mxu0 %v1500
    %2022 = vmatprep.subr.bf16.mxu0 %v1509
    %2023 = vmatpush1.bf16.msra.mxu0 %v1508
    %2024 = vmatprep.subr.bf16.mxu0 %v1517
    %2025 = vmatpush1.bf16.msra.mxu0 %v1516
    %2026 = vmatprep.subr.bf16.mxu0 %v1525
    %2027 = vmatpush1.bf16.msra.mxu0 %v1524
    %2028 = vmatprep.subr.bf16.mxu0 %v1533
    %2029 = vmatpush1.bf16.msra.mxu0 %v1532
    %2030 = vmatprep.subr.bf16.mxu0 %v1541
    %2031 = vmatpush1.bf16.msra.mxu0 %v1540
    %2032 = vmatprep.subr.bf16.mxu0 %v1549
    %2033 = vmatpush1.bf16.msra.mxu0 %v1548
    %2034 = vmatprep.subr.bf16.mxu0 %v1557
    %2035 = vmatpush1.bf16.msra.mxu0 %v1556
    %2036 = vmatprep.subr.bf16.mxu0 %v1565
    %2037 = vmatpush1.bf16.msra.mxu0 %v1564
    %2038 = vmatprep.subr.bf16.mxu0 %v1573
    %2039 = vmatpush1.bf16.msra.mxu0 %v1572
    %2040 = vmatprep.subr.bf16.mxu0 %v1581
    %2041 = vmatpush1.bf16.msra.mxu0 %v1580
    %2042 = vmatprep.subr.bf16.mxu0 %v1589
    %2043 = vmatpush1.bf16.msra.mxu0 %v1588
    %2044 = vmatprep.subr.bf16.mxu0 %v1597
    %2045 = vmatpush1.bf16.msra.mxu0 %v1596
    %2046 = vmatprep.subr.bf16.mxu0 %v1605
    %2047 = vmatpush1.bf16.msra.mxu0 %v1604
    %2048 = vmatprep.subr.bf16.mxu0 %v1613
    %2049 = vmatpush1.bf16.msra.mxu0 %v1612
    %2050 = vmatprep.subr.bf16.mxu0 %v1621
    %2051 = vmatpush1.bf16.msra.mxu0 %v1620
    %2052 = vmatprep.mubr.bf16.mxu0 %v2013
    %2053 = vmatmul.mubr.bf16.gmra.mrb[0].mxu0 %v2012
    %v2054 = vpop.f32.mrb[0].mxu0
    %v2055 = vadd.f32 0.0, %v2054
    %v2056 = vpop.f32.mrb[0].mxu0
    %v2057 = vadd.f32 0.0, %v2056
    %v2058 = vpop.f32.mrb[0].mxu0
    %v2059 = vpop.f32.mrb[0].mxu0
    %2060 = vdwg.mxu0
    %2061 = vmatprep.subr.bf16.mxu0 %v1629
    %2062 = vmatpush1.bf16.msra.mxu0 %v1628
    %2063 = vmatprep.subr.bf16.mxu0 %v1637
    %2064 = vmatpush1.bf16.msra.mxu0 %v1636
    %2065 = vmatprep.subr.bf16.mxu0 %v1645
    %2066 = vmatpush1.bf16.msra.mxu0 %v1644
    %2067 = vmatprep.subr.bf16.mxu0 %v1653
    %2068 = vmatpush1.bf16.msra.mxu0 %v1652
    %2069 = vmatprep.subr.bf16.mxu0 %v1661
    %2070 = vmatpush1.bf16.msra.mxu0 %v1660
    %2071 = vmatprep.subr.bf16.mxu0 %v1669
    %2072 = vmatpush1.bf16.msra.mxu0 %v1668
    %2073 = vmatprep.subr.bf16.mxu0 %v1677
    %2074 = vmatpush1.bf16.msra.mxu0 %v1676
    %2075 = vmatprep.subr.bf16.mxu0 %v1685
    %2076 = vmatpush1.bf16.msra.mxu0 %v1684
    %2077 = vmatprep.subr.bf16.mxu0 %v1693
    %2078 = vmatpush1.bf16.msra.mxu0 %v1692
    %2079 = vmatprep.subr.bf16.mxu0 %v1701
    %2080 = vmatpush1.bf16.msra.mxu0 %v1700
    %2081 = vmatprep.subr.bf16.mxu0 %v1709
    %2082 = vmatpush1.bf16.msra.mxu0 %v1708
    %2083 = vmatprep.subr.bf16.mxu0 %v1717
    %2084 = vmatpush1.bf16.msra.mxu0 %v1716
    %2085 = vmatprep.subr.bf16.mxu0 %v1725
    %2086 = vmatpush1.bf16.msra.mxu0 %v1724
    %2087 = vmatprep.subr.bf16.mxu0 %v1733
    %2088 = vmatpush1.bf16.msra.mxu0 %v1732
    %2089 = vmatprep.subr.bf16.mxu0 %v1741
    %2090 = vmatpush1.bf16.msra.mxu0 %v1740
    %2091 = vmatprep.subr.bf16.mxu0 %v1749
    %2092 = vmatpush1.bf16.msra.mxu0 %v1748
    %2093 = vmatprep.mubr.bf16.mxu0 %v2015
    %2094 = vmatmul.mubr.bf16.gmra.mrb[0].mxu0 %v2014
    %v2095 = vpop.f32.mrb[0].mxu0
    %v2096 = vadd.f32 %v2055, %v2095
    %v2097 = vpop.f32.mrb[0].mxu0
    %v2098 = vadd.f32 %v2057, %v2097
    %v2099 = vpop.f32.mrb[0].mxu0
    %v2100 = vpop.f32.mrb[0].mxu0
    %2101 = vdwg.mxu0
    %2102 = vmatprep.subr.bf16.mxu0 %v1757
    %2103 = vmatpush1.bf16.msra.mxu0 %v1756
    %2104 = vmatprep.subr.bf16.mxu0 %v1765
    %2105 = vmatpush1.bf16.msra.mxu0 %v1764
    %2106 = vmatprep.subr.bf16.mxu0 %v1773
    %2107 = vmatpush1.bf16.msra.mxu0 %v1772
    %2108 = vmatprep.subr.bf16.mxu0 %v1781
    %2109 = vmatpush1.bf16.msra.mxu0 %v1780
    %2110 = vmatprep.subr.bf16.mxu0 %v1789
    %2111 = vmatpush1.bf16.msra.mxu0 %v1788
    %2112 = vmatprep.subr.bf16.mxu0 %v1797
    %2113 = vmatpush1.bf16.msra.mxu0 %v1796
    %2114 = vmatprep.subr.bf16.mxu0 %v1805
    %2115 = vmatpush1.bf16.msra.mxu0 %v1804
    %2116 = vmatprep.subr.bf16.mxu0 %v1813
    %2117 = vmatpush1.bf16.msra.mxu0 %v1812
    %2118 = vmatprep.subr.bf16.mxu0 %v1821
    %2119 = vmatpush1.bf16.msra.mxu0 %v1820
    %2120 = vmatprep.subr.bf16.mxu0 %v1829
    %2121 = vmatpush1.bf16.msra.mxu0 %v1828
    %2122 = vmatprep.subr.bf16.mxu0 %v1837
    %2123 = vmatpush1.bf16.msra.mxu0 %v1836
    %2124 = vmatprep.subr.bf16.mxu0 %v1845
    %2125 = vmatpush1.bf16.msra.mxu0 %v1844
    %2126 = vmatprep.subr.bf16.mxu0 %v1853
    %2127 = vmatpush1.bf16.msra.mxu0 %v1852
    %2128 = vmatprep.subr.bf16.mxu0 %v1861
    %2129 = vmatpush1.bf16.msra.mxu0 %v1860
    %2130 = vmatprep.subr.bf16.mxu0 %v1869
    %2131 = vmatpush1.bf16.msra.mxu0 %v1868
    %2132 = vmatprep.subr.bf16.mxu0 %v1877
    %2133 = vmatpush1.bf16.msra.mxu0 %v1876
    %2134 = vmatprep.mubr.bf16.mxu0 %v2017
    %2135 = vmatmul.mubr.bf16.gmra.mrb[0].mxu0 %v2016
    %v2136 = vpop.f32.mrb[0].mxu0
    %v2137 = vadd.f32 %v2096, %v2136
    %v2138 = vpop.f32.mrb[0].mxu0
    %v2139 = vadd.f32 %v2098, %v2138
    %v2140 = vpop.f32.mrb[0].mxu0
    %v2141 = vpop.f32.mrb[0].mxu0
    %2142 = vdwg.mxu0
    %2143 = vmatprep.subr.bf16.mxu0 %v1885
    %2144 = vmatpush1.bf16.msra.mxu0 %v1884
    %2145 = vmatprep.subr.bf16.mxu0 %v1893
    %2146 = vmatpush1.bf16.msra.mxu0 %v1892
    %2147 = vmatprep.subr.bf16.mxu0 %v1901
    %2148 = vmatpush1.bf16.msra.mxu0 %v1900
    %2149 = vmatprep.subr.bf16.mxu0 %v1909
    %2150 = vmatpush1.bf16.msra.mxu0 %v1908
    %2151 = vmatprep.subr.bf16.mxu0 %v1917
    %2152 = vmatpush1.bf16.msra.mxu0 %v1916
    %2153 = vmatprep.subr.bf16.mxu0 %v1925
    %2154 = vmatpush1.bf16.msra.mxu0 %v1924
    %2155 = vmatprep.subr.bf16.mxu0 %v1933
    %2156 = vmatpush1.bf16.msra.mxu0 %v1932
    %2157 = vmatprep.subr.bf16.mxu0 %v1941
    %2158 = vmatpush1.bf16.msra.mxu0 %v1940
    %2159 = vmatprep.subr.bf16.mxu0 %v1949
    %2160 = vmatpush1.bf16.msra.mxu0 %v1948
    %2161 = vmatprep.subr.bf16.mxu0 %v1957
    %2162 = vmatpush1.bf16.msra.mxu0 %v1956
    %2163 = vmatprep.subr.bf16.mxu0 %v1965
    %2164 = vmatpush1.bf16.msra.mxu0 %v1964
    %2165 = vmatprep.subr.bf16.mxu0 %v1973
    %2166 = vmatpush1.bf16.msra.mxu0 %v1972
    %2167 = vmatprep.subr.bf16.mxu0 %v1981
    %2168 = vmatpush1.bf16.msra.mxu0 %v1980
    %2169 = vmatprep.subr.bf16.mxu0 %v1989
    %2170 = vmatpush1.bf16.msra.mxu0 %v1988
    %2171 = vmatprep.subr.bf16.mxu0 %v1997
    %2172 = vmatpush1.bf16.msra.mxu0 %v1996
    %2173 = vmatprep.subr.bf16.mxu0 %v2005
    %2174 = vmatpush1.bf16.msra.mxu0 %v2004
    %2175 = vmatprep.mubr.bf16.mxu0 %v2019
    %2176 = vmatmul.mubr.bf16.gmra.mrb[0].mxu0 %v2018
    %v2177 = vpop.f32.mrb[0].mxu0
    %v2178 = vadd.f32 %v2137, %v2177
    %v2179 = vpop.f32.mrb[0].mxu0
    %v2180 = vadd.f32 %v2139, %v2179
    %v2181 = vpop.f32.mrb[0].mxu0
    %v2182 = vpop.f32.mrb[0].mxu0
    %2183 = vdwg.mxu0
    %2184 = vmatprep.subr.bf16.mxu0 %v1503
    %2185 = vmatpush1.bf16.msra.mxu0 %v1502
    %2186 = vmatprep.subr.bf16.mxu0 %v1511
    %2187 = vmatpush1.bf16.msra.mxu0 %v1510
    %2188 = vmatprep.subr.bf16.mxu0 %v1519
    %2189 = vmatpush1.bf16.msra.mxu0 %v1518
    %2190 = vmatprep.subr.bf16.mxu0 %v1527
    %2191 = vmatpush1.bf16.msra.mxu0 %v1526
    %2192 = vmatprep.subr.bf16.mxu0 %v1535
    %2193 = vmatpush1.bf16.msra.mxu0 %v1534
    %2194 = vmatprep.subr.bf16.mxu0 %v1543
    %2195 = vmatpush1.bf16.msra.mxu0 %v1542
    %2196 = vmatprep.subr.bf16.mxu0 %v1551
    %2197 = vmatpush1.bf16.msra.mxu0 %v1550
    %2198 = vmatprep.subr.bf16.mxu0 %v1559
    %2199 = vmatpush1.bf16.msra.mxu0 %v1558
    %2200 = vmatprep.subr.bf16.mxu0 %v1567
    %2201 = vmatpush1.bf16.msra.mxu0 %v1566
    %2202 = vmatprep.subr.bf16.mxu0 %v1575
    %2203 = vmatpush1.bf16.msra.mxu0 %v1574
    %2204 = vmatprep.subr.bf16.mxu0 %v1583
    %2205 = vmatpush1.bf16.msra.mxu0 %v1582
    %2206 = vmatprep.subr.bf16.mxu0 %v1591
    %2207 = vmatpush1.bf16.msra.mxu0 %v1590
    %2208 = vmatprep.subr.bf16.mxu0 %v1599
    %2209 = vmatpush1.bf16.msra.mxu0 %v1598
    %2210 = vmatprep.subr.bf16.mxu0 %v1607
    %2211 = vmatpush1.bf16.msra.mxu0 %v1606
    %2212 = vmatprep.subr.bf16.mxu0 %v1615
    %2213 = vmatpush1.bf16.msra.mxu0 %v1614
    %2214 = vmatprep.subr.bf16.mxu0 %v1623
    %2215 = vmatpush1.bf16.msra.mxu0 %v1622
    %2216 = vmatprep.mubr.bf16.mxu0 %v2013
    %2217 = vmatmul.mubr.bf16.gmra.mrb[0].mxu0 %v2012
    %v2218 = vpop.f32.mrb[0].mxu0
    %v2219 = vadd.f32 0.0, %v2218
    %v2220 = vpop.f32.mrb[0].mxu0
    %v2221 = vadd.f32 0.0, %v2220
    %v2222 = vpop.f32.mrb[0].mxu0
    %v2223 = vpop.f32.mrb[0].mxu0
    %2224 = vdwg.mxu0
    %2225 = vmatprep.subr.bf16.mxu0 %v1631
    %2226 = vmatpush1.bf16.msra.mxu0 %v1630
    %2227 = vmatprep.subr.bf16.mxu0 %v1639
    %2228 = vmatpush1.bf16.msra.mxu0 %v1638
    %2229 = vmatprep.subr.bf16.mxu0 %v1647
    %2230 = vmatpush1.bf16.msra.mxu0 %v1646
    %2231 = vmatprep.subr.bf16.mxu0 %v1655
    %2232 = vmatpush1.bf16.msra.mxu0 %v1654
    %2233 = vmatprep.subr.bf16.mxu0 %v1663
    %2234 = vmatpush1.bf16.msra.mxu0 %v1662
    %2235 = vmatprep.subr.bf16.mxu0 %v1671
    %2236 = vmatpush1.bf16.msra.mxu0 %v1670
    %2237 = vmatprep.subr.bf16.mxu0 %v1679
    %2238 = vmatpush1.bf16.msra.mxu0 %v1678
    %2239 = vmatprep.subr.bf16.mxu0 %v1687
    %2240 = vmatpush1.bf16.msra.mxu0 %v1686
    %2241 = vmatprep.subr.bf16.mxu0 %v1695
    %2242 = vmatpush1.bf16.msra.mxu0 %v1694
    %2243 = vmatprep.subr.bf16.mxu0 %v1703
    %2244 = vmatpush1.bf16.msra.mxu0 %v1702
    %2245 = vmatprep.subr.bf16.mxu0 %v1711
    %2246 = vmatpush1.bf16.msra.mxu0 %v1710
    %2247 = vmatprep.subr.bf16.mxu0 %v1719
    %2248 = vmatpush1.bf16.msra.mxu0 %v1718
    %2249 = vmatprep.subr.bf16.mxu0 %v1727
    %2250 = vmatpush1.bf16.msra.mxu0 %v1726
    %2251 = vmatprep.subr.bf16.mxu0 %v1735
    %2252 = vmatpush1.bf16.msra.mxu0 %v1734
    %2253 = vmatprep.subr.bf16.mxu0 %v1743
    %2254 = vmatpush1.bf16.msra.mxu0 %v1742
    %2255 = vmatprep.subr.bf16.mxu0 %v1751
    %2256 = vmatpush1.bf16.msra.mxu0 %v1750
    %2257 = vmatprep.mubr.bf16.mxu0 %v2015
    %2258 = vmatmul.mubr.bf16.gmra.mrb[0].mxu0 %v2014
    %v2259 = vpop.f32.mrb[0].mxu0
    %v2260 = vadd.f32 %v2219, %v2259
    %v2261 = vpop.f32.mrb[0].mxu0
    %v2262 = vadd.f32 %v2221, %v2261
    %v2263 = vpop.f32.mrb[0].mxu0
    %v2264 = vpop.f32.mrb[0].mxu0
    %2265 = vdwg.mxu0
    %2266 = vmatprep.subr.bf16.mxu0 %v1759
    %2267 = vmatpush1.bf16.msra.mxu0 %v1758
    %2268 = vmatprep.subr.bf16.mxu0 %v1767
    %2269 = vmatpush1.bf16.msra.mxu0 %v1766
    %2270 = vmatprep.subr.bf16.mxu0 %v1775
    %2271 = vmatpush1.bf16.msra.mxu0 %v1774
    %2272 = vmatprep.subr.bf16.mxu0 %v1783
    %2273 = vmatpush1.bf16.msra.mxu0 %v1782
    %2274 = vmatprep.subr.bf16.mxu0 %v1791
    %2275 = vmatpush1.bf16.msra.mxu0 %v1790
    %2276 = vmatprep.subr.bf16.mxu0 %v1799
    %2277 = vmatpush1.bf16.msra.mxu0 %v1798
    %2278 = vmatprep.subr.bf16.mxu0 %v1807
    %2279 = vmatpush1.bf16.msra.mxu0 %v1806
    %2280 = vmatprep.subr.bf16.mxu0 %v1815
    %2281 = vmatpush1.bf16.msra.mxu0 %v1814
    %2282 = vmatprep.subr.bf16.mxu0 %v1823
    %2283 = vmatpush1.bf16.msra.mxu0 %v1822
    %2284 = vmatprep.subr.bf16.mxu0 %v1831
    %2285 = vmatpush1.bf16.msra.mxu0 %v1830
    %2286 = vmatprep.subr.bf16.mxu0 %v1839
    %2287 = vmatpush1.bf16.msra.mxu0 %v1838
    %2288 = vmatprep.subr.bf16.mxu0 %v1847
    %2289 = vmatpush1.bf16.msra.mxu0 %v1846
    %2290 = vmatprep.subr.bf16.mxu0 %v1855
    %2291 = vmatpush1.bf16.msra.mxu0 %v1854
    %2292 = vmatprep.subr.bf16.mxu0 %v1863
    %2293 = vmatpush1.bf16.msra.mxu0 %v1862
    %2294 = vmatprep.subr.bf16.mxu0 %v1871
    %2295 = vmatpush1.bf16.msra.mxu0 %v1870
    %2296 = vmatprep.subr.bf16.mxu0 %v1879
    %2297 = vmatpush1.bf16.msra.mxu0 %v1878
    %2298 = vmatprep.mubr.bf16.mxu0 %v2017
    %2299 = vmatmul.mubr.bf16.gmra.mrb[0].mxu0 %v2016
    %v2300 = vpop.f32.mrb[0].mxu0
    %v2301 = vadd.f32 %v2260, %v2300
    %v2302 = vpop.f32.mrb[0].mxu0
    %v2303 = vadd.f32 %v2262, %v2302
    %v2304 = vpop.f32.mrb[0].mxu0
    %v2305 = vpop.f32.mrb[0].mxu0
    %2306 = vdwg.mxu0
    %2307 = vmatprep.subr.bf16.mxu0 %v1887
    %2308 = vmatpush1.bf16.msra.mxu0 %v1886
    %2309 = vmatprep.subr.bf16.mxu0 %v1895
    %2310 = vmatpush1.bf16.msra.mxu0 %v1894
    %2311 = vmatprep.subr.bf16.mxu0 %v1903
    %2312 = vmatpush1.bf16.msra.mxu0 %v1902
    %2313 = vmatprep.subr.bf16.mxu0 %v1911
    %2314 = vmatpush1.bf16.msra.mxu0 %v1910
    %2315 = vmatprep.subr.bf16.mxu0 %v1919
    %2316 = vmatpush1.bf16.msra.mxu0 %v1918
    %2317 = vmatprep.subr.bf16.mxu0 %v1927
    %2318 = vmatpush1.bf16.msra.mxu0 %v1926
    %2319 = vmatprep.subr.bf16.mxu0 %v1935
    %2320 = vmatpush1.bf16.msra.mxu0 %v1934
    %2321 = vmatprep.subr.bf16.mxu0 %v1943
    %2322 = vmatpush1.bf16.msra.mxu0 %v1942
    %2323 = vmatprep.subr.bf16.mxu0 %v1951
    %2324 = vmatpush1.bf16.msra.mxu0 %v1950
    %2325 = vmatprep.subr.bf16.mxu0 %v1959
    %2326 = vmatpush1.bf16.msra.mxu0 %v1958
    %2327 = vmatprep.subr.bf16.mxu0 %v1967
    %2328 = vmatpush1.bf16.msra.mxu0 %v1966
    %2329 = vmatprep.subr.bf16.mxu0 %v1975
    %2330 = vmatpush1.bf16.msra.mxu0 %v1974
    %2331 = vmatprep.subr.bf16.mxu0 %v1983
    %2332 = vmatpush1.bf16.msra.mxu0 %v1982
    %2333 = vmatprep.subr.bf16.mxu0 %v1991
    %2334 = vmatpush1.bf16.msra.mxu0 %v1990
    %2335 = vmatprep.subr.bf16.mxu0 %v1999
    %2336 = vmatpush1.bf16.msra.mxu0 %v1998
    %2337 = vmatprep.subr.bf16.mxu0 %v2007
    %2338 = vmatpush1.bf16.msra.mxu0 %v2006
    %2339 = vmatprep.mubr.bf16.mxu0 %v2019
    %2340 = vmatmul.mubr.bf16.gmra.mrb[0].mxu0 %v2018
    %v2341 = vpop.f32.mrb[0].mxu0
    %v2342 = vadd.f32 %v2301, %v2341
    %v2343 = vpop.f32.mrb[0].mxu0
    %v2344 = vadd.f32 %v2303, %v2343
    %v2345 = vpop.f32.mrb[0].mxu0
    %v2346 = vpop.f32.mrb[0].mxu0
    %2347 = vdwg.mxu0
    %2348 = vmatprep.subr.bf16.mxu0 %v1505
    %2349 = vmatpush1.bf16.msra.mxu0 %v1504
    %2350 = vmatprep.subr.bf16.mxu0 %v1513
    %2351 = vmatpush1.bf16.msra.mxu0 %v1512
    %2352 = vmatprep.subr.bf16.mxu0 %v1521
    %2353 = vmatpush1.bf16.msra.mxu0 %v1520
    %2354 = vmatprep.subr.bf16.mxu0 %v1529
    %2355 = vmatpush1.bf16.msra.mxu0 %v1528
    %2356 = vmatprep.subr.bf16.mxu0 %v1537
    %2357 = vmatpush1.bf16.msra.mxu0 %v1536
    %2358 = vmatprep.subr.bf16.mxu0 %v1545
    %2359 = vmatpush1.bf16.msra.mxu0 %v1544
    %2360 = vmatprep.subr.bf16.mxu0 %v1553
    %2361 = vmatpush1.bf16.msra.mxu0 %v1552
    %2362 = vmatprep.subr.bf16.mxu0 %v1561
    %2363 = vmatpush1.bf16.msra.mxu0 %v1560
    %2364 = vmatprep.subr.bf16.mxu0 %v1569
    %2365 = vmatpush1.bf16.msra.mxu0 %v1568
    %2366 = vmatprep.subr.bf16.mxu0 %v1577
    %2367 = vmatpush1.bf16.msra.mxu0 %v1576
    %2368 = vmatprep.subr.bf16.mxu0 %v1585
    %2369 = vmatpush1.bf16.msra.mxu0 %v1584
    %2370 = vmatprep.subr.bf16.mxu0 %v1593
    %2371 = vmatpush1.bf16.msra.mxu0 %v1592
    %2372 = vmatprep.subr.bf16.mxu0 %v1601
    %2373 = vmatpush1.bf16.msra.mxu0 %v1600
    %2374 = vmatprep.subr.bf16.mxu0 %v1609
    %2375 = vmatpush1.bf16.msra.mxu0 %v1608
    %2376 = vmatprep.subr.bf16.mxu0 %v1617
    %2377 = vmatpush1.bf16.msra.mxu0 %v1616
    %2378 = vmatprep.subr.bf16.mxu0 %v1625
    %2379 = vmatpush1.bf16.msra.mxu0 %v1624
    %2380 = vmatprep.mubr.bf16.mxu0 %v2013
    %2381 = vmatmul.mubr.bf16.gmra.mrb[0].mxu0 %v2012
    %v2382 = vpop.f32.mrb[0].mxu0
    %v2383 = vadd.f32 0.0, %v2382
    %v2384 = vpop.f32.mrb[0].mxu0
    %v2385 = vadd.f32 0.0, %v2384
    %v2386 = vpop.f32.mrb[0].mxu0
    %v2387 = vpop.f32.mrb[0].mxu0
    %2388 = vdwg.mxu0
    %2389 = vmatprep.subr.bf16.mxu0 %v1633
    %2390 = vmatpush1.bf16.msra.mxu0 %v1632
    %2391 = vmatprep.subr.bf16.mxu0 %v1641
    %2392 = vmatpush1.bf16.msra.mxu0 %v1640
    %2393 = vmatprep.subr.bf16.mxu0 %v1649
    %2394 = vmatpush1.bf16.msra.mxu0 %v1648
    %2395 = vmatprep.subr.bf16.mxu0 %v1657
    %2396 = vmatpush1.bf16.msra.mxu0 %v1656
    %2397 = vmatprep.subr.bf16.mxu0 %v1665
    %2398 = vmatpush1.bf16.msra.mxu0 %v1664
    %2399 = vmatprep.subr.bf16.mxu0 %v1673
    %2400 = vmatpush1.bf16.msra.mxu0 %v1672
    %2401 = vmatprep.subr.bf16.mxu0 %v1681
    %2402 = vmatpush1.bf16.msra.mxu0 %v1680
    %2403 = vmatprep.subr.bf16.mxu0 %v1689
    %2404 = vmatpush1.bf16.msra.mxu0 %v1688
    %2405 = vmatprep.subr.bf16.mxu0 %v1697
    %2406 = vmatpush1.bf16.msra.mxu0 %v1696
    %2407 = vmatprep.subr.bf16.mxu0 %v1705
    %2408 = vmatpush1.bf16.msra.mxu0 %v1704
    %2409 = vmatprep.subr.bf16.mxu0 %v1713
    %2410 = vmatpush1.bf16.msra.mxu0 %v1712
    %2411 = vmatprep.subr.bf16.mxu0 %v1721
    %2412 = vmatpush1.bf16.msra.mxu0 %v1720
    %2413 = vmatprep.subr.bf16.mxu0 %v1729
    %2414 = vmatpush1.bf16.msra.mxu0 %v1728
    %2415 = vmatprep.subr.bf16.mxu0 %v1737
    %2416 = vmatpush1.bf16.msra.mxu0 %v1736
    %2417 = vmatprep.subr.bf16.mxu0 %v1745
    %2418 = vmatpush1.bf16.msra.mxu0 %v1744
    %2419 = vmatprep.subr.bf16.mxu0 %v1753
    %2420 = vmatpush1.bf16.msra.mxu0 %v1752
    %2421 = vmatprep.mubr.bf16.mxu0 %v2015
    %2422 = vmatmul.mubr.bf16.gmra.mrb[0].mxu0 %v2014
    %v2423 = vpop.f32.mrb[0].mxu0
    %v2424 = vadd.f32 %v2383, %v2423
    %v2425 = vpop.f32.mrb[0].mxu0
    %v2426 = vadd.f32 %v2385, %v2425
    %v2427 = vpop.f32.mrb[0].mxu0
    %v2428 = vpop.f32.mrb[0].mxu0
    %2429 = vdwg.mxu0
    %2430 = vmatprep.subr.bf16.mxu0 %v1761
    %2431 = vmatpush1.bf16.msra.mxu0 %v1760
    %2432 = vmatprep.subr.bf16.mxu0 %v1769
    %2433 = vmatpush1.bf16.msra.mxu0 %v1768
    %2434 = vmatprep.subr.bf16.mxu0 %v1777
    %2435 = vmatpush1.bf16.msra.mxu0 %v1776
    %2436 = vmatprep.subr.bf16.mxu0 %v1785
    %2437 = vmatpush1.bf16.msra.mxu0 %v1784
    %2438 = vmatprep.subr.bf16.mxu0 %v1793
    %2439 = vmatpush1.bf16.msra.mxu0 %v1792
    %2440 = vmatprep.subr.bf16.mxu0 %v1801
    %2441 = vmatpush1.bf16.msra.mxu0 %v1800
    %2442 = vmatprep.subr.bf16.mxu0 %v1809
    %2443 = vmatpush1.bf16.msra.mxu0 %v1808
    %2444 = vmatprep.subr.bf16.mxu0 %v1817
    %2445 = vmatpush1.bf16.msra.mxu0 %v1816
    %2446 = vmatprep.subr.bf16.mxu0 %v1825
    %2447 = vmatpush1.bf16.msra.mxu0 %v1824
    %2448 = vmatprep.subr.bf16.mxu0 %v1833
    %2449 = vmatpush1.bf16.msra.mxu0 %v1832
    %2450 = vmatprep.subr.bf16.mxu0 %v1841
    %2451 = vmatpush1.bf16.msra.mxu0 %v1840
    %2452 = vmatprep.subr.bf16.mxu0 %v1849
    %2453 = vmatpush1.bf16.msra.mxu0 %v1848
    %2454 = vmatprep.subr.bf16.mxu0 %v1857
    %2455 = vmatpush1.bf16.msra.mxu0 %v1856
    %2456 = vmatprep.subr.bf16.mxu0 %v1865
    %2457 = vmatpush1.bf16.msra.mxu0 %v1864
    %2458 = vmatprep.subr.bf16.mxu0 %v1873
    %2459 = vmatpush1.bf16.msra.mxu0 %v1872
    %2460 = vmatprep.subr.bf16.mxu0 %v1881
    %2461 = vmatpush1.bf16.msra.mxu0 %v1880
    %2462 = vmatprep.mubr.bf16.mxu0 %v2017
    %2463 = vmatmul.mubr.bf16.gmra.mrb[0].mxu0 %v2016
    %v2464 = vpop.f32.mrb[0].mxu0
    %v2465 = vadd.f32 %v2424, %v2464
    %v2466 = vpop.f32.mrb[0].mxu0
    %v2467 = vadd.f32 %v2426, %v2466
    %v2468 = vpop.f32.mrb[0].mxu0
    %v2469 = vpop.f32.mrb[0].mxu0
    %2470 = vdwg.mxu0
    %2471 = vmatprep.subr.bf16.mxu0 %v1889
    %2472 = vmatpush1.bf16.msra.mxu0 %v1888
    %2473 = vmatprep.subr.bf16.mxu0 %v1897
    %2474 = vmatpush1.bf16.msra.mxu0 %v1896
    %2475 = vmatprep.subr.bf16.mxu0 %v1905
    %2476 = vmatpush1.bf16.msra.mxu0 %v1904
    %2477 = vmatprep.subr.bf16.mxu0 %v1913
    %2478 = vmatpush1.bf16.msra.mxu0 %v1912
    %2479 = vmatprep.subr.bf16.mxu0 %v1921
    %2480 = vmatpush1.bf16.msra.mxu0 %v1920
    %2481 = vmatprep.subr.bf16.mxu0 %v1929
    %2482 = vmatpush1.bf16.msra.mxu0 %v1928
    %2483 = vmatprep.subr.bf16.mxu0 %v1937
    %2484 = vmatpush1.bf16.msra.mxu0 %v1936
    %2485 = vmatprep.subr.bf16.mxu0 %v1945
    %2486 = vmatpush1.bf16.msra.mxu0 %v1944
    %2487 = vmatprep.subr.bf16.mxu0 %v1953
    %2488 = vmatpush1.bf16.msra.mxu0 %v1952
    %2489 = vmatprep.subr.bf16.mxu0 %v1961
    %2490 = vmatpush1.bf16.msra.mxu0 %v1960
    %2491 = vmatprep.subr.bf16.mxu0 %v1969
    %2492 = vmatpush1.bf16.msra.mxu0 %v1968
    %2493 = vmatprep.subr.bf16.mxu0 %v1977
    %2494 = vmatpush1.bf16.msra.mxu0 %v1976
    %2495 = vmatprep.subr.bf16.mxu0 %v1985
    %2496 = vmatpush1.bf16.msra.mxu0 %v1984
    %2497 = vmatprep.subr.bf16.mxu0 %v1993
    %2498 = vmatpush1.bf16.msra.mxu0 %v1992
    %2499 = vmatprep.subr.bf16.mxu0 %v2001
    %2500 = vmatpush1.bf16.msra.mxu0 %v2000
    %2501 = vmatprep.subr.bf16.mxu0 %v2009
    %2502 = vmatpush1.bf16.msra.mxu0 %v2008
    %2503 = vmatprep.mubr.bf16.mxu0 %v2019
    %2504 = vmatmul.mubr.bf16.gmra.mrb[0].mxu0 %v2018
    %v2505 = vpop.f32.mrb[0].mxu0
    %v2506 = vadd.f32 %v2465, %v2505
    %v2507 = vpop.f32.mrb[0].mxu0
    %v2508 = vadd.f32 %v2467, %v2507
    %v2509 = vpop.f32.mrb[0].mxu0
    %v2510 = vpop.f32.mrb[0].mxu0
    %2511 = vdwg.mxu0
    %2512 = vmatprep.subr.bf16.mxu0 %v1507
    %2513 = vmatpush1.bf16.msra.mxu0 %v1506
    %2514 = vmatprep.subr.bf16.mxu0 %v1515
    %2515 = vmatpush1.bf16.msra.mxu0 %v1514
    %2516 = vmatprep.subr.bf16.mxu0 %v1523
    %2517 = vmatpush1.bf16.msra.mxu0 %v1522
    %2518 = vmatprep.subr.bf16.mxu0 %v1531
    %2519 = vmatpush1.bf16.msra.mxu0 %v1530
    %2520 = vmatprep.subr.bf16.mxu0 %v1539
    %2521 = vmatpush1.bf16.msra.mxu0 %v1538
    %2522 = vmatprep.subr.bf16.mxu0 %v1547
    %2523 = vmatpush1.bf16.msra.mxu0 %v1546
    %2524 = vmatprep.subr.bf16.mxu0 %v1555
    %2525 = vmatpush1.bf16.msra.mxu0 %v1554
    %2526 = vmatprep.subr.bf16.mxu0 %v1563
    %2527 = vmatpush1.bf16.msra.mxu0 %v1562
    %2528 = vmatprep.subr.bf16.mxu0 %v1571
    %2529 = vmatpush1.bf16.msra.mxu0 %v1570
    %2530 = vmatprep.subr.bf16.mxu0 %v1579
    %2531 = vmatpush1.bf16.msra.mxu0 %v1578
    %2532 = vmatprep.subr.bf16.mxu0 %v1587
    %2533 = vmatpush1.bf16.msra.mxu0 %v1586
    %2534 = vmatprep.subr.bf16.mxu0 %v1595
    %2535 = vmatpush1.bf16.msra.mxu0 %v1594
    %2536 = vmatprep.subr.bf16.mxu0 %v1603
    %2537 = vmatpush1.bf16.msra.mxu0 %v1602
    %2538 = vmatprep.subr.bf16.mxu0 %v1611
    %2539 = vmatpush1.bf16.msra.mxu0 %v1610
    %2540 = vmatprep.subr.bf16.mxu0 %v1619
    %2541 = vmatpush1.bf16.msra.mxu0 %v1618
    %2542 = vmatprep.subr.bf16.mxu0 %v1627
    %2543 = vmatpush1.bf16.msra.mxu0 %v1626
    %2544 = vmatprep.mubr.bf16.mxu0 %v2013
    %2545 = vmatmul.mubr.bf16.gmra.mrb[0].mxu0 %v2012
    %v2546 = vpop.f32.mrb[0].mxu0
    %v2547 = vadd.f32 0.0, %v2546
    %v2548 = vpop.f32.mrb[0].mxu0
    %v2549 = vadd.f32 0.0, %v2548
    %v2550 = vpop.f32.mrb[0].mxu0
    %v2551 = vpop.f32.mrb[0].mxu0
    %2552 = vdwg.mxu0
    %2553 = vmatprep.subr.bf16.mxu0 %v1635
    %2554 = vmatpush1.bf16.msra.mxu0 %v1634
    %2555 = vmatprep.subr.bf16.mxu0 %v1643
    %2556 = vmatpush1.bf16.msra.mxu0 %v1642
    %2557 = vmatprep.subr.bf16.mxu0 %v1651
    %2558 = vmatpush1.bf16.msra.mxu0 %v1650
    %2559 = vmatprep.subr.bf16.mxu0 %v1659
    %2560 = vmatpush1.bf16.msra.mxu0 %v1658
    %2561 = vmatprep.subr.bf16.mxu0 %v1667
    %2562 = vmatpush1.bf16.msra.mxu0 %v1666
    %2563 = vmatprep.subr.bf16.mxu0 %v1675
    %2564 = vmatpush1.bf16.msra.mxu0 %v1674
    %2565 = vmatprep.subr.bf16.mxu0 %v1683
    %2566 = vmatpush1.bf16.msra.mxu0 %v1682
    %2567 = vmatprep.subr.bf16.mxu0 %v1691
    %2568 = vmatpush1.bf16.msra.mxu0 %v1690
    %2569 = vmatprep.subr.bf16.mxu0 %v1699
    %2570 = vmatpush1.bf16.msra.mxu0 %v1698
    %2571 = vmatprep.subr.bf16.mxu0 %v1707
    %2572 = vmatpush1.bf16.msra.mxu0 %v1706
    %2573 = vmatprep.subr.bf16.mxu0 %v1715
    %2574 = vmatpush1.bf16.msra.mxu0 %v1714
    %2575 = vmatprep.subr.bf16.mxu0 %v1723
    %2576 = vmatpush1.bf16.msra.mxu0 %v1722
    %2577 = vmatprep.subr.bf16.mxu0 %v1731
    %2578 = vmatpush1.bf16.msra.mxu0 %v1730
    %2579 = vmatprep.subr.bf16.mxu0 %v1739
    %2580 = vmatpush1.bf16.msra.mxu0 %v1738
    %2581 = vmatprep.subr.bf16.mxu0 %v1747
    %2582 = vmatpush1.bf16.msra.mxu0 %v1746
    %2583 = vmatprep.subr.bf16.mxu0 %v1755
    %2584 = vmatpush1.bf16.msra.mxu0 %v1754
    %2585 = vmatprep.mubr.bf16.mxu0 %v2015
    %2586 = vmatmul.mubr.bf16.gmra.mrb[0].mxu0 %v2014
    %v2587 = vpop.f32.mrb[0].mxu0
    %v2588 = vadd.f32 %v2547, %v2587
    %v2589 = vpop.f32.mrb[0].mxu0
    %v2590 = vadd.f32 %v2549, %v2589
    %v2591 = vpop.f32.mrb[0].mxu0
    %v2592 = vpop.f32.mrb[0].mxu0
    %2593 = vdwg.mxu0
    %2594 = vmatprep.subr.bf16.mxu0 %v1763
    %2595 = vmatpush1.bf16.msra.mxu0 %v1762
    %2596 = vmatprep.subr.bf16.mxu0 %v1771
    %2597 = vmatpush1.bf16.msra.mxu0 %v1770
    %2598 = vmatprep.subr.bf16.mxu0 %v1779
    %2599 = vmatpush1.bf16.msra.mxu0 %v1778
    %2600 = vmatprep.subr.bf16.mxu0 %v1787
    %2601 = vmatpush1.bf16.msra.mxu0 %v1786
    %2602 = vmatprep.subr.bf16.mxu0 %v1795
    %2603 = vmatpush1.bf16.msra.mxu0 %v1794
    %2604 = vmatprep.subr.bf16.mxu0 %v1803
    %2605 = vmatpush1.bf16.msra.mxu0 %v1802
    %2606 = vmatprep.subr.bf16.mxu0 %v1811
    %2607 = vmatpush1.bf16.msra.mxu0 %v1810
    %2608 = vmatprep.subr.bf16.mxu0 %v1819
    %2609 = vmatpush1.bf16.msra.mxu0 %v1818
    %2610 = vmatprep.subr.bf16.mxu0 %v1827
    %2611 = vmatpush1.bf16.msra.mxu0 %v1826
    %2612 = vmatprep.subr.bf16.mxu0 %v1835
    %2613 = vmatpush1.bf16.msra.mxu0 %v1834
    %2614 = vmatprep.subr.bf16.mxu0 %v1843
    %2615 = vmatpush1.bf16.msra.mxu0 %v1842
    %2616 = vmatprep.subr.bf16.mxu0 %v1851
    %2617 = vmatpush1.bf16.msra.mxu0 %v1850
    %2618 = vmatprep.subr.bf16.mxu0 %v1859
    %2619 = vmatpush1.bf16.msra.mxu0 %v1858
    %2620 = vmatprep.subr.bf16.mxu0 %v1867
    %2621 = vmatpush1.bf16.msra.mxu0 %v1866
    %2622 = vmatprep.subr.bf16.mxu0 %v1875
    %2623 = vmatpush1.bf16.msra.mxu0 %v1874
    %2624 = vmatprep.subr.bf16.mxu0 %v1883
    %2625 = vmatpush1.bf16.msra.mxu0 %v1882
    %2626 = vmatprep.mubr.bf16.mxu0 %v2017
    %2627 = vmatmul.mubr.bf16.gmra.mrb[0].mxu0 %v2016
    %v2628 = vpop.f32.mrb[0].mxu0
    %v2629 = vadd.f32 %v2588, %v2628
    %v2630 = vpop.f32.mrb[0].mxu0
    %v2631 = vadd.f32 %v2590, %v2630
    %v2632 = vpop.f32.mrb[0].mxu0
    %v2633 = vpop.f32.mrb[0].mxu0
    %2634 = vdwg.mxu0
    %2635 = vmatprep.subr.bf16.mxu0 %v1891
    %2636 = vmatpush1.bf16.msra.mxu0 %v1890
    %2637 = vmatprep.subr.bf16.mxu0 %v1899
    %2638 = vmatpush1.bf16.msra.mxu0 %v1898
    %2639 = vmatprep.subr.bf16.mxu0 %v1907
    %2640 = vmatpush1.bf16.msra.mxu0 %v1906
    %2641 = vmatprep.subr.bf16.mxu0 %v1915
    %2642 = vmatpush1.bf16.msra.mxu0 %v1914
    %2643 = vmatprep.subr.bf16.mxu0 %v1923
    %2644 = vmatpush1.bf16.msra.mxu0 %v1922
    %2645 = vmatprep.subr.bf16.mxu0 %v1931
    %2646 = vmatpush1.bf16.msra.mxu0 %v1930
    %2647 = vmatprep.subr.bf16.mxu0 %v1939
    %2648 = vmatpush1.bf16.msra.mxu0 %v1938
    %2649 = vmatprep.subr.bf16.mxu0 %v1947
    %2650 = vmatpush1.bf16.msra.mxu0 %v1946
    %2651 = vmatprep.subr.bf16.mxu0 %v1955
    %2652 = vmatpush1.bf16.msra.mxu0 %v1954
    %2653 = vmatprep.subr.bf16.mxu0 %v1963
    %2654 = vmatpush1.bf16.msra.mxu0 %v1962
    %2655 = vmatprep.subr.bf16.mxu0 %v1971
    %2656 = vmatpush1.bf16.msra.mxu0 %v1970
    %2657 = vmatprep.subr.bf16.mxu0 %v1979
    %2658 = vmatpush1.bf16.msra.mxu0 %v1978
    %2659 = vmatprep.subr.bf16.mxu0 %v1987
    %2660 = vmatpush1.bf16.msra.mxu0 %v1986
    %2661 = vmatprep.subr.bf16.mxu0 %v1995
    %2662 = vmatpush1.bf16.msra.mxu0 %v1994
    %2663 = vmatprep.subr.bf16.mxu0 %v2003
    %2664 = vmatpush1.bf16.msra.mxu0 %v2002
    %2665 = vmatprep.subr.bf16.mxu0 %v2011
    %2666 = vmatpush1.bf16.msra.mxu0 %v2010
    %2667 = vmatprep.mubr.bf16.mxu0 %v2019
    %2668 = vmatmul.mubr.bf16.gmra.mrb[0].mxu0 %v2018
    %v2669 = vpop.f32.mrb[0].mxu0
    %v2670 = vadd.f32 %v2629, %v2669
    %v2671 = vpop.f32.mrb[0].mxu0
    %v2672 = vadd.f32 %v2631, %v2671
    %v2673 = vpop.f32.mrb[0].mxu0
    %v2674 = vpop.f32.mrb[0].mxu0
    %2675 = vdwg.mxu0
    %v2676 = vld [vmem:[#allocation13] sm:$0xff]
    %v2678 = vlaneseq
    %v2679 = vshrl.u32 %v2678, 7
    %v2680 = vsub.s32 0, %v2679
    %v2681 = vrot.slane %v2676, %v2680
    %v2682 = vlaneseq
    %v2683 = vshrl.u32 %v2682, 7
    %v2684 = vsub.s32 1, %v2683
    %v2685 = vrot.slane %v2676, %v2684
    %v2686 = vlaneseq
    %v2687 = vshrl.u32 %v2686, 7
    %v2688 = vsub.s32 2, %v2687
    %v2689 = vrot.slane %v2676, %v2688
    %v2690 = vlaneseq
    %v2691 = vshrl.u32 %v2690, 7
    %v2692 = vsub.s32 3, %v2691
    %v2693 = vrot.slane %v2676, %v2692
    %v2694 = vlaneseq
    %v2695 = vshrl.u32 %v2694, 7
    %v2696 = vsub.s32 4, %v2695
    %v2697 = vrot.slane %v2676, %v2696
    %v2698 = vlaneseq
    %v2699 = vshrl.u32 %v2698, 7
    %v2700 = vsub.s32 5, %v2699
    %v2701 = vrot.slane %v2676, %v2700
    %v2702 = vlaneseq
    %v2703 = vshrl.u32 %v2702, 7
    %v2704 = vsub.s32 6, %v2703
    %v2705 = vrot.slane %v2676, %v2704
    %v2706 = vlaneseq
    %v2707 = vshrl.u32 %v2706, 7
    %v2708 = vsub.s32 7, %v2707
    %v2709 = vrot.slane %v2676, %v2708
    %v2718 = vmul.f32 %v2178, %v2681
    %v2719 = vmul.f32 %v2180, %v2685
    %v2720 = vmul.f32 %v2342, %v2689
    %v2721 = vmul.f32 %v2344, %v2693
    %v2722 = vmul.f32 %v2506, %v2697
    %v2723 = vmul.f32 %v2508, %v2701
    %v2724 = vmul.f32 %v2670, %v2705
    %v2725 = vmul.f32 %v2672, %v2709
    %v2726 = vld [vmem:[#allocation14] sm:$0xff]
    %v2728 = vlaneseq
    %v2729 = vshrl.u32 %v2728, 7
    %v2730 = vsub.s32 0, %v2729
    %v2731 = vrot.slane %v2726, %v2730
    %v2732 = vlaneseq
    %v2733 = vshrl.u32 %v2732, 7
    %v2734 = vsub.s32 1, %v2733
    %v2735 = vrot.slane %v2726, %v2734
    %v2736 = vlaneseq
    %v2737 = vshrl.u32 %v2736, 7
    %v2738 = vsub.s32 2, %v2737
    %v2739 = vrot.slane %v2726, %v2738
    %v2740 = vlaneseq
    %v2741 = vshrl.u32 %v2740, 7
    %v2742 = vsub.s32 3, %v2741
    %v2743 = vrot.slane %v2726, %v2742
    %v2744 = vlaneseq
    %v2745 = vshrl.u32 %v2744, 7
    %v2746 = vsub.s32 4, %v2745
    %v2747 = vrot.slane %v2726, %v2746
    %v2748 = vlaneseq
    %v2749 = vshrl.u32 %v2748, 7
    %v2750 = vsub.s32 5, %v2749
    %v2751 = vrot.slane %v2726, %v2750
    %v2752 = vlaneseq
    %v2753 = vshrl.u32 %v2752, 7
    %v2754 = vsub.s32 6, %v2753
    %v2755 = vrot.slane %v2726, %v2754
    %v2756 = vlaneseq
    %v2757 = vshrl.u32 %v2756, 7
    %v2758 = vsub.s32 7, %v2757
    %v2759 = vrot.slane %v2726, %v2758
    %v2768 = vadd.f32 %v2718, %v2731
    %v2769 = vadd.f32 %v2719, %v2735
    %v2770 = vadd.f32 %v2720, %v2739
    %v2771 = vadd.f32 %v2721, %v2743
    %v2772 = vadd.f32 %v2722, %v2747
    %v2773 = vadd.f32 %v2723, %v2751
    %v2774 = vadd.f32 %v2724, %v2755
    %v2775 = vadd.f32 %v2725, %v2759
    %v2776 = vmax.f32 %v2768, 0.0
    %v2777 = vmax.f32 %v2769, 0.0
    %v2778 = vmax.f32 %v2770, 0.0
    %v2779 = vmax.f32 %v2771, 0.0
    %v2780 = vmax.f32 %v2772, 0.0
    %v2781 = vmax.f32 %v2773, 0.0
    %v2782 = vmax.f32 %v2774, 0.0
    %v2783 = vmax.f32 %v2775, 0.0
    %v2784 = vpack.c.bf16 %v2776, %v2776
    %v2785 = vpack.c.bf16 %v2777, %v2777
    %v2786 = vpack.c.bf16 %v2778, %v2778
    %v2787 = vpack.c.bf16 %v2779, %v2779
    %v2788 = vpack.c.bf16 %v2780, %v2780
    %v2789 = vpack.c.bf16 %v2781, %v2781
    %v2790 = vpack.c.bf16 %v2782, %v2782
    %v2791 = vpack.c.bf16 %v2783, %v2783
    %v2792 = vld [vmem:[#allocation16] sm:$0xf]
    %v2793 = vld [vmem:[#allocation16 + $0x4] sm:$0xf]
    %v2794 = vld [vmem:[#allocation16 + $0x8] sm:$0xf]
    %v2795 = vld [vmem:[#allocation16 + $0xc] sm:$0xf]
    %v2796 = vld [vmem:[#allocation16 + $0x10] sm:$0xf]
    %v2797 = vld [vmem:[#allocation16 + $0x14] sm:$0xf]
    %v2798 = vld [vmem:[#allocation16 + $0x18] sm:$0xf]
    %v2799 = vld [vmem:[#allocation16 + $0x1c] sm:$0xf]
    %v2800 = vld [vmem:[#allocation16 + $0x20] sm:$0xf]
    %v2801 = vld [vmem:[#allocation16 + $0x24] sm:$0xf]
    %v2802 = vld [vmem:[#allocation16 + $0x28] sm:$0xf]
    %v2803 = vld [vmem:[#allocation16 + $0x2c] sm:$0xf]
    %v2804 = vld [vmem:[#allocation16 + $0x30] sm:$0xf]
    %v2805 = vld [vmem:[#allocation16 + $0x34] sm:$0xf]
    %v2806 = vld [vmem:[#allocation16 + $0x38] sm:$0xf]
    %v2807 = vld [vmem:[#allocation16 + $0x3c] sm:$0xf]
    %v2808 = vld [vmem:[#allocation16 + $0x40] sm:$0xf]
    %v2809 = vld [vmem:[#allocation16 + $0x44] sm:$0xf]
    %v2810 = vld [vmem:[#allocation16 + $0x48] sm:$0xf]
    %v2811 = vld [vmem:[#allocation16 + $0x4c] sm:$0xf]
    %v2812 = vld [vmem:[#allocation16 + $0x50] sm:$0xf]
    %v2813 = vld [vmem:[#allocation16 + $0x54] sm:$0xf]
    %v2814 = vld [vmem:[#allocation16 + $0x58] sm:$0xf]
    %v2815 = vld [vmem:[#allocation16 + $0x5c] sm:$0xf]
    %v2816 = vld [vmem:[#allocation16 + $0x60] sm:$0xf]
    %v2817 = vld [vmem:[#allocation16 + $0x64] sm:$0xf]
    %v2818 = vld [vmem:[#allocation16 + $0x68] sm:$0xf]
    %v2819 = vld [vmem:[#allocation16 + $0x6c] sm:$0xf]
    %v2820 = vld [vmem:[#allocation16 + $0x70] sm:$0xf]
    %v2821 = vld [vmem:[#allocation16 + $0x74] sm:$0xf]
    %v2822 = vld [vmem:[#allocation16 + $0x78] sm:$0xf]
    %v2823 = vld [vmem:[#allocation16 + $0x7c] sm:$0xf]
    %v2824 = vld [vmem:[#allocation16 + $0x80] sm:$0xf]
    %v2825 = vld [vmem:[#allocation16 + $0x84] sm:$0xf]
    %v2826 = vld [vmem:[#allocation16 + $0x88] sm:$0xf]
    %v2827 = vld [vmem:[#allocation16 + $0x8c] sm:$0xf]
    %v2828 = vld [vmem:[#allocation16 + $0x90] sm:$0xf]
    %v2829 = vld [vmem:[#allocation16 + $0x94] sm:$0xf]
    %v2830 = vld [vmem:[#allocation16 + $0x98] sm:$0xf]
    %v2831 = vld [vmem:[#allocation16 + $0x9c] sm:$0xf]
    %v2832 = vld [vmem:[#allocation16 + $0xa0] sm:$0xf]
    %v2833 = vld [vmem:[#allocation16 + $0xa4] sm:$0xf]
    %v2834 = vld [vmem:[#allocation16 + $0xa8] sm:$0xf]
    %v2835 = vld [vmem:[#allocation16 + $0xac] sm:$0xf]
    %v2836 = vld [vmem:[#allocation16 + $0xb0] sm:$0xf]
    %v2837 = vld [vmem:[#allocation16 + $0xb4] sm:$0xf]
    %v2838 = vld [vmem:[#allocation16 + $0xb8] sm:$0xf]
    %v2839 = vld [vmem:[#allocation16 + $0xbc] sm:$0xf]
    %v2840 = vld [vmem:[#allocation16 + $0xc0] sm:$0xf]
    %v2841 = vld [vmem:[#allocation16 + $0xc4] sm:$0xf]
    %v2842 = vld [vmem:[#allocation16 + $0xc8] sm:$0xf]
    %v2843 = vld [vmem:[#allocation16 + $0xcc] sm:$0xf]
    %v2844 = vld [vmem:[#allocation16 + $0xd0] sm:$0xf]
    %v2845 = vld [vmem:[#allocation16 + $0xd4] sm:$0xf]
    %v2846 = vld [vmem:[#allocation16 + $0xd8] sm:$0xf]
    %v2847 = vld [vmem:[#allocation16 + $0xdc] sm:$0xf]
    %v2848 = vld [vmem:[#allocation16 + $0xe0] sm:$0xf]
    %v2849 = vld [vmem:[#allocation16 + $0xe4] sm:$0xf]
    %v2850 = vld [vmem:[#allocation16 + $0xe8] sm:$0xf]
    %v2851 = vld [vmem:[#allocation16 + $0xec] sm:$0xf]
    %v2852 = vld [vmem:[#allocation16 + $0xf0] sm:$0xf]
    %v2853 = vld [vmem:[#allocation16 + $0xf4] sm:$0xf]
    %v2854 = vld [vmem:[#allocation16 + $0xf8] sm:$0xf]
    %v2855 = vld [vmem:[#allocation16 + $0xfc] sm:$0xf]
    %v2856 = vld [vmem:[#allocation16 + $0x100] sm:$0xf]
    %v2857 = vld [vmem:[#allocation16 + $0x104] sm:$0xf]
    %v2858 = vld [vmem:[#allocation16 + $0x108] sm:$0xf]
    %v2859 = vld [vmem:[#allocation16 + $0x10c] sm:$0xf]
    %v2860 = vld [vmem:[#allocation16 + $0x110] sm:$0xf]
    %v2861 = vld [vmem:[#allocation16 + $0x114] sm:$0xf]
    %v2862 = vld [vmem:[#allocation16 + $0x118] sm:$0xf]
    %v2863 = vld [vmem:[#allocation16 + $0x11c] sm:$0xf]
    %v2864 = vld [vmem:[#allocation16 + $0x120] sm:$0xf]
    %v2865 = vld [vmem:[#allocation16 + $0x124] sm:$0xf]
    %v2866 = vld [vmem:[#allocation16 + $0x128] sm:$0xf]
    %v2867 = vld [vmem:[#allocation16 + $0x12c] sm:$0xf]
    %v2868 = vld [vmem:[#allocation16 + $0x130] sm:$0xf]
    %v2869 = vld [vmem:[#allocation16 + $0x134] sm:$0xf]
    %v2870 = vld [vmem:[#allocation16 + $0x138] sm:$0xf]
    %v2871 = vld [vmem:[#allocation16 + $0x13c] sm:$0xf]
    %v2872 = vld [vmem:[#allocation16 + $0x140] sm:$0xf]
    %v2873 = vld [vmem:[#allocation16 + $0x144] sm:$0xf]
    %v2874 = vld [vmem:[#allocation16 + $0x148] sm:$0xf]
    %v2875 = vld [vmem:[#allocation16 + $0x14c] sm:$0xf]
    %v2876 = vld [vmem:[#allocation16 + $0x150] sm:$0xf]
    %v2877 = vld [vmem:[#allocation16 + $0x154] sm:$0xf]
    %v2878 = vld [vmem:[#allocation16 + $0x158] sm:$0xf]
    %v2879 = vld [vmem:[#allocation16 + $0x15c] sm:$0xf]
    %v2880 = vld [vmem:[#allocation16 + $0x160] sm:$0xf]
    %v2881 = vld [vmem:[#allocation16 + $0x164] sm:$0xf]
    %v2882 = vld [vmem:[#allocation16 + $0x168] sm:$0xf]
    %v2883 = vld [vmem:[#allocation16 + $0x16c] sm:$0xf]
    %v2884 = vld [vmem:[#allocation16 + $0x170] sm:$0xf]
    %v2885 = vld [vmem:[#allocation16 + $0x174] sm:$0xf]
    %v2886 = vld [vmem:[#allocation16 + $0x178] sm:$0xf]
    %v2887 = vld [vmem:[#allocation16 + $0x17c] sm:$0xf]
    %v2888 = vld [vmem:[#allocation16 + $0x180] sm:$0xf]
    %v2889 = vld [vmem:[#allocation16 + $0x184] sm:$0xf]
    %v2890 = vld [vmem:[#allocation16 + $0x188] sm:$0xf]
    %v2891 = vld [vmem:[#allocation16 + $0x18c] sm:$0xf]
    %v2892 = vld [vmem:[#allocation16 + $0x190] sm:$0xf]
    %v2893 = vld [vmem:[#allocation16 + $0x194] sm:$0xf]
    %v2894 = vld [vmem:[#allocation16 + $0x198] sm:$0xf]
    %v2895 = vld [vmem:[#allocation16 + $0x19c] sm:$0xf]
    %v2896 = vld [vmem:[#allocation16 + $0x1a0] sm:$0xf]
    %v2897 = vld [vmem:[#allocation16 + $0x1a4] sm:$0xf]
    %v2898 = vld [vmem:[#allocation16 + $0x1a8] sm:$0xf]
    %v2899 = vld [vmem:[#allocation16 + $0x1ac] sm:$0xf]
    %v2900 = vld [vmem:[#allocation16 + $0x1b0] sm:$0xf]
    %v2901 = vld [vmem:[#allocation16 + $0x1b4] sm:$0xf]
    %v2902 = vld [vmem:[#allocation16 + $0x1b8] sm:$0xf]
    %v2903 = vld [vmem:[#allocation16 + $0x1bc] sm:$0xf]
    %v2904 = vld [vmem:[#allocation16 + $0x1c0] sm:$0xf]
    %v2905 = vld [vmem:[#allocation16 + $0x1c4] sm:$0xf]
    %v2906 = vld [vmem:[#allocation16 + $0x1c8] sm:$0xf]
    %v2907 = vld [vmem:[#allocation16 + $0x1cc] sm:$0xf]
    %v2908 = vld [vmem:[#allocation16 + $0x1d0] sm:$0xf]
    %v2909 = vld [vmem:[#allocation16 + $0x1d4] sm:$0xf]
    %v2910 = vld [vmem:[#allocation16 + $0x1d8] sm:$0xf]
    %v2911 = vld [vmem:[#allocation16 + $0x1dc] sm:$0xf]
    %v2912 = vld [vmem:[#allocation16 + $0x1e0] sm:$0xf]
    %v2913 = vld [vmem:[#allocation16 + $0x1e4] sm:$0xf]
    %v2914 = vld [vmem:[#allocation16 + $0x1e8] sm:$0xf]
    %v2915 = vld [vmem:[#allocation16 + $0x1ec] sm:$0xf]
    %v2916 = vld [vmem:[#allocation16 + $0x1f0] sm:$0xf]
    %v2917 = vld [vmem:[#allocation16 + $0x1f4] sm:$0xf]
    %v2918 = vld [vmem:[#allocation16 + $0x1f8] sm:$0xf]
    %v2919 = vld [vmem:[#allocation16 + $0x1fc] sm:$0xf]
    %v2920 = vld [vmem:[#allocation17] sm:$0x1]
    %v2922 = vlaneseq
    %v2923 = vshrl.u32 %v2922, 7
    %v2924 = vsub.s32 0, %v2923
    %v2925 = vrot.slane %v2920, %v2924
    %v3055 = vunpack.c.l.b16 %v2792
    %v3056 = vunpack.c.l.b16 %v2793
    %v3057 = vunpack.c.l.b16 %v2794
    %v3058 = vunpack.c.l.b16 %v2795
    %v3059 = vunpack.c.l.b16 %v2796
    %v3060 = vunpack.c.l.b16 %v2797
    %v3061 = vunpack.c.l.b16 %v2798
    %v3062 = vunpack.c.l.b16 %v2799
    %v3063 = vunpack.c.l.b16 %v2800
    %v3064 = vunpack.c.l.b16 %v2801
    %v3065 = vunpack.c.l.b16 %v2802
    %v3066 = vunpack.c.l.b16 %v2803
    %v3067 = vunpack.c.l.b16 %v2804
    %v3068 = vunpack.c.l.b16 %v2805
    %v3069 = vunpack.c.l.b16 %v2806
    %v3070 = vunpack.c.l.b16 %v2807
    %v3071 = vunpack.c.l.b16 %v2808
    %v3072 = vunpack.c.l.b16 %v2809
    %v3073 = vunpack.c.l.b16 %v2810
    %v3074 = vunpack.c.l.b16 %v2811
    %v3075 = vunpack.c.l.b16 %v2812
    %v3076 = vunpack.c.l.b16 %v2813
    %v3077 = vunpack.c.l.b16 %v2814
    %v3078 = vunpack.c.l.b16 %v2815
    %v3079 = vunpack.c.l.b16 %v2816
    %v3080 = vunpack.c.l.b16 %v2817
    %v3081 = vunpack.c.l.b16 %v2818
    %v3082 = vunpack.c.l.b16 %v2819
    %v3083 = vunpack.c.l.b16 %v2820
    %v3084 = vunpack.c.l.b16 %v2821
    %v3085 = vunpack.c.l.b16 %v2822
    %v3086 = vunpack.c.l.b16 %v2823
    %v3087 = vunpack.c.l.b16 %v2824
    %v3088 = vunpack.c.l.b16 %v2825
    %v3089 = vunpack.c.l.b16 %v2826
    %v3090 = vunpack.c.l.b16 %v2827
    %v3091 = vunpack.c.l.b16 %v2828
    %v3092 = vunpack.c.l.b16 %v2829
    %v3093 = vunpack.c.l.b16 %v2830
    %v3094 = vunpack.c.l.b16 %v2831
    %v3095 = vunpack.c.l.b16 %v2832
    %v3096 = vunpack.c.l.b16 %v2833
    %v3097 = vunpack.c.l.b16 %v2834
    %v3098 = vunpack.c.l.b16 %v2835
    %v3099 = vunpack.c.l.b16 %v2836
    %v3100 = vunpack.c.l.b16 %v2837
    %v3101 = vunpack.c.l.b16 %v2838
    %v3102 = vunpack.c.l.b16 %v2839
    %v3103 = vunpack.c.l.b16 %v2840
    %v3104 = vunpack.c.l.b16 %v2841
    %v3105 = vunpack.c.l.b16 %v2842
    %v3106 = vunpack.c.l.b16 %v2843
    %v3107 = vunpack.c.l.b16 %v2844
    %v3108 = vunpack.c.l.b16 %v2845
    %v3109 = vunpack.c.l.b16 %v2846
    %v3110 = vunpack.c.l.b16 %v2847
    %v3111 = vunpack.c.l.b16 %v2848
    %v3112 = vunpack.c.l.b16 %v2849
    %v3113 = vunpack.c.l.b16 %v2850
    %v3114 = vunpack.c.l.b16 %v2851
    %v3115 = vunpack.c.l.b16 %v2852
    %v3116 = vunpack.c.l.b16 %v2853
    %v3117 = vunpack.c.l.b16 %v2854
    %v3118 = vunpack.c.l.b16 %v2855
    %v3119 = vunpack.c.l.b16 %v2856
    %v3120 = vunpack.c.l.b16 %v2857
    %v3121 = vunpack.c.l.b16 %v2858
    %v3122 = vunpack.c.l.b16 %v2859
    %v3123 = vunpack.c.l.b16 %v2860
    %v3124 = vunpack.c.l.b16 %v2861
    %v3125 = vunpack.c.l.b16 %v2862
    %v3126 = vunpack.c.l.b16 %v2863
    %v3127 = vunpack.c.l.b16 %v2864
    %v3128 = vunpack.c.l.b16 %v2865
    %v3129 = vunpack.c.l.b16 %v2866
    %v3130 = vunpack.c.l.b16 %v2867
    %v3131 = vunpack.c.l.b16 %v2868
    %v3132 = vunpack.c.l.b16 %v2869
    %v3133 = vunpack.c.l.b16 %v2870
    %v3134 = vunpack.c.l.b16 %v2871
    %v3135 = vunpack.c.l.b16 %v2872
    %v3136 = vunpack.c.l.b16 %v2873
    %v3137 = vunpack.c.l.b16 %v2874
    %v3138 = vunpack.c.l.b16 %v2875
    %v3139 = vunpack.c.l.b16 %v2876
    %v3140 = vunpack.c.l.b16 %v2877
    %v3141 = vunpack.c.l.b16 %v2878
    %v3142 = vunpack.c.l.b16 %v2879
    %v3143 = vunpack.c.l.b16 %v2880
    %v3144 = vunpack.c.l.b16 %v2881
    %v3145 = vunpack.c.l.b16 %v2882
    %v3146 = vunpack.c.l.b16 %v2883
    %v3147 = vunpack.c.l.b16 %v2884
    %v3148 = vunpack.c.l.b16 %v2885
    %v3149 = vunpack.c.l.b16 %v2886
    %v3150 = vunpack.c.l.b16 %v2887
    %v3151 = vunpack.c.l.b16 %v2888
    %v3152 = vunpack.c.l.b16 %v2889
    %v3153 = vunpack.c.l.b16 %v2890
    %v3154 = vunpack.c.l.b16 %v2891
    %v3155 = vunpack.c.l.b16 %v2892
    %v3156 = vunpack.c.l.b16 %v2893
    %v3157 = vunpack.c.l.b16 %v2894
    %v3158 = vunpack.c.l.b16 %v2895
    %v3159 = vunpack.c.l.b16 %v2896
    %v3160 = vunpack.c.l.b16 %v2897
    %v3161 = vunpack.c.l.b16 %v2898
    %v3162 = vunpack.c.l.b16 %v2899
    %v3163 = vunpack.c.l.b16 %v2900
    %v3164 = vunpack.c.l.b16 %v2901
    %v3165 = vunpack.c.l.b16 %v2902
    %v3166 = vunpack.c.l.b16 %v2903
    %v3167 = vunpack.c.l.b16 %v2904
    %v3168 = vunpack.c.l.b16 %v2905
    %v3169 = vunpack.c.l.b16 %v2906
    %v3170 = vunpack.c.l.b16 %v2907
    %v3171 = vunpack.c.l.b16 %v2908
    %v3172 = vunpack.c.l.b16 %v2909
    %v3173 = vunpack.c.l.b16 %v2910
    %v3174 = vunpack.c.l.b16 %v2911
    %v3175 = vunpack.c.l.b16 %v2912
    %v3176 = vunpack.c.l.b16 %v2913
    %v3177 = vunpack.c.l.b16 %v2914
    %v3178 = vunpack.c.l.b16 %v2915
    %v3179 = vunpack.c.l.b16 %v2916
    %v3180 = vunpack.c.l.b16 %v2917
    %v3181 = vunpack.c.l.b16 %v2918
    %v3182 = vunpack.c.l.b16 %v2919
    %v3183 = vpack.c.b16 %v3056, %v3055
    %v3184 = vpack.c.b16 %v3058, %v3057
    %v3185 = vpack.c.b16 %v3060, %v3059
    %v3186 = vpack.c.b16 %v3062, %v3061
    %v3187 = vpack.c.b16 %v3064, %v3063
    %v3188 = vpack.c.b16 %v3066, %v3065
    %v3189 = vpack.c.b16 %v3068, %v3067
    %v3190 = vpack.c.b16 %v3070, %v3069
    %v3191 = vpack.c.b16 %v3072, %v3071
    %v3192 = vpack.c.b16 %v3074, %v3073
    %v3193 = vpack.c.b16 %v3076, %v3075
    %v3194 = vpack.c.b16 %v3078, %v3077
    %v3195 = vpack.c.b16 %v3080, %v3079
    %v3196 = vpack.c.b16 %v3082, %v3081
    %v3197 = vpack.c.b16 %v3084, %v3083
    %v3198 = vpack.c.b16 %v3086, %v3085
    %v3199 = vpack.c.b16 %v3088, %v3087
    %v3200 = vpack.c.b16 %v3090, %v3089
    %v3201 = vpack.c.b16 %v3092, %v3091
    %v3202 = vpack.c.b16 %v3094, %v3093
    %v3203 = vpack.c.b16 %v3096, %v3095
    %v3204 = vpack.c.b16 %v3098, %v3097
    %v3205 = vpack.c.b16 %v3100, %v3099
    %v3206 = vpack.c.b16 %v3102, %v3101
    %v3207 = vpack.c.b16 %v3104, %v3103
    %v3208 = vpack.c.b16 %v3106, %v3105
    %v3209 = vpack.c.b16 %v3108, %v3107
    %v3210 = vpack.c.b16 %v3110, %v3109
    %v3211 = vpack.c.b16 %v3112, %v3111
    %v3212 = vpack.c.b16 %v3114, %v3113
    %v3213 = vpack.c.b16 %v3116, %v3115
    %v3214 = vpack.c.b16 %v3118, %v3117
    %v3215 = vpack.c.b16 %v3120, %v3119
    %v3216 = vpack.c.b16 %v3122, %v3121
    %v3217 = vpack.c.b16 %v3124, %v3123
    %v3218 = vpack.c.b16 %v3126, %v3125
    %v3219 = vpack.c.b16 %v3128, %v3127
    %v3220 = vpack.c.b16 %v3130, %v3129
    %v3221 = vpack.c.b16 %v3132, %v3131
    %v3222 = vpack.c.b16 %v3134, %v3133
    %v3223 = vpack.c.b16 %v3136, %v3135
    %v3224 = vpack.c.b16 %v3138, %v3137
    %v3225 = vpack.c.b16 %v3140, %v3139
    %v3226 = vpack.c.b16 %v3142, %v3141
    %v3227 = vpack.c.b16 %v3144, %v3143
    %v3228 = vpack.c.b16 %v3146, %v3145
    %v3229 = vpack.c.b16 %v3148, %v3147
    %v3230 = vpack.c.b16 %v3150, %v3149
    %v3231 = vpack.c.b16 %v3152, %v3151
    %v3232 = vpack.c.b16 %v3154, %v3153
    %v3233 = vpack.c.b16 %v3156, %v3155
    %v3234 = vpack.c.b16 %v3158, %v3157
    %v3235 = vpack.c.b16 %v3160, %v3159
    %v3236 = vpack.c.b16 %v3162, %v3161
    %v3237 = vpack.c.b16 %v3164, %v3163
    %v3238 = vpack.c.b16 %v3166, %v3165
    %v3239 = vpack.c.b16 %v3168, %v3167
    %v3240 = vpack.c.b16 %v3170, %v3169
    %v3241 = vpack.c.b16 %v3172, %v3171
    %v3242 = vpack.c.b16 %v3174, %v3173
    %v3243 = vpack.c.b16 %v3176, %v3175
    %v3244 = vpack.c.b16 %v3178, %v3177
    %v3245 = vpack.c.b16 %v3180, %v3179
    %v3246 = vpack.c.b16 %v3182, %v3181
    %3311 = vmatprep.subr.bf16.mxu0 0
    %3312 = vmatpush1.bf16.msra.mxu0 %v3183
    %3313 = vmatprep.subr.bf16.mxu0 0
    %3314 = vmatpush1.bf16.msra.mxu0 %v3184
    %3315 = vmatprep.subr.bf16.mxu0 0
    %3316 = vmatpush1.bf16.msra.mxu0 %v3185
    %3317 = vmatprep.subr.bf16.mxu0 0
    %3318 = vmatpush1.bf16.msra.mxu0 %v3186
    %3319 = vmatprep.subr.bf16.mxu0 0
    %3320 = vmatpush1.bf16.msra.mxu0 %v3187
    %3321 = vmatprep.subr.bf16.mxu0 0
    %3322 = vmatpush1.bf16.msra.mxu0 %v3188
    %3323 = vmatprep.subr.bf16.mxu0 0
    %3324 = vmatpush1.bf16.msra.mxu0 %v3189
    %3325 = vmatprep.subr.bf16.mxu0 0
    %3326 = vmatpush1.bf16.msra.mxu0 %v3190
    %3327 = vmatprep.subr.bf16.mxu0 0
    %3328 = vmatpush1.bf16.msra.mxu0 %v3191
    %3329 = vmatprep.subr.bf16.mxu0 0
    %3330 = vmatpush1.bf16.msra.mxu0 %v3192
    %3331 = vmatprep.subr.bf16.mxu0 0
    %3332 = vmatpush1.bf16.msra.mxu0 %v3193
    %3333 = vmatprep.subr.bf16.mxu0 0
    %3334 = vmatpush1.bf16.msra.mxu0 %v3194
    %3335 = vmatprep.subr.bf16.mxu0 0
    %3336 = vmatpush1.bf16.msra.mxu0 %v3195
    %3337 = vmatprep.subr.bf16.mxu0 0
    %3338 = vmatpush1.bf16.msra.mxu0 %v3196
    %3339 = vmatprep.subr.bf16.mxu0 0
    %3340 = vmatpush1.bf16.msra.mxu0 %v3197
    %3341 = vmatprep.subr.bf16.mxu0 0
    %3342 = vmatpush1.bf16.msra.mxu0 %v3198
    %3343 = vmatprep.mubr.bf16.mxu0 %v2785
    %3344 = vmatmul.mubr.bf16.gmra.mrb[0].mxu0 %v2784
    %v3345 = vpop.f32.mrb[0].mxu0
    %v3346 = vadd.f32 %v2925, %v3345
    %v3347 = vpop.f32.mrb[0].mxu0
    %v3348 = vpop.f32.mrb[0].mxu0
    %v3349 = vpop.f32.mrb[0].mxu0
    %3350 = vdwg.mxu0
    %3351 = vmatprep.subr.bf16.mxu0 0
    %3352 = vmatpush1.bf16.msra.mxu0 %v3199
    %3353 = vmatprep.subr.bf16.mxu0 0
    %3354 = vmatpush1.bf16.msra.mxu0 %v3200
    %3355 = vmatprep.subr.bf16.mxu0 0
    %3356 = vmatpush1.bf16.msra.mxu0 %v3201
    %3357 = vmatprep.subr.bf16.mxu0 0
    %3358 = vmatpush1.bf16.msra.mxu0 %v3202
    %3359 = vmatprep.subr.bf16.mxu0 0
    %3360 = vmatpush1.bf16.msra.mxu0 %v3203
    %3361 = vmatprep.subr.bf16.mxu0 0
    %3362 = vmatpush1.bf16.msra.mxu0 %v3204
    %3363 = vmatprep.subr.bf16.mxu0 0
    %3364 = vmatpush1.bf16.msra.mxu0 %v3205
    %3365 = vmatprep.subr.bf16.mxu0 0
    %3366 = vmatpush1.bf16.msra.mxu0 %v3206
    %3367 = vmatprep.subr.bf16.mxu0 0
    %3368 = vmatpush1.bf16.msra.mxu0 %v3207
    %3369 = vmatprep.subr.bf16.mxu0 0
    %3370 = vmatpush1.bf16.msra.mxu0 %v3208
    %3371 = vmatprep.subr.bf16.mxu0 0
    %3372 = vmatpush1.bf16.msra.mxu0 %v3209
    %3373 = vmatprep.subr.bf16.mxu0 0
    %3374 = vmatpush1.bf16.msra.mxu0 %v3210
    %3375 = vmatprep.subr.bf16.mxu0 0
    %3376 = vmatpush1.bf16.msra.mxu0 %v3211
    %3377 = vmatprep.subr.bf16.mxu0 0
    %3378 = vmatpush1.bf16.msra.mxu0 %v3212
    %3379 = vmatprep.subr.bf16.mxu0 0
    %3380 = vmatpush1.bf16.msra.mxu0 %v3213
    %3381 = vmatprep.subr.bf16.mxu0 0
    %3382 = vmatpush1.bf16.msra.mxu0 %v3214
    %3383 = vmatprep.mubr.bf16.mxu0 %v2787
    %3384 = vmatmul.mubr.bf16.gmra.mrb[0].mxu0 %v2786
    %v3385 = vpop.f32.mrb[0].mxu0
    %v3386 = vadd.f32 %v3346, %v3385
    %v3387 = vpop.f32.mrb[0].mxu0
    %v3388 = vpop.f32.mrb[0].mxu0
    %v3389 = vpop.f32.mrb[0].mxu0
    %3390 = vdwg.mxu0
    %3391 = vmatprep.subr.bf16.mxu0 0
    %3392 = vmatpush1.bf16.msra.mxu0 %v3215
    %3393 = vmatprep.subr.bf16.mxu0 0
    %3394 = vmatpush1.bf16.msra.mxu0 %v3216
    %3395 = vmatprep.subr.bf16.mxu0 0
    %3396 = vmatpush1.bf16.msra.mxu0 %v3217
    %3397 = vmatprep.subr.bf16.mxu0 0
    %3398 = vmatpush1.bf16.msra.mxu0 %v3218
    %3399 = vmatprep.subr.bf16.mxu0 0
    %3400 = vmatpush1.bf16.msra.mxu0 %v3219
    %3401 = vmatprep.subr.bf16.mxu0 0
    %3402 = vmatpush1.bf16.msra.mxu0 %v3220
    %3403 = vmatprep.subr.bf16.mxu0 0
    %3404 = vmatpush1.bf16.msra.mxu0 %v3221
    %3405 = vmatprep.subr.bf16.mxu0 0
    %3406 = vmatpush1.bf16.msra.mxu0 %v3222
    %3407 = vmatprep.subr.bf16.mxu0 0
    %3408 = vmatpush1.bf16.msra.mxu0 %v3223
    %3409 = vmatprep.subr.bf16.mxu0 0
    %3410 = vmatpush1.bf16.msra.mxu0 %v3224
    %3411 = vmatprep.subr.bf16.mxu0 0
    %3412 = vmatpush1.bf16.msra.mxu0 %v3225
    %3413 = vmatprep.subr.bf16.mxu0 0
    %3414 = vmatpush1.bf16.msra.mxu0 %v3226
    %3415 = vmatprep.subr.bf16.mxu0 0
    %3416 = vmatpush1.bf16.msra.mxu0 %v3227
    %3417 = vmatprep.subr.bf16.mxu0 0
    %3418 = vmatpush1.bf16.msra.mxu0 %v3228
    %3419 = vmatprep.subr.bf16.mxu0 0
    %3420 = vmatpush1.bf16.msra.mxu0 %v3229
    %3421 = vmatprep.subr.bf16.mxu0 0
    %3422 = vmatpush1.bf16.msra.mxu0 %v3230
    %3423 = vmatprep.mubr.bf16.mxu0 %v2789
    %3424 = vmatmul.mubr.bf16.gmra.mrb[0].mxu0 %v2788
    %v3425 = vpop.f32.mrb[0].mxu0
    %v3426 = vadd.f32 %v3386, %v3425
    %v3427 = vpop.f32.mrb[0].mxu0
    %v3428 = vpop.f32.mrb[0].mxu0
    %v3429 = vpop.f32.mrb[0].mxu0
    %3430 = vdwg.mxu0
    %3431 = vmatprep.subr.bf16.mxu0 0
    %3432 = vmatpush1.bf16.msra.mxu0 %v3231
    %3433 = vmatprep.subr.bf16.mxu0 0
    %3434 = vmatpush1.bf16.msra.mxu0 %v3232
    %3435 = vmatprep.subr.bf16.mxu0 0
    %3436 = vmatpush1.bf16.msra.mxu0 %v3233
    %3437 = vmatprep.subr.bf16.mxu0 0
    %3438 = vmatpush1.bf16.msra.mxu0 %v3234
    %3439 = vmatprep.subr.bf16.mxu0 0
    %3440 = vmatpush1.bf16.msra.mxu0 %v3235
    %3441 = vmatprep.subr.bf16.mxu0 0
    %3442 = vmatpush1.bf16.msra.mxu0 %v3236
    %3443 = vmatprep.subr.bf16.mxu0 0
    %3444 = vmatpush1.bf16.msra.mxu0 %v3237
    %3445 = vmatprep.subr.bf16.mxu0 0
    %3446 = vmatpush1.bf16.msra.mxu0 %v3238
    %3447 = vmatprep.subr.bf16.mxu0 0
    %3448 = vmatpush1.bf16.msra.mxu0 %v3239
    %3449 = vmatprep.subr.bf16.mxu0 0
    %3450 = vmatpush1.bf16.msra.mxu0 %v3240
    %3451 = vmatprep.subr.bf16.mxu0 0
    %3452 = vmatpush1.bf16.msra.mxu0 %v3241
    %3453 = vmatprep.subr.bf16.mxu0 0
    %3454 = vmatpush1.bf16.msra.mxu0 %v3242
    %3455 = vmatprep.subr.bf16.mxu0 0
    %3456 = vmatpush1.bf16.msra.mxu0 %v3243
    %3457 = vmatprep.subr.bf16.mxu0 0
    %3458 = vmatpush1.bf16.msra.mxu0 %v3244
    %3459 = vmatprep.subr.bf16.mxu0 0
    %3460 = vmatpush1.bf16.msra.mxu0 %v3245
    %3461 = vmatprep.subr.bf16.mxu0 0
    %3462 = vmatpush1.bf16.msra.mxu0 %v3246
    %3463 = vmatprep.mubr.bf16.mxu0 %v2791
    %3464 = vmatmul.mubr.bf16.gmra.mrb[0].mxu0 %v2790
    %v3465 = vpop.f32.mrb[0].mxu0
    %v3466 = vadd.f32 %v3426, %v3465
    %v3467 = vpop.f32.mrb[0].mxu0
    %v3468 = vpop.f32.mrb[0].mxu0
    %v3469 = vpop.f32.mrb[0].mxu0
    %3470 = vdwg.mxu0
    %v3471 = vmax.f32 %v3466, 0.0
    %v3472 = vld [vmem:[#allocation5] sm:$0x3]
    %v3473 = vpack.c.bf16 %v3472, %v3472
    %v3474 = vld [vmem:[%s12] sm:$0x7]
    %v3475 = vld [vmem:[#allocation19] sm:$0x1]
    %v3477 = vlaneseq
    %v3478 = vshrl.u32 %v3477, 7
    %v3479 = vsub.s32 0, %v3478
    %v3480 = vrot.slane %v3475, %v3479
    %vm3482 = vcmask 39936
    %v3484 = vsel %vm3482, %v3473, 0
    %vm3486 = vcmask 1042432
    %v3487 = vsel %vm323, 4294967295, 65535
    %v3488 = vsel %vm3486, %v3487, 0
    %v3490 = vand.u32 %v3474, %v3488
    %3492 = vmatprep.subr.bf16.mxu0 0
    %3493 = vmatpush1.bf16.msra.mxu0 %v3490
    %3494 = vmatprep.subr.bf16.mxu0 0
    %3495 = vmatpush1.bf16.msra.mxu0 0
    %3496 = vmatprep.subr.bf16.mxu0 0
    %3497 = vmatpush1.bf16.msra.mxu0 0
    %3498 = vmatprep.subr.bf16.mxu0 0
    %3499 = vmatpush1.bf16.msra.mxu0 0
    %3500 = vmatprep.subr.bf16.mxu0 0
    %3501 = vmatpush1.bf16.msra.mxu0 0
    %3502 = vmatprep.subr.bf16.mxu0 0
    %3503 = vmatpush1.bf16.msra.mxu0 0
    %3504 = vmatprep.subr.bf16.mxu0 0
    %3505 = vmatpush1.bf16.msra.mxu0 0
    %3506 = vmatprep.subr.bf16.mxu0 0
    %3507 = vmatpush1.bf16.msra.mxu0 0
    %3508 = vmatprep.subr.bf16.mxu0 0
    %3509 = vmatpush1.bf16.msra.mxu0 0
    %3510 = vmatprep.subr.bf16.mxu0 0
    %3511 = vmatpush1.bf16.msra.mxu0 0
    %3512 = vmatprep.subr.bf16.mxu0 0
    %3513 = vmatpush1.bf16.msra.mxu0 0
    %3514 = vmatprep.subr.bf16.mxu0 0
    %3515 = vmatpush1.bf16.msra.mxu0 0
    %3516 = vmatprep.subr.bf16.mxu0 0
    %3517 = vmatpush1.bf16.msra.mxu0 0
    %3518 = vmatprep.subr.bf16.mxu0 0
    %3519 = vmatpush1.bf16.msra.mxu0 0
    %3520 = vmatprep.subr.bf16.mxu0 0
    %3521 = vmatpush1.bf16.msra.mxu0 0
    %3522 = vmatprep.subr.bf16.mxu0 0
    %3523 = vmatpush1.bf16.msra.mxu0 0
    %3524 = vmatprep.mubr.bf16.mxu0 0
    %3525 = vmatmul.mubr.bf16.gmra.mrb[0].mxu0 %v3484
    %v3526 = vpop.f32.mrb[0].mxu0
    %v3527 = vadd.f32 %v3480, %v3526
    %v3528 = vpop.f32.mrb[0].mxu0
    %v3529 = vpop.f32.mrb[0].mxu0
    %v3530 = vpop.f32.mrb[0].mxu0
    %3531 = vdwg.mxu0
    %v3532 = vmax.f32 %v3527, 0.0
    %v3533 = vpack.c.bf16 %v3532, %v3532
    %v3534 = vld [vmem:[%s14] sm:$0xf]
    %v3535 = vld [vmem:[%s14 + $0x4] sm:$0xf]
    %v3536 = vld [vmem:[%s14 + $0x8] sm:$0xf]
    %v3537 = vld [vmem:[%s14 + $0xc] sm:$0xf]
    %v3538 = vld [vmem:[%s14 + $0x10] sm:$0xf]
    %v3539 = vld [vmem:[%s14 + $0x14] sm:$0xf]
    %v3540 = vld [vmem:[%s14 + $0x18] sm:$0xf]
    %v3541 = vld [vmem:[%s14 + $0x1c] sm:$0xf]
    %v3542 = vld [vmem:[#allocation20] sm:$0x1]
    %v3544 = vlaneseq
    %v3545 = vshrl.u32 %v3544, 7
    %v3546 = vsub.s32 0, %v3545
    %v3547 = vrot.slane %v3542, %v3546
    %v3557 = vunpack.c.l.b16 %v3534
    %v3558 = vunpack.c.l.b16 %v3535
    %v3559 = vunpack.c.l.b16 %v3536
    %v3560 = vunpack.c.l.b16 %v3537
    %v3561 = vunpack.c.l.b16 %v3538
    %v3562 = vunpack.c.l.b16 %v3539
    %v3563 = vunpack.c.l.b16 %v3540
    %v3564 = vunpack.c.l.b16 %v3541
    %v3565 = vpack.c.b16 %v3558, %v3557
    %v3566 = vpack.c.b16 %v3560, %v3559
    %v3567 = vpack.c.b16 %v3562, %v3561
    %v3568 = vpack.c.b16 %v3564, %v3563
    %vm3573 = vcmask 523264
    %v3575 = vsel %vm3573, %v3533, 0
    %3577 = vmatprep.subr.bf16.mxu0 0
    %3578 = vmatpush1.bf16.msra.mxu0 %v3565
    %3579 = vmatprep.subr.bf16.mxu0 0
    %3580 = vmatpush1.bf16.msra.mxu0 %v3566
    %3581 = vmatprep.subr.bf16.mxu0 0
    %3582 = vmatpush1.bf16.msra.mxu0 %v3567
    %3583 = vmatprep.subr.bf16.mxu0 0
    %3584 = vmatpush1.bf16.msra.mxu0 %v3568
    %3585 = vmatprep.subr.bf16.mxu0 0
    %3586 = vmatpush1.bf16.msra.mxu0 0
    %3587 = vmatprep.subr.bf16.mxu0 0
    %3588 = vmatpush1.bf16.msra.mxu0 0
    %3589 = vmatprep.subr.bf16.mxu0 0
    %3590 = vmatpush1.bf16.msra.mxu0 0
    %3591 = vmatprep.subr.bf16.mxu0 0
    %3592 = vmatpush1.bf16.msra.mxu0 0
    %3593 = vmatprep.subr.bf16.mxu0 0
    %3594 = vmatpush1.bf16.msra.mxu0 0
    %3595 = vmatprep.subr.bf16.mxu0 0
    %3596 = vmatpush1.bf16.msra.mxu0 0
    %3597 = vmatprep.subr.bf16.mxu0 0
    %3598 = vmatpush1.bf16.msra.mxu0 0
    %3599 = vmatprep.subr.bf16.mxu0 0
    %3600 = vmatpush1.bf16.msra.mxu0 0
    %3601 = vmatprep.subr.bf16.mxu0 0
    %3602 = vmatpush1.bf16.msra.mxu0 0
    %3603 = vmatprep.subr.bf16.mxu0 0
    %3604 = vmatpush1.bf16.msra.mxu0 0
    %3605 = vmatprep.subr.bf16.mxu0 0
    %3606 = vmatpush1.bf16.msra.mxu0 0
    %3607 = vmatprep.subr.bf16.mxu0 0
    %3608 = vmatpush1.bf16.msra.mxu0 0
    %3609 = vmatprep.mubr.bf16.mxu0 0
    %3610 = vmatmul.mubr.bf16.gmra.mrb[0].mxu0 %v3575
    %v3611 = vpop.f32.mrb[0].mxu0
    %v3612 = vadd.f32 %v3547, %v3611
    %v3613 = vpop.f32.mrb[0].mxu0
    %v3614 = vpop.f32.mrb[0].mxu0
    %v3615 = vpop.f32.mrb[0].mxu0
    %3616 = vdwg.mxu0
    %v3617 = vmax.f32 %v3612, 0.0
    %v3618 = vpack.c.bf16 %v3471, %v3471
    %v3619 = vld [vmem:[#allocation22] sm:$0xff]
    %v3620 = vld [vmem:[#allocation22 + $0x8] sm:$0xff]
    %v3621 = vld [vmem:[#allocation22 + $0x10] sm:$0xff]
    %v3622 = vld [vmem:[#allocation22 + $0x18] sm:$0xff]
    %v3623 = vld [vmem:[#allocation22 + $0x20] sm:$0xff]
    %v3624 = vld [vmem:[#allocation22 + $0x28] sm:$0xff]
    %v3625 = vld [vmem:[#allocation22 + $0x30] sm:$0xff]
    %v3626 = vld [vmem:[#allocation22 + $0x38] sm:$0xff]
    %v3627 = vld [vmem:[#allocation22 + $0x40] sm:$0xff]
    %v3628 = vld [vmem:[#allocation22 + $0x48] sm:$0xff]
    %v3629 = vld [vmem:[#allocation22 + $0x50] sm:$0xff]
    %v3630 = vld [vmem:[#allocation22 + $0x58] sm:$0xff]
    %v3631 = vld [vmem:[#allocation22 + $0x60] sm:$0xff]
    %v3632 = vld [vmem:[#allocation22 + $0x68] sm:$0xff]
    %v3633 = vld [vmem:[#allocation22 + $0x70] sm:$0xff]
    %v3634 = vld [vmem:[#allocation22 + $0x78] sm:$0xff]
    %v3635 = vld [vmem:[#allocation22 + $0x80] sm:$0xff]
    %v3636 = vld [vmem:[#allocation22 + $0x88] sm:$0xff]
    %v3637 = vld [vmem:[#allocation22 + $0x90] sm:$0xff]
    %v3638 = vld [vmem:[#allocation22 + $0x98] sm:$0xff]
    %v3639 = vld [vmem:[#allocation22 + $0xa0] sm:$0xff]
    %v3640 = vld [vmem:[#allocation22 + $0xa8] sm:$0xff]
    %v3641 = vld [vmem:[#allocation22 + $0xb0] sm:$0xff]
    %v3642 = vld [vmem:[#allocation22 + $0xb8] sm:$0xff]
    %v3643 = vld [vmem:[#allocation22 + $0xc0] sm:$0xff]
    %v3644 = vld [vmem:[#allocation22 + $0xc8] sm:$0xff]
    %v3645 = vld [vmem:[#allocation22 + $0xd0] sm:$0xff]
    %v3646 = vld [vmem:[#allocation22 + $0xd8] sm:$0xff]
    %v3647 = vld [vmem:[#allocation22 + $0xe0] sm:$0xff]
    %v3648 = vld [vmem:[#allocation22 + $0xe8] sm:$0xff]
    %v3649 = vld [vmem:[#allocation22 + $0xf0] sm:$0xff]
    %v3650 = vld [vmem:[#allocation22 + $0xf8] sm:$0xff]
    %v3651 = vpack.c.bf16 %v3617, %v3617
    %v3652 = vld [vmem:[#allocation23] sm:$0xff]
    %v3653 = vld [vmem:[#allocation23 + $0x8] sm:$0xff]
    %v3654 = vld [vmem:[#allocation23 + $0x10] sm:$0xff]
    %v3655 = vld [vmem:[#allocation23 + $0x18] sm:$0xff]
    %v3656 = vld [vmem:[#allocation23 + $0x20] sm:$0xff]
    %v3657 = vld [vmem:[#allocation23 + $0x28] sm:$0xff]
    %v3658 = vld [vmem:[#allocation23 + $0x30] sm:$0xff]
    %v3659 = vld [vmem:[#allocation23 + $0x38] sm:$0xff]
    %v3660 = vld [vmem:[#allocation23 + $0x40] sm:$0xff]
    %v3661 = vld [vmem:[#allocation23 + $0x48] sm:$0xff]
    %v3662 = vld [vmem:[#allocation23 + $0x50] sm:$0xff]
    %v3663 = vld [vmem:[#allocation23 + $0x58] sm:$0xff]
    %v3664 = vld [vmem:[#allocation23 + $0x60] sm:$0xff]
    %v3665 = vld [vmem:[#allocation23 + $0x68] sm:$0xff]
    %v3666 = vld [vmem:[#allocation23 + $0x70] sm:$0xff]
    %v3667 = vld [vmem:[#allocation23 + $0x78] sm:$0xff]
    %v3668 = vld [vmem:[#allocation23 + $0x80] sm:$0xff]
    %v3669 = vld [vmem:[#allocation23 + $0x88] sm:$0xff]
    %v3670 = vld [vmem:[#allocation23 + $0x90] sm:$0xff]
    %v3671 = vld [vmem:[#allocation23 + $0x98] sm:$0xff]
    %v3672 = vld [vmem:[#allocation23 + $0xa0] sm:$0xff]
    %v3673 = vld [vmem:[#allocation23 + $0xa8] sm:$0xff]
    %v3674 = vld [vmem:[#allocation23 + $0xb0] sm:$0xff]
    %v3675 = vld [vmem:[#allocation23 + $0xb8] sm:$0xff]
    %v3676 = vld [vmem:[#allocation23 + $0xc0] sm:$0xff]
    %v3677 = vld [vmem:[#allocation23 + $0xc8] sm:$0xff]
    %v3678 = vld [vmem:[#allocation23 + $0xd0] sm:$0xff]
    %v3679 = vld [vmem:[#allocation23 + $0xd8] sm:$0xff]
    %v3680 = vld [vmem:[#allocation23 + $0xe0] sm:$0xff]
    %v3681 = vld [vmem:[#allocation23 + $0xe8] sm:$0xff]
    %v3682 = vld [vmem:[#allocation23 + $0xf0] sm:$0xff]
    %v3683 = vld [vmem:[#allocation23 + $0xf8] sm:$0xff]
    %v3716 = vunpack.c.l.b16 %v3652
    %v3717 = vunpack.c.h.b16 %v3652
    %v3718 = vunpack.c.l.b16 %v3653
    %v3719 = vunpack.c.h.b16 %v3653
    %v3720 = vunpack.c.l.b16 %v3654
    %v3721 = vunpack.c.h.b16 %v3654
    %v3722 = vunpack.c.l.b16 %v3655
    %v3723 = vunpack.c.h.b16 %v3655
    %v3724 = vunpack.c.l.b16 %v3656
    %v3725 = vunpack.c.h.b16 %v3656
    %v3726 = vunpack.c.l.b16 %v3657
    %v3727 = vunpack.c.h.b16 %v3657
    %v3728 = vunpack.c.l.b16 %v3658
    %v3729 = vunpack.c.h.b16 %v3658
    %v3730 = vunpack.c.l.b16 %v3659
    %v3731 = vunpack.c.h.b16 %v3659
    %v3732 = vunpack.c.l.b16 %v3660
    %v3733 = vunpack.c.h.b16 %v3660
    %v3734 = vunpack.c.l.b16 %v3661
    %v3735 = vunpack.c.h.b16 %v3661
    %v3736 = vunpack.c.l.b16 %v3662
    %v3737 = vunpack.c.h.b16 %v3662
    %v3738 = vunpack.c.l.b16 %v3663
    %v3739 = vunpack.c.h.b16 %v3663
    %v3740 = vunpack.c.l.b16 %v3664
    %v3741 = vunpack.c.h.b16 %v3664
    %v3742 = vunpack.c.l.b16 %v3665
    %v3743 = vunpack.c.h.b16 %v3665
    %v3744 = vunpack.c.l.b16 %v3666
    %v3745 = vunpack.c.h.b16 %v3666
    %v3746 = vunpack.c.l.b16 %v3667
    %v3747 = vunpack.c.h.b16 %v3667
    %v3748 = vunpack.c.l.b16 %v3668
    %v3749 = vunpack.c.h.b16 %v3668
    %v3750 = vunpack.c.l.b16 %v3669
    %v3751 = vunpack.c.h.b16 %v3669
    %v3752 = vunpack.c.l.b16 %v3670
    %v3753 = vunpack.c.h.b16 %v3670
    %v3754 = vunpack.c.l.b16 %v3671
    %v3755 = vunpack.c.h.b16 %v3671
    %v3756 = vunpack.c.l.b16 %v3672
    %v3757 = vunpack.c.h.b16 %v3672
    %v3758 = vunpack.c.l.b16 %v3673
    %v3759 = vunpack.c.h.b16 %v3673
    %v3760 = vunpack.c.l.b16 %v3674
    %v3761 = vunpack.c.h.b16 %v3674
    %v3762 = vunpack.c.l.b16 %v3675
    %v3763 = vunpack.c.h.b16 %v3675
    %v3764 = vunpack.c.l.b16 %v3676
    %v3765 = vunpack.c.h.b16 %v3676
    %v3766 = vunpack.c.l.b16 %v3677
    %v3767 = vunpack.c.h.b16 %v3677
    %v3768 = vunpack.c.l.b16 %v3678
    %v3769 = vunpack.c.h.b16 %v3678
    %v3770 = vunpack.c.l.b16 %v3679
    %v3771 = vunpack.c.h.b16 %v3679
    %v3772 = vunpack.c.l.b16 %v3680
    %v3773 = vunpack.c.h.b16 %v3680
    %v3774 = vunpack.c.l.b16 %v3681
    %v3775 = vunpack.c.h.b16 %v3681
    %v3776 = vunpack.c.l.b16 %v3682
    %v3777 = vunpack.c.h.b16 %v3682
    %v3778 = vunpack.c.l.b16 %v3683
    %v3779 = vunpack.c.h.b16 %v3683
    %v3780 = vpack.c.b16 %v3720, %v3716
    %v3781 = vpack.c.b16 %v3721, %v3717
    %v3782 = vpack.c.b16 %v3722, %v3718
    %v3783 = vpack.c.b16 %v3723, %v3719
    %v3784 = vpack.c.b16 %v3728, %v3724
    %v3785 = vpack.c.b16 %v3729, %v3725
    %v3786 = vpack.c.b16 %v3730, %v3726
    %v3787 = vpack.c.b16 %v3731, %v3727
    %v3788 = vpack.c.b16 %v3736, %v3732
    %v3789 = vpack.c.b16 %v3737, %v3733
    %v3790 = vpack.c.b16 %v3738, %v3734
    %v3791 = vpack.c.b16 %v3739, %v3735
    %v3792 = vpack.c.b16 %v3744, %v3740
    %v3793 = vpack.c.b16 %v3745, %v3741
    %v3794 = vpack.c.b16 %v3746, %v3742
    %v3795 = vpack.c.b16 %v3747, %v3743
    %v3796 = vpack.c.b16 %v3752, %v3748
    %v3797 = vpack.c.b16 %v3753, %v3749
    %v3798 = vpack.c.b16 %v3754, %v3750
    %v3799 = vpack.c.b16 %v3755, %v3751
    %v3800 = vpack.c.b16 %v3760, %v3756
    %v3801 = vpack.c.b16 %v3761, %v3757
    %v3802 = vpack.c.b16 %v3762, %v3758
    %v3803 = vpack.c.b16 %v3763, %v3759
    %v3804 = vpack.c.b16 %v3768, %v3764
    %v3805 = vpack.c.b16 %v3769, %v3765
    %v3806 = vpack.c.b16 %v3770, %v3766
    %v3807 = vpack.c.b16 %v3771, %v3767
    %v3808 = vpack.c.b16 %v3776, %v3772
    %v3809 = vpack.c.b16 %v3777, %v3773
    %v3810 = vpack.c.b16 %v3778, %v3774
    %v3811 = vpack.c.b16 %v3779, %v3775
    %3844 = vmatprep.subr.bf16.mxu0 %v3781
    %3845 = vmatpush1.bf16.msra.mxu0 %v3780
    %3846 = vmatprep.subr.bf16.mxu0 %v3785
    %3847 = vmatpush1.bf16.msra.mxu0 %v3784
    %3848 = vmatprep.subr.bf16.mxu0 %v3789
    %3849 = vmatpush1.bf16.msra.mxu0 %v3788
    %3850 = vmatprep.subr.bf16.mxu0 %v3793
    %3851 = vmatpush1.bf16.msra.mxu0 %v3792
    %3852 = vmatprep.subr.bf16.mxu0 %v3797
    %3853 = vmatpush1.bf16.msra.mxu0 %v3796
    %3854 = vmatprep.subr.bf16.mxu0 %v3801
    %3855 = vmatpush1.bf16.msra.mxu0 %v3800
    %3856 = vmatprep.subr.bf16.mxu0 %v3805
    %3857 = vmatpush1.bf16.msra.mxu0 %v3804
    %3858 = vmatprep.subr.bf16.mxu0 %v3809
    %3859 = vmatpush1.bf16.msra.mxu0 %v3808
    %3860 = vmatprep.subr.bf16.mxu0 0
    %3861 = vmatpush1.bf16.msra.mxu0 0
    %3862 = vmatprep.subr.bf16.mxu0 0
    %3863 = vmatpush1.bf16.msra.mxu0 0
    %3864 = vmatprep.subr.bf16.mxu0 0
    %3865 = vmatpush1.bf16.msra.mxu0 0
    %3866 = vmatprep.subr.bf16.mxu0 0
    %3867 = vmatpush1.bf16.msra.mxu0 0
    %3868 = vmatprep.subr.bf16.mxu0 0
    %3869 = vmatpush1.bf16.msra.mxu0 0
    %3870 = vmatprep.subr.bf16.mxu0 0
    %3871 = vmatpush1.bf16.msra.mxu0 0
    %3872 = vmatprep.subr.bf16.mxu0 0
    %3873 = vmatpush1.bf16.msra.mxu0 0
    %3874 = vmatprep.subr.bf16.mxu0 0
    %3875 = vmatpush1.bf16.msra.mxu0 0
    %3876 = vmatprep.mubr.bf16.mxu0 0
    %3877 = vmatmul.mubr.bf16.gmra.mrb[0].mxu0 %v3651
    %v3878 = vpop.f32.mrb[0].mxu0
    %v3879 = vadd.f32 0.0, %v3878
    %v3880 = vpop.f32.mrb[0].mxu0
    %v3881 = vadd.f32 0.0, %v3880
    %v3882 = vpop.f32.mrb[0].mxu0
    %v3883 = vpop.f32.mrb[0].mxu0
    %3884 = vdwg.mxu0
    %3885 = vmatprep.subr.bf16.mxu0 %v3783
    %3886 = vmatpush1.bf16.msra.mxu0 %v3782
    %3887 = vmatprep.subr.bf16.mxu0 %v3787
    %3888 = vmatpush1.bf16.msra.mxu0 %v3786
    %3889 = vmatprep.subr.bf16.mxu0 %v3791
    %3890 = vmatpush1.bf16.msra.mxu0 %v3790
    %3891 = vmatprep.subr.bf16.mxu0 %v3795
    %3892 = vmatpush1.bf16.msra.mxu0 %v3794
    %3893 = vmatprep.subr.bf16.mxu0 %v3799
    %3894 = vmatpush1.bf16.msra.mxu0 %v3798
    %3895 = vmatprep.subr.bf16.mxu0 %v3803
    %3896 = vmatpush1.bf16.msra.mxu0 %v3802
    %3897 = vmatprep.subr.bf16.mxu0 %v3807
    %3898 = vmatpush1.bf16.msra.mxu0 %v3806
    %3899 = vmatprep.subr.bf16.mxu0 %v3811
    %3900 = vmatpush1.bf16.msra.mxu0 %v3810
    %3901 = vmatprep.subr.bf16.mxu0 0
    %3902 = vmatpush1.bf16.msra.mxu0 0
    %3903 = vmatprep.subr.bf16.mxu0 0
    %3904 = vmatpush1.bf16.msra.mxu0 0
    %3905 = vmatprep.subr.bf16.mxu0 0
    %3906 = vmatpush1.bf16.msra.mxu0 0
    %3907 = vmatprep.subr.bf16.mxu0 0
    %3908 = vmatpush1.bf16.msra.mxu0 0
    %3909 = vmatprep.subr.bf16.mxu0 0
    %3910 = vmatpush1.bf16.msra.mxu0 0
    %3911 = vmatprep.subr.bf16.mxu0 0
    %3912 = vmatpush1.bf16.msra.mxu0 0
    %3913 = vmatprep.subr.bf16.mxu0 0
    %3914 = vmatpush1.bf16.msra.mxu0 0
    %3915 = vmatprep.subr.bf16.mxu0 0
    %3916 = vmatpush1.bf16.msra.mxu0 0
    %3917 = vmatprep.mubr.bf16.mxu0 0
    %3918 = vmatmul.mubr.bf16.gmra.mrb[0].mxu0 %v3651
    %v3919 = vpop.f32.mrb[0].mxu0
    %v3920 = vadd.f32 0.0, %v3919
    %v3921 = vpop.f32.mrb[0].mxu0
    %v3922 = vadd.f32 0.0, %v3921
    %v3923 = vpop.f32.mrb[0].mxu0
    %v3924 = vpop.f32.mrb[0].mxu0
    %3925 = vdwg.mxu0
    %v3958 = vunpack.c.l.b16 %v3619
    %v3959 = vunpack.c.h.b16 %v3619
    %v3960 = vunpack.c.l.b16 %v3620
    %v3961 = vunpack.c.h.b16 %v3620
    %v3962 = vunpack.c.l.b16 %v3621
    %v3963 = vunpack.c.h.b16 %v3621
    %v3964 = vunpack.c.l.b16 %v3622
    %v3965 = vunpack.c.h.b16 %v3622
    %v3966 = vunpack.c.l.b16 %v3623
    %v3967 = vunpack.c.h.b16 %v3623
    %v3968 = vunpack.c.l.b16 %v3624
    %v3969 = vunpack.c.h.b16 %v3624
    %v3970 = vunpack.c.l.b16 %v3625
    %v3971 = vunpack.c.h.b16 %v3625
    %v3972 = vunpack.c.l.b16 %v3626
    %v3973 = vunpack.c.h.b16 %v3626
    %v3974 = vunpack.c.l.b16 %v3627
    %v3975 = vunpack.c.h.b16 %v3627
    %v3976 = vunpack.c.l.b16 %v3628
    %v3977 = vunpack.c.h.b16 %v3628
    %v3978 = vunpack.c.l.b16 %v3629
    %v3979 = vunpack.c.h.b16 %v3629
    %v3980 = vunpack.c.l.b16 %v3630
    %v3981 = vunpack.c.h.b16 %v3630
    %v3982 = vunpack.c.l.b16 %v3631
    %v3983 = vunpack.c.h.b16 %v3631
    %v3984 = vunpack.c.l.b16 %v3632
    %v3985 = vunpack.c.h.b16 %v3632
    %v3986 = vunpack.c.l.b16 %v3633
    %v3987 = vunpack.c.h.b16 %v3633
    %v3988 = vunpack.c.l.b16 %v3634
    %v3989 = vunpack.c.h.b16 %v3634
    %v3990 = vunpack.c.l.b16 %v3635
    %v3991 = vunpack.c.h.b16 %v3635
    %v3992 = vunpack.c.l.b16 %v3636
    %v3993 = vunpack.c.h.b16 %v3636
    %v3994 = vunpack.c.l.b16 %v3637
    %v3995 = vunpack.c.h.b16 %v3637
    %v3996 = vunpack.c.l.b16 %v3638
    %v3997 = vunpack.c.h.b16 %v3638
    %v3998 = vunpack.c.l.b16 %v3639
    %v3999 = vunpack.c.h.b16 %v3639
    %v4000 = vunpack.c.l.b16 %v3640
    %v4001 = vunpack.c.h.b16 %v3640
    %v4002 = vunpack.c.l.b16 %v3641
    %v4003 = vunpack.c.h.b16 %v3641
    %v4004 = vunpack.c.l.b16 %v3642
    %v4005 = vunpack.c.h.b16 %v3642
    %v4006 = vunpack.c.l.b16 %v3643
    %v4007 = vunpack.c.h.b16 %v3643
    %v4008 = vunpack.c.l.b16 %v3644
    %v4009 = vunpack.c.h.b16 %v3644
    %v4010 = vunpack.c.l.b16 %v3645
    %v4011 = vunpack.c.h.b16 %v3645
    %v4012 = vunpack.c.l.b16 %v3646
    %v4013 = vunpack.c.h.b16 %v3646
    %v4014 = vunpack.c.l.b16 %v3647
    %v4015 = vunpack.c.h.b16 %v3647
    %v4016 = vunpack.c.l.b16 %v3648
    %v4017 = vunpack.c.h.b16 %v3648
    %v4018 = vunpack.c.l.b16 %v3649
    %v4019 = vunpack.c.h.b16 %v3649
    %v4020 = vunpack.c.l.b16 %v3650
    %v4021 = vunpack.c.h.b16 %v3650
    %v4022 = vpack.c.b16 %v3962, %v3958
    %v4023 = vpack.c.b16 %v3963, %v3959
    %v4024 = vpack.c.b16 %v3964, %v3960
    %v4025 = vpack.c.b16 %v3965, %v3961
    %v4026 = vpack.c.b16 %v3970, %v3966
    %v4027 = vpack.c.b16 %v3971, %v3967
    %v4028 = vpack.c.b16 %v3972, %v3968
    %v4029 = vpack.c.b16 %v3973, %v3969
    %v4030 = vpack.c.b16 %v3978, %v3974
    %v4031 = vpack.c.b16 %v3979, %v3975
    %v4032 = vpack.c.b16 %v3980, %v3976
    %v4033 = vpack.c.b16 %v3981, %v3977
    %v4034 = vpack.c.b16 %v3986, %v3982
    %v4035 = vpack.c.b16 %v3987, %v3983
    %v4036 = vpack.c.b16 %v3988, %v3984
    %v4037 = vpack.c.b16 %v3989, %v3985
    %v4038 = vpack.c.b16 %v3994, %v3990
    %v4039 = vpack.c.b16 %v3995, %v3991
    %v4040 = vpack.c.b16 %v3996, %v3992
    %v4041 = vpack.c.b16 %v3997, %v3993
    %v4042 = vpack.c.b16 %v4002, %v3998
    %v4043 = vpack.c.b16 %v4003, %v3999
    %v4044 = vpack.c.b16 %v4004, %v4000
    %v4045 = vpack.c.b16 %v4005, %v4001
    %v4046 = vpack.c.b16 %v4010, %v4006
    %v4047 = vpack.c.b16 %v4011, %v4007
    %v4048 = vpack.c.b16 %v4012, %v4008
    %v4049 = vpack.c.b16 %v4013, %v4009
    %v4050 = vpack.c.b16 %v4018, %v4014
    %v4051 = vpack.c.b16 %v4019, %v4015
    %v4052 = vpack.c.b16 %v4020, %v4016
    %v4053 = vpack.c.b16 %v4021, %v4017
    %4086 = vmatprep.subr.bf16.mxu0 %v4023
    %4087 = vmatpush1.bf16.msra.mxu0 %v4022
    %4088 = vmatprep.subr.bf16.mxu0 %v4027
    %4089 = vmatpush1.bf16.msra.mxu0 %v4026
    %4090 = vmatprep.subr.bf16.mxu0 %v4031
    %4091 = vmatpush1.bf16.msra.mxu0 %v4030
    %4092 = vmatprep.subr.bf16.mxu0 %v4035
    %4093 = vmatpush1.bf16.msra.mxu0 %v4034
    %4094 = vmatprep.subr.bf16.mxu0 %v4039
    %4095 = vmatpush1.bf16.msra.mxu0 %v4038
    %4096 = vmatprep.subr.bf16.mxu0 %v4043
    %4097 = vmatpush1.bf16.msra.mxu0 %v4042
    %4098 = vmatprep.subr.bf16.mxu0 %v4047
    %4099 = vmatpush1.bf16.msra.mxu0 %v4046
    %4100 = vmatprep.subr.bf16.mxu0 %v4051
    %4101 = vmatpush1.bf16.msra.mxu0 %v4050
    %4102 = vmatprep.subr.bf16.mxu0 0
    %4103 = vmatpush1.bf16.msra.mxu0 0
    %4104 = vmatprep.subr.bf16.mxu0 0
    %4105 = vmatpush1.bf16.msra.mxu0 0
    %4106 = vmatprep.subr.bf16.mxu0 0
    %4107 = vmatpush1.bf16.msra.mxu0 0
    %4108 = vmatprep.subr.bf16.mxu0 0
    %4109 = vmatpush1.bf16.msra.mxu0 0
    %4110 = vmatprep.subr.bf16.mxu0 0
    %4111 = vmatpush1.bf16.msra.mxu0 0
    %4112 = vmatprep.subr.bf16.mxu0 0
    %4113 = vmatpush1.bf16.msra.mxu0 0
    %4114 = vmatprep.subr.bf16.mxu0 0
    %4115 = vmatpush1.bf16.msra.mxu0 0
    %4116 = vmatprep.subr.bf16.mxu0 0
    %4117 = vmatpush1.bf16.msra.mxu0 0
    %4118 = vmatprep.mubr.bf16.mxu0 0
    %4119 = vmatmul.mubr.bf16.gmra.mrb[0].mxu0 %v3618
    %v4120 = vpop.f32.mrb[0].mxu0
    %v4121 = vadd.f32 %v3879, %v4120
    %v4122 = vpop.f32.mrb[0].mxu0
    %v4123 = vadd.f32 %v3881, %v4122
    %v4124 = vpop.f32.mrb[0].mxu0
    %v4125 = vpop.f32.mrb[0].mxu0
    %4126 = vdwg.mxu0
    %4127 = vmatprep.subr.bf16.mxu0 %v4025
    %4128 = vmatpush1.bf16.msra.mxu0 %v4024
    %4129 = vmatprep.subr.bf16.mxu0 %v4029
    %4130 = vmatpush1.bf16.msra.mxu0 %v4028
    %4131 = vmatprep.subr.bf16.mxu0 %v4033
    %4132 = vmatpush1.bf16.msra.mxu0 %v4032
    %4133 = vmatprep.subr.bf16.mxu0 %v4037
    %4134 = vmatpush1.bf16.msra.mxu0 %v4036
    %4135 = vmatprep.subr.bf16.mxu0 %v4041
    %4136 = vmatpush1.bf16.msra.mxu0 %v4040
    %4137 = vmatprep.subr.bf16.mxu0 %v4045
    %4138 = vmatpush1.bf16.msra.mxu0 %v4044
    %4139 = vmatprep.subr.bf16.mxu0 %v4049
    %4140 = vmatpush1.bf16.msra.mxu0 %v4048
    %4141 = vmatprep.subr.bf16.mxu0 %v4053
    %4142 = vmatpush1.bf16.msra.mxu0 %v4052
    %4143 = vmatprep.subr.bf16.mxu0 0
    %4144 = vmatpush1.bf16.msra.mxu0 0
    %4145 = vmatprep.subr.bf16.mxu0 0
    %4146 = vmatpush1.bf16.msra.mxu0 0
    %4147 = vmatprep.subr.bf16.mxu0 0
    %4148 = vmatpush1.bf16.msra.mxu0 0
    %4149 = vmatprep.subr.bf16.mxu0 0
    %4150 = vmatpush1.bf16.msra.mxu0 0
    %4151 = vmatprep.subr.bf16.mxu0 0
    %4152 = vmatpush1.bf16.msra.mxu0 0
    %4153 = vmatprep.subr.bf16.mxu0 0
    %4154 = vmatpush1.bf16.msra.mxu0 0
    %4155 = vmatprep.subr.bf16.mxu0 0
    %4156 = vmatpush1.bf16.msra.mxu0 0
    %4157 = vmatprep.subr.bf16.mxu0 0
    %4158 = vmatpush1.bf16.msra.mxu0 0
    %4159 = vmatprep.mubr.bf16.mxu0 0
    %4160 = vmatmul.mubr.bf16.gmra.mrb[0].mxu0 %v3618
    %v4161 = vpop.f32.mrb[0].mxu0
    %v4162 = vadd.f32 %v3920, %v4161
    %v4163 = vpop.f32.mrb[0].mxu0
    %v4164 = vadd.f32 %v3922, %v4163
    %v4165 = vpop.f32.mrb[0].mxu0
    %v4166 = vpop.f32.mrb[0].mxu0
    %4167 = vdwg.mxu0
    %v4168 = vld [vmem:[%s18] sm:$0xf]
    %v4170 = vlaneseq
    %v4171 = vshrl.u32 %v4170, 7
    %v4172 = vsub.s32 0, %v4171
    %v4173 = vrot.slane %v4168, %v4172
    %v4174 = vlaneseq
    %v4175 = vshrl.u32 %v4174, 7
    %v4176 = vsub.s32 1, %v4175
    %v4177 = vrot.slane %v4168, %v4176
    %v4178 = vlaneseq
    %v4179 = vshrl.u32 %v4178, 7
    %v4180 = vsub.s32 2, %v4179
    %v4181 = vrot.slane %v4168, %v4180
    %v4182 = vlaneseq
    %v4183 = vshrl.u32 %v4182, 7
    %v4184 = vsub.s32 3, %v4183
    %v4185 = vrot.slane %v4168, %v4184
    %v4190 = vadd.f32 %v4121, %v4173
    %v4191 = vadd.f32 %v4123, %v4177
    %v4192 = vadd.f32 %v4162, %v4181
    %v4193 = vadd.f32 %v4164, %v4185
    %v4194 = vmax.f32 %v4190, 0.0
    %v4195 = vmax.f32 %v4191, 0.0
    %v4196 = vmax.f32 %v4192, 0.0
    %v4197 = vmax.f32 %v4193, 0.0
    %v4198 = vpack.c.bf16 %v4194, %v4194
    %v4199 = vpack.c.bf16 %v4195, %v4195
    %v4200 = vpack.c.bf16 %v4196, %v4196
    %v4201 = vpack.c.bf16 %v4197, %v4197
    %v4202 = vld [vmem:[#allocation25] sm:$0xff]
    %v4203 = vld [vmem:[#allocation25 + $0x8] sm:$0xff]
    %v4204 = vld [vmem:[#allocation25 + $0x10] sm:$0xff]
    %v4205 = vld [vmem:[#allocation25 + $0x18] sm:$0xff]
    %v4206 = vld [vmem:[#allocation25 + $0x20] sm:$0xff]
    %v4207 = vld [vmem:[#allocation25 + $0x28] sm:$0xff]
    %v4208 = vld [vmem:[#allocation25 + $0x30] sm:$0xff]
    %v4209 = vld [vmem:[#allocation25 + $0x38] sm:$0xff]
    %v4210 = vld [vmem:[#allocation25 + $0x40] sm:$0xff]
    %v4211 = vld [vmem:[#allocation25 + $0x48] sm:$0xff]
    %v4212 = vld [vmem:[#allocation25 + $0x50] sm:$0xff]
    %v4213 = vld [vmem:[#allocation25 + $0x58] sm:$0xff]
    %v4214 = vld [vmem:[#allocation25 + $0x60] sm:$0xff]
    %v4215 = vld [vmem:[#allocation25 + $0x68] sm:$0xff]
    %v4216 = vld [vmem:[#allocation25 + $0x70] sm:$0xff]
    %v4217 = vld [vmem:[#allocation25 + $0x78] sm:$0xff]
    %v4218 = vld [vmem:[#allocation25 + $0x80] sm:$0xff]
    %v4219 = vld [vmem:[#allocation25 + $0x88] sm:$0xff]
    %v4220 = vld [vmem:[#allocation25 + $0x90] sm:$0xff]
    %v4221 = vld [vmem:[#allocation25 + $0x98] sm:$0xff]
    %v4222 = vld [vmem:[#allocation25 + $0xa0] sm:$0xff]
    %v4223 = vld [vmem:[#allocation25 + $0xa8] sm:$0xff]
    %v4224 = vld [vmem:[#allocation25 + $0xb0] sm:$0xff]
    %v4225 = vld [vmem:[#allocation25 + $0xb8] sm:$0xff]
    %v4226 = vld [vmem:[#allocation25 + $0xc0] sm:$0xff]
    %v4227 = vld [vmem:[#allocation25 + $0xc8] sm:$0xff]
    %v4228 = vld [vmem:[#allocation25 + $0xd0] sm:$0xff]
    %v4229 = vld [vmem:[#allocation25 + $0xd8] sm:$0xff]
    %v4230 = vld [vmem:[#allocation25 + $0xe0] sm:$0xff]
    %v4231 = vld [vmem:[#allocation25 + $0xe8] sm:$0xff]
    %v4232 = vld [vmem:[#allocation25 + $0xf0] sm:$0xff]
    %v4233 = vld [vmem:[#allocation25 + $0xf8] sm:$0xff]
    %v4234 = vld [vmem:[#allocation25 + $0x100] sm:$0xff]
    %v4235 = vld [vmem:[#allocation25 + $0x108] sm:$0xff]
    %v4236 = vld [vmem:[#allocation25 + $0x110] sm:$0xff]
    %v4237 = vld [vmem:[#allocation25 + $0x118] sm:$0xff]
    %v4238 = vld [vmem:[#allocation25 + $0x120] sm:$0xff]
    %v4239 = vld [vmem:[#allocation25 + $0x128] sm:$0xff]
    %v4240 = vld [vmem:[#allocation25 + $0x130] sm:$0xff]
    %v4241 = vld [vmem:[#allocation25 + $0x138] sm:$0xff]
    %v4242 = vld [vmem:[#allocation25 + $0x140] sm:$0xff]
    %v4243 = vld [vmem:[#allocation25 + $0x148] sm:$0xff]
    %v4244 = vld [vmem:[#allocation25 + $0x150] sm:$0xff]
    %v4245 = vld [vmem:[#allocation25 + $0x158] sm:$0xff]
    %v4246 = vld [vmem:[#allocation25 + $0x160] sm:$0xff]
    %v4247 = vld [vmem:[#allocation25 + $0x168] sm:$0xff]
    %v4248 = vld [vmem:[#allocation25 + $0x170] sm:$0xff]
    %v4249 = vld [vmem:[#allocation25 + $0x178] sm:$0xff]
    %v4250 = vld [vmem:[#allocation25 + $0x180] sm:$0xff]
    %v4251 = vld [vmem:[#allocation25 + $0x188] sm:$0xff]
    %v4252 = vld [vmem:[#allocation25 + $0x190] sm:$0xff]
    %v4253 = vld [vmem:[#allocation25 + $0x198] sm:$0xff]
    %v4254 = vld [vmem:[#allocation25 + $0x1a0] sm:$0xff]
    %v4255 = vld [vmem:[#allocation25 + $0x1a8] sm:$0xff]
    %v4256 = vld [vmem:[#allocation25 + $0x1b0] sm:$0xff]
    %v4257 = vld [vmem:[#allocation25 + $0x1b8] sm:$0xff]
    %v4258 = vld [vmem:[#allocation25 + $0x1c0] sm:$0xff]
    %v4259 = vld [vmem:[#allocation25 + $0x1c8] sm:$0xff]
    %v4260 = vld [vmem:[#allocation25 + $0x1d0] sm:$0xff]
    %v4261 = vld [vmem:[#allocation25 + $0x1d8] sm:$0xff]
    %v4262 = vld [vmem:[#allocation25 + $0x1e0] sm:$0xff]
    %v4263 = vld [vmem:[#allocation25 + $0x1e8] sm:$0xff]
    %v4264 = vld [vmem:[#allocation25 + $0x1f0] sm:$0xff]
    %v4265 = vld [vmem:[#allocation25 + $0x1f8] sm:$0xff]
    %v4266 = vld [vmem:[%s20] sm:$0x3]
    %v4268 = vlaneseq
    %v4269 = vshrl.u32 %v4268, 7
    %v4270 = vsub.s32 0, %v4269
    %v4271 = vrot.slane %v4266, %v4270
    %v4272 = vlaneseq
    %v4273 = vshrl.u32 %v4272, 7
    %v4274 = vsub.s32 1, %v4273
    %v4275 = vrot.slane %v4266, %v4274
    %v4342 = vunpack.c.l.b16 %v4202
    %v4343 = vunpack.c.h.b16 %v4202
    %v4344 = vunpack.c.l.b16 %v4203
    %v4345 = vunpack.c.h.b16 %v4203
    %v4346 = vunpack.c.l.b16 %v4204
    %v4347 = vunpack.c.h.b16 %v4204
    %v4348 = vunpack.c.l.b16 %v4205
    %v4349 = vunpack.c.h.b16 %v4205
    %v4350 = vunpack.c.l.b16 %v4206
    %v4351 = vunpack.c.h.b16 %v4206
    %v4352 = vunpack.c.l.b16 %v4207
    %v4353 = vunpack.c.h.b16 %v4207
    %v4354 = vunpack.c.l.b16 %v4208
    %v4355 = vunpack.c.h.b16 %v4208
    %v4356 = vunpack.c.l.b16 %v4209
    %v4357 = vunpack.c.h.b16 %v4209
    %v4358 = vunpack.c.l.b16 %v4210
    %v4359 = vunpack.c.h.b16 %v4210
    %v4360 = vunpack.c.l.b16 %v4211
    %v4361 = vunpack.c.h.b16 %v4211
    %v4362 = vunpack.c.l.b16 %v4212
    %v4363 = vunpack.c.h.b16 %v4212
    %v4364 = vunpack.c.l.b16 %v4213
    %v4365 = vunpack.c.h.b16 %v4213
    %v4366 = vunpack.c.l.b16 %v4214
    %v4367 = vunpack.c.h.b16 %v4214
    %v4368 = vunpack.c.l.b16 %v4215
    %v4369 = vunpack.c.h.b16 %v4215
    %v4370 = vunpack.c.l.b16 %v4216
    %v4371 = vunpack.c.h.b16 %v4216
    %v4372 = vunpack.c.l.b16 %v4217
    %v4373 = vunpack.c.h.b16 %v4217
    %v4374 = vunpack.c.l.b16 %v4218
    %v4375 = vunpack.c.h.b16 %v4218
    %v4376 = vunpack.c.l.b16 %v4219
    %v4377 = vunpack.c.h.b16 %v4219
    %v4378 = vunpack.c.l.b16 %v4220
    %v4379 = vunpack.c.h.b16 %v4220
    %v4380 = vunpack.c.l.b16 %v4221
    %v4381 = vunpack.c.h.b16 %v4221
    %v4382 = vunpack.c.l.b16 %v4222
    %v4383 = vunpack.c.h.b16 %v4222
    %v4384 = vunpack.c.l.b16 %v4223
    %v4385 = vunpack.c.h.b16 %v4223
    %v4386 = vunpack.c.l.b16 %v4224
    %v4387 = vunpack.c.h.b16 %v4224
    %v4388 = vunpack.c.l.b16 %v4225
    %v4389 = vunpack.c.h.b16 %v4225
    %v4390 = vunpack.c.l.b16 %v4226
    %v4391 = vunpack.c.h.b16 %v4226
    %v4392 = vunpack.c.l.b16 %v4227
    %v4393 = vunpack.c.h.b16 %v4227
    %v4394 = vunpack.c.l.b16 %v4228
    %v4395 = vunpack.c.h.b16 %v4228
    %v4396 = vunpack.c.l.b16 %v4229
    %v4397 = vunpack.c.h.b16 %v4229
    %v4398 = vunpack.c.l.b16 %v4230
    %v4399 = vunpack.c.h.b16 %v4230
    %v4400 = vunpack.c.l.b16 %v4231
    %v4401 = vunpack.c.h.b16 %v4231
    %v4402 = vunpack.c.l.b16 %v4232
    %v4403 = vunpack.c.h.b16 %v4232
    %v4404 = vunpack.c.l.b16 %v4233
    %v4405 = vunpack.c.h.b16 %v4233
    %v4406 = vunpack.c.l.b16 %v4234
    %v4407 = vunpack.c.h.b16 %v4234
    %v4408 = vunpack.c.l.b16 %v4235
    %v4409 = vunpack.c.h.b16 %v4235
    %v4410 = vunpack.c.l.b16 %v4236
    %v4411 = vunpack.c.h.b16 %v4236
    %v4412 = vunpack.c.l.b16 %v4237
    %v4413 = vunpack.c.h.b16 %v4237
    %v4414 = vunpack.c.l.b16 %v4238
    %v4415 = vunpack.c.h.b16 %v4238
    %v4416 = vunpack.c.l.b16 %v4239
    %v4417 = vunpack.c.h.b16 %v4239
    %v4418 = vunpack.c.l.b16 %v4240
    %v4419 = vunpack.c.h.b16 %v4240
    %v4420 = vunpack.c.l.b16 %v4241
    %v4421 = vunpack.c.h.b16 %v4241
    %v4422 = vunpack.c.l.b16 %v4242
    %v4423 = vunpack.c.h.b16 %v4242
    %v4424 = vunpack.c.l.b16 %v4243
    %v4425 = vunpack.c.h.b16 %v4243
    %v4426 = vunpack.c.l.b16 %v4244
    %v4427 = vunpack.c.h.b16 %v4244
    %v4428 = vunpack.c.l.b16 %v4245
    %v4429 = vunpack.c.h.b16 %v4245
    %v4430 = vunpack.c.l.b16 %v4246
    %v4431 = vunpack.c.h.b16 %v4246
    %v4432 = vunpack.c.l.b16 %v4247
    %v4433 = vunpack.c.h.b16 %v4247
    %v4434 = vunpack.c.l.b16 %v4248
    %v4435 = vunpack.c.h.b16 %v4248
    %v4436 = vunpack.c.l.b16 %v4249
    %v4437 = vunpack.c.h.b16 %v4249
    %v4438 = vunpack.c.l.b16 %v4250
    %v4439 = vunpack.c.h.b16 %v4250
    %v4440 = vunpack.c.l.b16 %v4251
    %v4441 = vunpack.c.h.b16 %v4251
    %v4442 = vunpack.c.l.b16 %v4252
    %v4443 = vunpack.c.h.b16 %v4252
    %v4444 = vunpack.c.l.b16 %v4253
    %v4445 = vunpack.c.h.b16 %v4253
    %v4446 = vunpack.c.l.b16 %v4254
    %v4447 = vunpack.c.h.b16 %v4254
    %v4448 = vunpack.c.l.b16 %v4255
    %v4449 = vunpack.c.h.b16 %v4255
    %v4450 = vunpack.c.l.b16 %v4256
    %v4451 = vunpack.c.h.b16 %v4256
    %v4452 = vunpack.c.l.b16 %v4257
    %v4453 = vunpack.c.h.b16 %v4257
    %v4454 = vunpack.c.l.b16 %v4258
    %v4455 = vunpack.c.h.b16 %v4258
    %v4456 = vunpack.c.l.b16 %v4259
    %v4457 = vunpack.c.h.b16 %v4259
    %v4458 = vunpack.c.l.b16 %v4260
    %v4459 = vunpack.c.h.b16 %v4260
    %v4460 = vunpack.c.l.b16 %v4261
    %v4461 = vunpack.c.h.b16 %v4261
    %v4462 = vunpack.c.l.b16 %v4262
    %v4463 = vunpack.c.h.b16 %v4262
    %v4464 = vunpack.c.l.b16 %v4263
    %v4465 = vunpack.c.h.b16 %v4263
    %v4466 = vunpack.c.l.b16 %v4264
    %v4467 = vunpack.c.h.b16 %v4264
    %v4468 = vunpack.c.l.b16 %v4265
    %v4469 = vunpack.c.h.b16 %v4265
    %v4470 = vpack.c.b16 %v4344, %v4342
    %v4471 = vpack.c.b16 %v4345, %v4343
    %v4472 = vpack.c.b16 %v4348, %v4346
    %v4473 = vpack.c.b16 %v4349, %v4347
    %v4474 = vpack.c.b16 %v4352, %v4350
    %v4475 = vpack.c.b16 %v4353, %v4351
    %v4476 = vpack.c.b16 %v4356, %v4354
    %v4477 = vpack.c.b16 %v4357, %v4355
    %v4478 = vpack.c.b16 %v4360, %v4358
    %v4479 = vpack.c.b16 %v4361, %v4359
    %v4480 = vpack.c.b16 %v4364, %v4362
    %v4481 = vpack.c.b16 %v4365, %v4363
    %v4482 = vpack.c.b16 %v4368, %v4366
    %v4483 = vpack.c.b16 %v4369, %v4367
    %v4484 = vpack.c.b16 %v4372, %v4370
    %v4485 = vpack.c.b16 %v4373, %v4371
    %v4486 = vpack.c.b16 %v4376, %v4374
    %v4487 = vpack.c.b16 %v4377, %v4375
    %v4488 = vpack.c.b16 %v4380, %v4378
    %v4489 = vpack.c.b16 %v4381, %v4379
    %v4490 = vpack.c.b16 %v4384, %v4382
    %v4491 = vpack.c.b16 %v4385, %v4383
    %v4492 = vpack.c.b16 %v4388, %v4386
    %v4493 = vpack.c.b16 %v4389, %v4387
    %v4494 = vpack.c.b16 %v4392, %v4390
    %v4495 = vpack.c.b16 %v4393, %v4391
    %v4496 = vpack.c.b16 %v4396, %v4394
    %v4497 = vpack.c.b16 %v4397, %v4395
    %v4498 = vpack.c.b16 %v4400, %v4398
    %v4499 = vpack.c.b16 %v4401, %v4399
    %v4500 = vpack.c.b16 %v4404, %v4402
    %v4501 = vpack.c.b16 %v4405, %v4403
    %v4502 = vpack.c.b16 %v4408, %v4406
    %v4503 = vpack.c.b16 %v4409, %v4407
    %v4504 = vpack.c.b16 %v4412, %v4410
    %v4505 = vpack.c.b16 %v4413, %v4411
    %v4506 = vpack.c.b16 %v4416, %v4414
    %v4507 = vpack.c.b16 %v4417, %v4415
    %v4508 = vpack.c.b16 %v4420, %v4418
    %v4509 = vpack.c.b16 %v4421, %v4419
    %v4510 = vpack.c.b16 %v4424, %v4422
    %v4511 = vpack.c.b16 %v4425, %v4423
    %v4512 = vpack.c.b16 %v4428, %v4426
    %v4513 = vpack.c.b16 %v4429, %v4427
    %v4514 = vpack.c.b16 %v4432, %v4430
    %v4515 = vpack.c.b16 %v4433, %v4431
    %v4516 = vpack.c.b16 %v4436, %v4434
    %v4517 = vpack.c.b16 %v4437, %v4435
    %v4518 = vpack.c.b16 %v4440, %v4438
    %v4519 = vpack.c.b16 %v4441, %v4439
    %v4520 = vpack.c.b16 %v4444, %v4442
    %v4521 = vpack.c.b16 %v4445, %v4443
    %v4522 = vpack.c.b16 %v4448, %v4446
    %v4523 = vpack.c.b16 %v4449, %v4447
    %v4524 = vpack.c.b16 %v4452, %v4450
    %v4525 = vpack.c.b16 %v4453, %v4451
    %v4526 = vpack.c.b16 %v4456, %v4454
    %v4527 = vpack.c.b16 %v4457, %v4455
    %v4528 = vpack.c.b16 %v4460, %v4458
    %v4529 = vpack.c.b16 %v4461, %v4459
    %v4530 = vpack.c.b16 %v4464, %v4462
    %v4531 = vpack.c.b16 %v4465, %v4463
    %v4532 = vpack.c.b16 %v4468, %v4466
    %v4533 = vpack.c.b16 %v4469, %v4467
    %4598 = vmatprep.subr.bf16.mxu0 %v4471
    %4599 = vmatpush1.bf16.msra.mxu0 %v4470
    %4600 = vmatprep.subr.bf16.mxu0 %v4473
    %4601 = vmatpush1.bf16.msra.mxu0 %v4472
    %4602 = vmatprep.subr.bf16.mxu0 %v4475
    %4603 = vmatpush1.bf16.msra.mxu0 %v4474
    %4604 = vmatprep.subr.bf16.mxu0 %v4477
    %4605 = vmatpush1.bf16.msra.mxu0 %v4476
    %4606 = vmatprep.subr.bf16.mxu0 %v4479
    %4607 = vmatpush1.bf16.msra.mxu0 %v4478
    %4608 = vmatprep.subr.bf16.mxu0 %v4481
    %4609 = vmatpush1.bf16.msra.mxu0 %v4480
    %4610 = vmatprep.subr.bf16.mxu0 %v4483
    %4611 = vmatpush1.bf16.msra.mxu0 %v4482
    %4612 = vmatprep.subr.bf16.mxu0 %v4485
    %4613 = vmatpush1.bf16.msra.mxu0 %v4484
    %4614 = vmatprep.subr.bf16.mxu0 %v4487
    %4615 = vmatpush1.bf16.msra.mxu0 %v4486
    %4616 = vmatprep.subr.bf16.mxu0 %v4489
    %4617 = vmatpush1.bf16.msra.mxu0 %v4488
    %4618 = vmatprep.subr.bf16.mxu0 %v4491
    %4619 = vmatpush1.bf16.msra.mxu0 %v4490
    %4620 = vmatprep.subr.bf16.mxu0 %v4493
    %4621 = vmatpush1.bf16.msra.mxu0 %v4492
    %4622 = vmatprep.subr.bf16.mxu0 %v4495
    %4623 = vmatpush1.bf16.msra.mxu0 %v4494
    %4624 = vmatprep.subr.bf16.mxu0 %v4497
    %4625 = vmatpush1.bf16.msra.mxu0 %v4496
    %4626 = vmatprep.subr.bf16.mxu0 %v4499
    %4627 = vmatpush1.bf16.msra.mxu0 %v4498
    %4628 = vmatprep.subr.bf16.mxu0 %v4501
    %4629 = vmatpush1.bf16.msra.mxu0 %v4500
    %4630 = vmatprep.mubr.bf16.mxu0 %v4199
    %4631 = vmatmul.mubr.bf16.gmra.mrb[0].mxu0 %v4198
    %v4632 = vpop.f32.mrb[0].mxu0
    %v4633 = vadd.f32 %v4271, %v4632
    %v4634 = vpop.f32.mrb[0].mxu0
    %v4635 = vadd.f32 %v4275, %v4634
    %v4636 = vpop.f32.mrb[0].mxu0
    %v4637 = vpop.f32.mrb[0].mxu0
    %4638 = vdwg.mxu0
    %4639 = vmatprep.subr.bf16.mxu0 %v4503
    %4640 = vmatpush1.bf16.msra.mxu0 %v4502
    %4641 = vmatprep.subr.bf16.mxu0 %v4505
    %4642 = vmatpush1.bf16.msra.mxu0 %v4504
    %4643 = vmatprep.subr.bf16.mxu0 %v4507
    %4644 = vmatpush1.bf16.msra.mxu0 %v4506
    %4645 = vmatprep.subr.bf16.mxu0 %v4509
    %4646 = vmatpush1.bf16.msra.mxu0 %v4508
    %4647 = vmatprep.subr.bf16.mxu0 %v4511
    %4648 = vmatpush1.bf16.msra.mxu0 %v4510
    %4649 = vmatprep.subr.bf16.mxu0 %v4513
    %4650 = vmatpush1.bf16.msra.mxu0 %v4512
    %4651 = vmatprep.subr.bf16.mxu0 %v4515
    %4652 = vmatpush1.bf16.msra.mxu0 %v4514
    %4653 = vmatprep.subr.bf16.mxu0 %v4517
    %4654 = vmatpush1.bf16.msra.mxu0 %v4516
    %4655 = vmatprep.subr.bf16.mxu0 %v4519
    %4656 = vmatpush1.bf16.msra.mxu0 %v4518
    %4657 = vmatprep.subr.bf16.mxu0 %v4521
    %4658 = vmatpush1.bf16.msra.mxu0 %v4520
    %4659 = vmatprep.subr.bf16.mxu0 %v4523
    %4660 = vmatpush1.bf16.msra.mxu0 %v4522
    %4661 = vmatprep.subr.bf16.mxu0 %v4525
    %4662 = vmatpush1.bf16.msra.mxu0 %v4524
    %4663 = vmatprep.subr.bf16.mxu0 %v4527
    %4664 = vmatpush1.bf16.msra.mxu0 %v4526
    %4665 = vmatprep.subr.bf16.mxu0 %v4529
    %4666 = vmatpush1.bf16.msra.mxu0 %v4528
    %4667 = vmatprep.subr.bf16.mxu0 %v4531
    %4668 = vmatpush1.bf16.msra.mxu0 %v4530
    %4669 = vmatprep.subr.bf16.mxu0 %v4533
    %4670 = vmatpush1.bf16.msra.mxu0 %v4532
    %4671 = vmatprep.mubr.bf16.mxu0 %v4201
    %4672 = vmatmul.mubr.bf16.gmra.mrb[0].mxu0 %v4200
    %v4673 = vpop.f32.mrb[0].mxu0
    %v4674 = vadd.f32 %v4633, %v4673
    %v4675 = vpop.f32.mrb[0].mxu0
    %v4676 = vadd.f32 %v4635, %v4675
    %v4677 = vpop.f32.mrb[0].mxu0
    %v4678 = vpop.f32.mrb[0].mxu0
    %4679 = vdwg.mxu0
    %v4680 = vmax.f32 %v4674, 0.0
    %v4681 = vmax.f32 %v4676, 0.0
    %v4682 = vpack.c.bf16 %v4680, %v4680
    %v4683 = vpack.c.bf16 %v4681, %v4681
    %v4684 = vld [vmem:[#allocation26] sm:$0xf]
    %v4685 = vld [vmem:[#allocation26 + $0x4] sm:$0xf]
    %v4686 = vld [vmem:[#allocation26 + $0x8] sm:$0xf]
    %v4687 = vld [vmem:[#allocation26 + $0xc] sm:$0xf]
    %v4688 = vld [vmem:[#allocation26 + $0x10] sm:$0xf]
    %v4689 = vld [vmem:[#allocation26 + $0x14] sm:$0xf]
    %v4690 = vld [vmem:[#allocation26 + $0x18] sm:$0xf]
    %v4691 = vld [vmem:[#allocation26 + $0x1c] sm:$0xf]
    %v4692 = vld [vmem:[#allocation26 + $0x20] sm:$0xf]
    %v4693 = vld [vmem:[#allocation26 + $0x24] sm:$0xf]
    %v4694 = vld [vmem:[#allocation26 + $0x28] sm:$0xf]
    %v4695 = vld [vmem:[#allocation26 + $0x2c] sm:$0xf]
    %v4696 = vld [vmem:[#allocation26 + $0x30] sm:$0xf]
    %v4697 = vld [vmem:[#allocation26 + $0x34] sm:$0xf]
    %v4698 = vld [vmem:[#allocation26 + $0x38] sm:$0xf]
    %v4699 = vld [vmem:[#allocation26 + $0x3c] sm:$0xf]
    %v4700 = vld [vmem:[#allocation26 + $0x40] sm:$0xf]
    %v4701 = vld [vmem:[#allocation26 + $0x44] sm:$0xf]
    %v4702 = vld [vmem:[#allocation26 + $0x48] sm:$0xf]
    %v4703 = vld [vmem:[#allocation26 + $0x4c] sm:$0xf]
    %v4704 = vld [vmem:[#allocation26 + $0x50] sm:$0xf]
    %v4705 = vld [vmem:[#allocation26 + $0x54] sm:$0xf]
    %v4706 = vld [vmem:[#allocation26 + $0x58] sm:$0xf]
    %v4707 = vld [vmem:[#allocation26 + $0x5c] sm:$0xf]
    %v4708 = vld [vmem:[#allocation26 + $0x60] sm:$0xf]
    %v4709 = vld [vmem:[#allocation26 + $0x64] sm:$0xf]
    %v4710 = vld [vmem:[#allocation26 + $0x68] sm:$0xf]
    %v4711 = vld [vmem:[#allocation26 + $0x6c] sm:$0xf]
    %v4712 = vld [vmem:[#allocation26 + $0x70] sm:$0xf]
    %v4713 = vld [vmem:[#allocation26 + $0x74] sm:$0xf]
    %v4714 = vld [vmem:[#allocation26 + $0x78] sm:$0xf]
    %v4715 = vld [vmem:[#allocation26 + $0x7c] sm:$0xf]
    %v4716 = vld [vmem:[%s22] sm:$0x1]
    %v4718 = vlaneseq
    %v4719 = vshrl.u32 %v4718, 7
    %v4720 = vsub.s32 0, %v4719
    %v4721 = vrot.slane %v4716, %v4720
    %v4755 = vunpack.c.l.b16 %v4684
    %v4756 = vunpack.c.l.b16 %v4685
    %v4757 = vunpack.c.l.b16 %v4686
    %v4758 = vunpack.c.l.b16 %v4687
    %v4759 = vunpack.c.l.b16 %v4688
    %v4760 = vunpack.c.l.b16 %v4689
    %v4761 = vunpack.c.l.b16 %v4690
    %v4762 = vunpack.c.l.b16 %v4691
    %v4763 = vunpack.c.l.b16 %v4692
    %v4764 = vunpack.c.l.b16 %v4693
    %v4765 = vunpack.c.l.b16 %v4694
    %v4766 = vunpack.c.l.b16 %v4695
    %v4767 = vunpack.c.l.b16 %v4696
    %v4768 = vunpack.c.l.b16 %v4697
    %v4769 = vunpack.c.l.b16 %v4698
    %v4770 = vunpack.c.l.b16 %v4699
    %v4771 = vunpack.c.l.b16 %v4700
    %v4772 = vunpack.c.l.b16 %v4701
    %v4773 = vunpack.c.l.b16 %v4702
    %v4774 = vunpack.c.l.b16 %v4703
    %v4775 = vunpack.c.l.b16 %v4704
    %v4776 = vunpack.c.l.b16 %v4705
    %v4777 = vunpack.c.l.b16 %v4706
    %v4778 = vunpack.c.l.b16 %v4707
    %v4779 = vunpack.c.l.b16 %v4708
    %v4780 = vunpack.c.l.b16 %v4709
    %v4781 = vunpack.c.l.b16 %v4710
    %v4782 = vunpack.c.l.b16 %v4711
    %v4783 = vunpack.c.l.b16 %v4712
    %v4784 = vunpack.c.l.b16 %v4713
    %v4785 = vunpack.c.l.b16 %v4714
    %v4786 = vunpack.c.l.b16 %v4715
    %v4787 = vpack.c.b16 %v4756, %v4755
    %v4788 = vpack.c.b16 %v4758, %v4757
    %v4789 = vpack.c.b16 %v4760, %v4759
    %v4790 = vpack.c.b16 %v4762, %v4761
    %v4791 = vpack.c.b16 %v4764, %v4763
    %v4792 = vpack.c.b16 %v4766, %v4765
    %v4793 = vpack.c.b16 %v4768, %v4767
    %v4794 = vpack.c.b16 %v4770, %v4769
    %v4795 = vpack.c.b16 %v4772, %v4771
    %v4796 = vpack.c.b16 %v4774, %v4773
    %v4797 = vpack.c.b16 %v4776, %v4775
    %v4798 = vpack.c.b16 %v4778, %v4777
    %v4799 = vpack.c.b16 %v4780, %v4779
    %v4800 = vpack.c.b16 %v4782, %v4781
    %v4801 = vpack.c.b16 %v4784, %v4783
    %v4802 = vpack.c.b16 %v4786, %v4785
    %4819 = vmatprep.subr.bf16.mxu0 0
    %4820 = vmatpush1.bf16.msra.mxu0 %v4787
    %4821 = vmatprep.subr.bf16.mxu0 0
    %4822 = vmatpush1.bf16.msra.mxu0 %v4788
    %4823 = vmatprep.subr.bf16.mxu0 0
    %4824 = vmatpush1.bf16.msra.mxu0 %v4789
    %4825 = vmatprep.subr.bf16.mxu0 0
    %4826 = vmatpush1.bf16.msra.mxu0 %v4790
    %4827 = vmatprep.subr.bf16.mxu0 0
    %4828 = vmatpush1.bf16.msra.mxu0 %v4791
    %4829 = vmatprep.subr.bf16.mxu0 0
    %4830 = vmatpush1.bf16.msra.mxu0 %v4792
    %4831 = vmatprep.subr.bf16.mxu0 0
    %4832 = vmatpush1.bf16.msra.mxu0 %v4793
    %4833 = vmatprep.subr.bf16.mxu0 0
    %4834 = vmatpush1.bf16.msra.mxu0 %v4794
    %4835 = vmatprep.subr.bf16.mxu0 0
    %4836 = vmatpush1.bf16.msra.mxu0 %v4795
    %4837 = vmatprep.subr.bf16.mxu0 0
    %4838 = vmatpush1.bf16.msra.mxu0 %v4796
    %4839 = vmatprep.subr.bf16.mxu0 0
    %4840 = vmatpush1.bf16.msra.mxu0 %v4797
    %4841 = vmatprep.subr.bf16.mxu0 0
    %4842 = vmatpush1.bf16.msra.mxu0 %v4798
    %4843 = vmatprep.subr.bf16.mxu0 0
    %4844 = vmatpush1.bf16.msra.mxu0 %v4799
    %4845 = vmatprep.subr.bf16.mxu0 0
    %4846 = vmatpush1.bf16.msra.mxu0 %v4800
    %4847 = vmatprep.subr.bf16.mxu0 0
    %4848 = vmatpush1.bf16.msra.mxu0 %v4801
    %4849 = vmatprep.subr.bf16.mxu0 0
    %4850 = vmatpush1.bf16.msra.mxu0 %v4802
    %4851 = vmatprep.mubr.bf16.mxu0 %v4683
    %4852 = vmatmul.mubr.bf16.gmra.mrb[0].mxu0 %v4682
    %v4853 = vpop.f32.mrb[0].mxu0
    %v4854 = vadd.f32 %v4721, %v4853
    %v4855 = vpop.f32.mrb[0].mxu0
    %v4856 = vpop.f32.mrb[0].mxu0
    %v4857 = vpop.f32.mrb[0].mxu0
    %4858 = vdwg.mxu0
    %v4859 = vlaneseq
    %v4860 = vand.u32 %v4859, 127
    %vm4861 = vcmp.ge.s32.totalorder %v4860, 5
    %vm4862 = vcmp.lt.s32.totalorder %v4860, 7
    %vm4863 = vmand %vm4861, %vm4862
    %v4864 = vxor.u32 %v4854, 2147483648
    %v4865 = vmul.f32 %v4864, 1.442695
    %v4866 = vpow.pop %v4865
    %v4867 = vadd.f32 %v4866, 1.0
    %v4868 = vrcp.pop %v4867
    %v4869 = vmul.f32 1.0, %v4868
    %v4870 = vsel %vm4863, %v4869, %v4854
    %4871 = vst [vmem:[#allocation28] sm:$0x3] %v4870
    // Predicated region
    $region158: #{tpu_custom_call.1} parent=1 // pred_check
      _
    $region159: #{tpu_custom_call.1} parent=1 // pred_check_branch
      %4873 = sbr.rel (0) target = $region161
    $region160: #{tpu_custom_call.1} parent=1 // pred_region
      %s4875 = ssub.s32 32, 32
      %4876 = vsyncadd [#allocation4], %s4875
      %s4878 = sshll.u32 [#allocation28], 4
      %s4879 = int_to_ptr.vmem [resolvable:$true] %s4878
      %4881 = dma.vmem_to_hbm [thread:$0]  %s4879, 32, %s23, [#allocation4]
    $region161: #{tpu_custom_call.1} parent=1 // pred_fallthru
      _
    // Predicated region
    $region162: #{tpu_custom_call.1} parent=1 // pred_check
      _
    $region163: #{tpu_custom_call.1} parent=1 // pred_check_branch
      %4883 = sbr.rel (0) target = $region165
    $region164: #{tpu_custom_call.1} parent=1 // pred_region
      %4884 = dma.done [#allocation4], 32
    $region165: #{tpu_custom_call.1} parent=1 // pred_fallthru
      _
    %4885 = vsyncpa [#allocation3], 1
    %4886 = vsyncpa [#allocation6], 1
    %4887 = vsyncpa [#allocation9], 1
    %4888 = vsyncpa [#allocation12], 1
    %4889 = vsyncpa [#allocation15], 1
    %4890 = vsyncpa [#allocation18], 1
    %4891 = vsyncpa [#allocation21], 1
    %4892 = vsyncpa [#allocation24], 1
    %4893 = vsyncpa [#allocation27], 1
    %4894 = vsyncpa [#allocation4], 1

</llo_original>
